<compile_context>
chip_gen: v7x
topology: tpu7x:2x2x1
jax: 0.10.0
libtpu: 0.0.40
codegen_flags: <defaults>
</compile_context>

<pallas_src>
import math

import jax
import jax.numpy as jnp
from jax.experimental import pallas as pl
from jax.experimental.pallas import tpu as pltpu

KS = 3            # kernel size
PAD = 1           # padding
EPS = 1e-5        # InstanceNorm2d default eps
NEG_SLOPE = 0.2   # LeakyReLU slope
LANE = 128        # TPU lane width


def _round_up(x, m):
    return (x + m - 1) // m * m


def _conv_in_lrelu_kernel(x_ref, w_ref, o_ref, xpad_ref, acc_ref):
    """One batch element: 3x3/s1/p1 conv + InstanceNorm2d(affine=False) + LeakyReLU(0.2).

    x_ref:    (H, W, Cin_p)            bf16, unpadded image (lane-dense channels)
    w_ref:    (KS*KS, Cin_p, Cout_p)   bf16, per-tap weight slabs
    o_ref:    (H*W, Cout_p)            bf16
    xpad_ref: (H+2, W+2, Cin_p)        bf16 scratch, spatially padded image
    acc_ref:  (H*W, Cout_p)            f32 scratch, conv accumulator
    """
    H, W, Cin = x_ref.shape
    HW, Cout = o_ref.shape
    hp, wp = H + 2 * PAD, W + 2 * PAD

    # --- zero only the 1-pixel halo border (O(perimeter)); interior is overwritten below.
    # Done every grid step (cheap) so it stays correct under megacore batch sharding. ---
    zrow = jnp.zeros((PAD, wp, Cin), xpad_ref.dtype)
    xpad_ref[0:PAD, :, :] = zrow
    xpad_ref[PAD + H:hp, :, :] = zrow
    zcol = jnp.zeros((H, PAD, Cin), xpad_ref.dtype)
    xpad_ref[PAD:PAD + H, 0:PAD, :] = zcol
    xpad_ref[PAD:PAD + H, PAD + W:wp, :] = zcol

    # --- copy the image into the interior of the padded scratch (bf16, no cast) ---
    xpad_ref[PAD:PAD + H, PAD:PAD + W, :] = x_ref[...]

    # --- 9 per-tap accumulating matmuls: bf16 inputs, f32 accumulation in VMEM scratch.
    # Tap i+1's shifted load is independent of tap i's matmul -> copies overlap MXU work. ---
    for tap in range(KS * KS):
        dy, dx = tap // KS, tap % KS
        patch = xpad_ref[dy:dy + H, dx:dx + W, :].reshape(HW, Cin)
        contrib = jnp.dot(patch, w_ref[tap], preferred_element_type=jnp.float32)
        if tap == 0:
            acc_ref[...] = contrib
        else:
            acc_ref[...] += contrib

    # --- InstanceNorm2d (biased variance, eps=1e-5) in f32, then LeakyReLU(0.2).
    # (No conv bias: it is exactly cancelled by the mean subtraction.)
    # TODO(synk): for very large HW, chunk this over row blocks (two-pass sum/sumsq +
    # normalize) to bound vreg live ranges. ---
    acc = acc_ref[...]
    inv_hw = 1.0 / HW
    mean = jnp.sum(acc, axis=0, keepdims=True) * inv_hw
    ex2 = jnp.sum(acc * acc, axis=0, keepdims=True) * inv_hw
    var = jnp.maximum(ex2 - mean * mean, 0.0)
    xn = (acc - mean) * jax.lax.rsqrt(var + EPS)

    # LeakyReLU + lane-dense bf16 store (Cout_p is a multiple of 128).
    o_ref[...] = jnp.where(xn > 0, xn, NEG_SLOPE * xn).astype(o_ref.dtype)


def _vmem_limit_bytes(H, W, cin_p, cout_p):
    """Generation-aware scoped-VMEM budget (physical VMEM from get_tpu_info, ~15% headroom)."""
    hp, wp = H + 2 * PAD, W + 2 * PAD
    dbl = 2  # Pallas double-buffers pipelined operands
    io = (H * W * cin_p * 2              # input block (bf16)
          + H * W * cout_p * 2) * dbl    # output block (bf16)
    wgt = KS * KS * cin_p * cout_p * 2 * dbl   # weight slab (bf16; DMA'd once, 2 buffers alloc'd)
    scratch = (hp * wp * cin_p * 2       # padded image (bf16)
               + H * W * cout_p * 4)     # conv accumulator (f32)
    need = io + wgt + scratch

    phys = 64 << 20  # conservative fallback (v7x per-TC VMEM)
    try:
        info = pltpu.get_tpu_info()
        phys = int(getattr(info, "vmem_capacity_bytes", phys))
    except Exception:
        pass
    cap = int(phys * 0.85)  # leave headroom for compiler temporaries / internal scratch
    # TODO(synk): if `need` exceeds `cap`, tile spatially instead of relying on the clamp.
    return int(min(max(2 * need, 32 << 20), cap))


def conv_block(x, w_taps):
    """x: (N, H, W, Cin_p) bf16 with Cin_p % 128 == 0 (padded channels exactly zero).
    w_taps: (KS*KS, Cin_p, Cout_p) bf16.  Returns (N, H, W, Cout_p) bf16."""
    N, H, W, cin_p = x.shape
    cout_p = w_taps.shape[-1]
    hp, wp = H + 2 * PAD, W + 2 * PAD

    out = pl.pallas_call(
        _conv_in_lrelu_kernel,
        out_shape=jax.ShapeDtypeStruct((N, H * W, cout_p), jnp.bfloat16),
        grid_spec=pltpu.PrefetchScalarGridSpec(
            num_scalar_prefetch=0,
            grid=(N,),
            in_specs=[
                pl.BlockSpec((None, H, W, cin_p), lambda n: (n, 0, 0, 0)),
                pl.BlockSpec((KS * KS, cin_p, cout_p), lambda n: (0, 0, 0)),
            ],
            out_specs=pl.BlockSpec((None, H * W, cout_p), lambda n: (n, 0, 0)),
            scratch_shapes=[
                pltpu.VMEM((hp, wp, cin_p), jnp.bfloat16),   # padded image
                pltpu.VMEM((H * W, cout_p), jnp.float32),    # conv accumulator
            ],
        ),
        compiler_params=pltpu.CompilerParams(
            # disjoint per-image outputs, no cross-iteration state -> shard batch over TCs (v7x)
            dimension_semantics=("parallel",),
            vmem_limit_bytes=_vmem_limit_bytes(H, W, cin_p, cout_p),
        ),
    )(x, w_taps)
    return out.reshape(N, H, W, cout_p)   # free reshape: same bytes as (N, H*W, Cout_p)


def init_unet_conv2_params(key, in_size, out_size, n=2):
    """Deterministic synthetic init matching the module shapes.

    Conv weights: kaiming_normal_(a=0, mode='fan_in') -> std = sqrt(2 / (Cin*ks*ks)).
    Conv biases:  PyTorch default uniform(-1/sqrt(fan_in), 1/sqrt(fan_in)).  (Kept for module
                  fidelity, but a bias before InstanceNorm2d(affine=False) is a numerical no-op.)
    InstanceNorm2d has affine=False -> no parameters.
    Weights stored as (KS, KS, Cin, Cout) (HWIO) for the NHWC kernel.
    """
    params = []
    cin = in_size
    for _ in range(n):
        key, kw, kb = jax.random.split(key, 3)
        fan_in = cin * KS * KS
        std = math.sqrt(2.0 / fan_in)
        w = std * jax.random.normal(kw, (KS, KS, cin, out_size), jnp.float32)
        bound = 1.0 / math.sqrt(fan_in)
        b = jax.random.uniform(kb, (out_size,), jnp.float32, -bound, bound)
        params.append((w, b))
        cin = out_size
    return params


def _pad_params(w):
    """Zero-pad channels to lane multiples; reshape to per-tap (KS*KS, Cin_p, Cout_p) bf16."""
    _, _, cin, cout = w.shape
    cin_p, cout_p = _round_up(cin, LANE), _round_up(cout, LANE)
    w_p = jnp.zeros((KS, KS, cin_p, cout_p), jnp.float32).at[:, :, :cin, :cout].set(w)
    return w_p.reshape(KS * KS, cin_p, cout_p).astype(jnp.bfloat16)


@jax.jit
def unet_conv2_forward(x_nchw, params):
    """NCHW f32 in / NCHW f32 out, matching the PyTorch module."""
    _, cin, _, _ = x_nchw.shape
    cout_final = params[-1][0].shape[-1]

    # NCHW -> NHWC once; activations stay NHWC, channel-padded, bf16 across all n blocks.
    x = jnp.transpose(x_nchw, (0, 2, 3, 1))
    cin_p = _round_up(cin, LANE)
    if cin_p != cin:
        x = jnp.pad(x, ((0, 0), (0, 0), (0, 0), (0, cin_p - cin)))
    x = x.astype(jnp.bfloat16)

    for w, _b in params:   # bias intentionally unused: cancelled by InstanceNorm(affine=False)
        x = conv_block(x, _pad_params(w))

    # drop channel padding (padded channels stay exactly zero), cast back to f32, back to NCHW
    return jnp.transpose(x[..., :cout_final].astype(jnp.float32), (0, 3, 1, 2))


def _ref_forward(x_nchw, params):
    """Pure-JAX f32 reference (conv + bias -> InstanceNorm2d -> LeakyReLU) for validation."""
    x = x_nchw
    for w, b in params:
        y = jax.lax.conv_general_dilated(
            x, w, window_strides=(1, 1), padding=((PAD, PAD), (PAD, PAD)),
            dimension_numbers=("NCHW", "HWIO", "NCHW"))
        y = y + b.reshape(1, -1, 1, 1)
        mean = jnp.mean(y, axis=(2, 3), keepdims=True)
        var = jnp.mean((y - mean) ** 2, axis=(2, 3), keepdims=True)
        y = (y - mean) * jax.lax.rsqrt(var + EPS)
        x = jnp.where(y > 0, y, NEG_SLOPE * y)
    return x


if __name__ == "__main__":
    key = jax.random.PRNGKey(0)
    k_in, k_par = jax.random.split(key)

    N, Cin, H, W = 2, 4, 16, 16
    Cout = 8
    x = jax.random.normal(k_in, (N, Cin, H, W), jnp.float32)
    params = init_unet_conv2_params(k_par, Cin, Cout, n=2)

    y = unet_conv2_forward(x, params)
    jax.block_until_ready(y)

    assert y.shape == (N, Cout, H, W), y.shape
    assert bool(jnp.all(jnp.isfinite(y)))

    # sanity check vs. an f32 XLA reference (kernel uses bf16 activations / matmul inputs)
    y_ref = _ref_forward(x, params)
    max_err = float(jnp.max(jnp.abs(y - y_ref)))
    assert max_err < 0.25, f"max abs error vs reference: {max_err}"

    print("KERNEL_OK")
</pallas_src>

<mosaic_0001>
module attributes {stable_mosaic.version = 11 : i64} {
  func.func @_conv_in_lrelu_kernel(%arg0: i32, %arg1: memref<1x16x16x128xbf16, #tpu.memory_space<vmem>>, %arg2: memref<9x128x128xbf16, #tpu.memory_space<vmem>>, %arg3: memref<1x256x128xbf16, #tpu.memory_space<vmem>>, %arg4: memref<18x18x128xbf16, #tpu.memory_space<vmem>>, %arg5: memref<256x128xf32, #tpu.memory_space<vmem>>) attributes {dimension_semantics = [#tpu.dimension_semantics<parallel>], iteration_bounds = array<i64: 2>, scalar_prefetch = 0 : i64, scratch_operands = 2 : i64, tpu.core_type = #tpu.core_type<tc>, window_params = [{transform_indices = @transform_0, window_bounds = array<i64: 1, 16, 16, 128>}, {pipeline_mode = #tpu.pipeline_mode<synchronous>, transform_indices = @transform_1, window_bounds = array<i64: 9, 128, 128>}, {transform_indices = @transform_2, window_bounds = array<i64: 1, 256, 128>}]} {
    %cst = arith.constant 0.000000e+00 : bf16
    %0 = vector.broadcast %cst : bf16 to vector<1x18x128xbf16>
    %c0 = arith.constant 0 : index
    %c0_0 = arith.constant 0 : index
    %c0_1 = arith.constant 0 : index
    %1 = vector.load %arg4[%c0, %c0_0, %c0_1] : memref<18x18x128xbf16, #tpu.memory_space<vmem>>, vector<1x18x128xbf16>
    tpu.vector_store %arg4[%c0, %c0_0, %c0_1], %0 {strides = array<i32>} : memref<18x18x128xbf16, #tpu.memory_space<vmem>>, vector<1x18x128xbf16>,
    %c17 = arith.constant 17 : index
    %c0_2 = arith.constant 0 : index
    %c0_3 = arith.constant 0 : index
    %2 = vector.load %arg4[%c17, %c0_2, %c0_3] : memref<18x18x128xbf16, #tpu.memory_space<vmem>>, vector<1x18x128xbf16>
    tpu.vector_store %arg4[%c17, %c0_2, %c0_3], %0 {strides = array<i32>} : memref<18x18x128xbf16, #tpu.memory_space<vmem>>, vector<1x18x128xbf16>,
    %cst_4 = arith.constant 0.000000e+00 : bf16
    %3 = vector.broadcast %cst_4 : bf16 to vector<16x1x128xbf16>
    %c1 = arith.constant 1 : index
    %c0_5 = arith.constant 0 : index
    %c0_6 = arith.constant 0 : index
    %4 = vector.load %arg4[%c1, %c0_5, %c0_6] : memref<18x18x128xbf16, #tpu.memory_space<vmem>>, vector<16x1x128xbf16>
    tpu.vector_store %arg4[%c1, %c0_5, %c0_6], %3 {strides = array<i32>} : memref<18x18x128xbf16, #tpu.memory_space<vmem>>, vector<16x1x128xbf16>,
    %c1_7 = arith.constant 1 : index
    %c17_8 = arith.constant 17 : index
    %c0_9 = arith.constant 0 : index
    %5 = vector.load %arg4[%c1_7, %c17_8, %c0_9] : memref<18x18x128xbf16, #tpu.memory_space<vmem>>, vector<16x1x128xbf16>
    tpu.vector_store %arg4[%c1_7, %c17_8, %c0_9], %3 {strides = array<i32>} : memref<18x18x128xbf16, #tpu.memory_space<vmem>>, vector<16x1x128xbf16>,
    %c0_10 = arith.constant 0 : index
    %c0_11 = arith.constant 0 : index
    %c0_12 = arith.constant 0 : index
    %c0_13 = arith.constant 0 : index
    %6 = vector.load %arg1[%c0_10, %c0_11, %c0_12, %c0_13] : memref<1x16x16x128xbf16, #tpu.memory_space<vmem>>, vector<1x16x16x128xbf16>
    %7 = vector.shape_cast %6 : vector<1x16x16x128xbf16> to vector<16x16x128xbf16>
    %c1_14 = arith.constant 1 : index
    %c1_15 = arith.constant 1 : index
    %c0_16 = arith.constant 0 : index
    %8 = vector.load %arg4[%c1_14, %c1_15, %c0_16] : memref<18x18x128xbf16, #tpu.memory_space<vmem>>, vector<16x16x128xbf16>
    tpu.vector_store %arg4[%c1_14, %c1_15, %c0_16], %7 {strides = array<i32>} : memref<18x18x128xbf16, #tpu.memory_space<vmem>>, vector<16x16x128xbf16>,
    %c0_17 = arith.constant 0 : index
    %c0_18 = arith.constant 0 : index
    %c0_19 = arith.constant 0 : index
    %9 = vector.load %arg4[%c0_17, %c0_18, %c0_19] : memref<18x18x128xbf16, #tpu.memory_space<vmem>>, vector<16x16x128xbf16>
    %10 = vector.shape_cast %9 : vector<16x16x128xbf16> to vector<256x128xbf16>
    %c0_20 = arith.constant 0 : index
    %c0_21 = arith.constant 0 : index
    %c0_22 = arith.constant 0 : index
    %11 = vector.load %arg2[%c0_20, %c0_21, %c0_22] : memref<9x128x128xbf16, #tpu.memory_space<vmem>>, vector<1x128x128xbf16>
    %12 = vector.shape_cast %11 : vector<1x128x128xbf16> to vector<128x128xbf16>
    %cst_23 = arith.constant dense<0.000000e+00> : vector<256x128xf32>
    %13 = tpu.matmul %10, %12, %cst_23 {dimension_numbers = #tpu.dot_dimension_numbers<[1], [0], [0], [1], [0, 0, 1, 1], [], []>} : vector<256x128xbf16>, vector<128x128xbf16>, vector<256x128xf32> -> vector<256x128xf32>
    %c0_24 = arith.constant 0 : index
    %c0_25 = arith.constant 0 : index
    %14 = vector.load %arg5[%c0_24, %c0_25] : memref<256x128xf32, #tpu.memory_space<vmem>>, vector<256x128xf32>
    tpu.vector_store %arg5[%c0_24, %c0_25], %13 {strides = array<i32>} : memref<256x128xf32, #tpu.memory_space<vmem>>, vector<256x128xf32>,
    %c0_26 = arith.constant 0 : index
    %c1_27 = arith.constant 1 : index
    %c0_28 = arith.constant 0 : index
    %15 = vector.load %arg4[%c0_26, %c1_27, %c0_28] : memref<18x18x128xbf16, #tpu.memory_space<vmem>>, vector<16x16x128xbf16>
    %16 = vector.shape_cast %15 : vector<16x16x128xbf16> to vector<256x128xbf16>
    %c1_29 = arith.constant 1 : index
    %c0_30 = arith.constant 0 : index
    %c0_31 = arith.constant 0 : index
    %17 = vector.load %arg2[%c1_29, %c0_30, %c0_31] : memref<9x128x128xbf16, #tpu.memory_space<vmem>>, vector<1x128x128xbf16>
    %18 = vector.shape_cast %17 : vector<1x128x128xbf16> to vector<128x128xbf16>
    %cst_32 = arith.constant dense<0.000000e+00> : vector<256x128xf32>
    %19 = tpu.matmul %16, %18, %cst_32 {dimension_numbers = #tpu.dot_dimension_numbers<[1], [0], [0], [1], [0, 0, 1, 1], [], []>} : vector<256x128xbf16>, vector<128x128xbf16>, vector<256x128xf32> -> vector<256x128xf32>
    %c0_33 = arith.constant 0 : index
    %c0_34 = arith.constant 0 : index
    %20 = vector.load %arg5[%c0_33, %c0_34] : memref<256x128xf32, #tpu.memory_space<vmem>>, vector<256x128xf32>
    %21 = arith.addf %20, %19 : vector<256x128xf32>
    %c0_35 = arith.constant 0 : index
    %c0_36 = arith.constant 0 : index
    %22 = vector.load %arg5[%c0_35, %c0_36] : memref<256x128xf32, #tpu.memory_space<vmem>>, vector<256x128xf32>
    tpu.vector_store %arg5[%c0_35, %c0_36], %21 {strides = array<i32>} : memref<256x128xf32, #tpu.memory_space<vmem>>, vector<256x128xf32>,
    %c0_37 = arith.constant 0 : index
    %c2 = arith.constant 2 : index
    %c0_38 = arith.constant 0 : index
    %23 = vector.load %arg4[%c0_37, %c2, %c0_38] : memref<18x18x128xbf16, #tpu.memory_space<vmem>>, vector<16x16x128xbf16>
    %24 = vector.shape_cast %23 : vector<16x16x128xbf16> to vector<256x128xbf16>
    %c2_39 = arith.constant 2 : index
    %c0_40 = arith.constant 0 : index
    %c0_41 = arith.constant 0 : index
    %25 = vector.load %arg2[%c2_39, %c0_40, %c0_41] : memref<9x128x128xbf16, #tpu.memory_space<vmem>>, vector<1x128x128xbf16>
    %26 = vector.shape_cast %25 : vector<1x128x128xbf16> to vector<128x128xbf16>
    %cst_42 = arith.constant dense<0.000000e+00> : vector<256x128xf32>
    %27 = tpu.matmul %24, %26, %cst_42 {dimension_numbers = #tpu.dot_dimension_numbers<[1], [0], [0], [1], [0, 0, 1, 1], [], []>} : vector<256x128xbf16>, vector<128x128xbf16>, vector<256x128xf32> -> vector<256x128xf32>
    %c0_43 = arith.constant 0 : index
    %c0_44 = arith.constant 0 : index
    %28 = vector.load %arg5[%c0_43, %c0_44] : memref<256x128xf32, #tpu.memory_space<vmem>>, vector<256x128xf32>
    %29 = arith.addf %28, %27 : vector<256x128xf32>
    %c0_45 = arith.constant 0 : index
    %c0_46 = arith.constant 0 : index
    %30 = vector.load %arg5[%c0_45, %c0_46] : memref<256x128xf32, #tpu.memory_space<vmem>>, vector<256x128xf32>
    tpu.vector_store %arg5[%c0_45, %c0_46], %29 {strides = array<i32>} : memref<256x128xf32, #tpu.memory_space<vmem>>, vector<256x128xf32>,
    %c1_47 = arith.constant 1 : index
    %c0_48 = arith.constant 0 : index
    %c0_49 = arith.constant 0 : index
    %31 = vector.load %arg4[%c1_47, %c0_48, %c0_49] : memref<18x18x128xbf16, #tpu.memory_space<vmem>>, vector<16x16x128xbf16>
    %32 = vector.shape_cast %31 : vector<16x16x128xbf16> to vector<256x128xbf16>
    %c3 = arith.constant 3 : index
    %c0_50 = arith.constant 0 : index
    %c0_51 = arith.constant 0 : index
    %33 = vector.load %arg2[%c3, %c0_50, %c0_51] : memref<9x128x128xbf16, #tpu.memory_space<vmem>>, vector<1x128x128xbf16>
    %34 = vector.shape_cast %33 : vector<1x128x128xbf16> to vector<128x128xbf16>
    %cst_52 = arith.constant dense<0.000000e+00> : vector<256x128xf32>
    %35 = tpu.matmul %32, %34, %cst_52 {dimension_numbers = #tpu.dot_dimension_numbers<[1], [0], [0], [1], [0, 0, 1, 1], [], []>} : vector<256x128xbf16>, vector<128x128xbf16>, vector<256x128xf32> -> vector<256x128xf32>
    %c0_53 = arith.constant 0 : index
    %c0_54 = arith.constant 0 : index
    %36 = vector.load %arg5[%c0_53, %c0_54] : memref<256x128xf32, #tpu.memory_space<vmem>>, vector<256x128xf32>
    %37 = arith.addf %36, %35 : vector<256x128xf32>
    %c0_55 = arith.constant 0 : index
    %c0_56 = arith.constant 0 : index
    %38 = vector.load %arg5[%c0_55, %c0_56] : memref<256x128xf32, #tpu.memory_space<vmem>>, vector<256x128xf32>
    tpu.vector_store %arg5[%c0_55, %c0_56], %37 {strides = array<i32>} : memref<256x128xf32, #tpu.memory_space<vmem>>, vector<256x128xf32>,
    %c1_57 = arith.constant 1 : index
    %c1_58 = arith.constant 1 : index
    %c0_59 = arith.constant 0 : index
    %39 = vector.load %arg4[%c1_57, %c1_58, %c0_59] : memref<18x18x128xbf16, #tpu.memory_space<vmem>>, vector<16x16x128xbf16>
    %40 = vector.shape_cast %39 : vector<16x16x128xbf16> to vector<256x128xbf16>
    %c4 = arith.constant 4 : index
    %c0_60 = arith.constant 0 : index
    %c0_61 = arith.constant 0 : index
    %41 = vector.load %arg2[%c4, %c0_60, %c0_61] : memref<9x128x128xbf16, #tpu.memory_space<vmem>>, vector<1x128x128xbf16>
    %42 = vector.shape_cast %41 : vector<1x128x128xbf16> to vector<128x128xbf16>
    %cst_62 = arith.constant dense<0.000000e+00> : vector<256x128xf32>
    %43 = tpu.matmul %40, %42, %cst_62 {dimension_numbers = #tpu.dot_dimension_numbers<[1], [0], [0], [1], [0, 0, 1, 1], [], []>} : vector<256x128xbf16>, vector<128x128xbf16>, vector<256x128xf32> -> vector<256x128xf32>
    %c0_63 = arith.constant 0 : index
    %c0_64 = arith.constant 0 : index
    %44 = vector.load %arg5[%c0_63, %c0_64] : memref<256x128xf32, #tpu.memory_space<vmem>>, vector<256x128xf32>
    %45 = arith.addf %44, %43 : vector<256x128xf32>
    %c0_65 = arith.constant 0 : index
    %c0_66 = arith.constant 0 : index
    %46 = vector.load %arg5[%c0_65, %c0_66] : memref<256x128xf32, #tpu.memory_space<vmem>>, vector<256x128xf32>
    tpu.vector_store %arg5[%c0_65, %c0_66], %45 {strides = array<i32>} : memref<256x128xf32, #tpu.memory_space<vmem>>, vector<256x128xf32>,
    %c1_67 = arith.constant 1 : index
    %c2_68 = arith.constant 2 : index
    %c0_69 = arith.constant 0 : index
    %47 = vector.load %arg4[%c1_67, %c2_68, %c0_69] : memref<18x18x128xbf16, #tpu.memory_space<vmem>>, vector<16x16x128xbf16>
    %48 = vector.shape_cast %47 : vector<16x16x128xbf16> to vector<256x128xbf16>
    %c5 = arith.constant 5 : index
    %c0_70 = arith.constant 0 : index
    %c0_71 = arith.constant 0 : index
    %49 = vector.load %arg2[%c5, %c0_70, %c0_71] : memref<9x128x128xbf16, #tpu.memory_space<vmem>>, vector<1x128x128xbf16>
    %50 = vector.shape_cast %49 : vector<1x128x128xbf16> to vector<128x128xbf16>
    %cst_72 = arith.constant dense<0.000000e+00> : vector<256x128xf32>
    %51 = tpu.matmul %48, %50, %cst_72 {dimension_numbers = #tpu.dot_dimension_numbers<[1], [0], [0], [1], [0, 0, 1, 1], [], []>} : vector<256x128xbf16>, vector<128x128xbf16>, vector<256x128xf32> -> vector<256x128xf32>
    %c0_73 = arith.constant 0 : index
    %c0_74 = arith.constant 0 : index
    %52 = vector.load %arg5[%c0_73, %c0_74] : memref<256x128xf32, #tpu.memory_space<vmem>>, vector<256x128xf32>
    %53 = arith.addf %52, %51 : vector<256x128xf32>
    %c0_75 = arith.constant 0 : index
    %c0_76 = arith.constant 0 : index
    %54 = vector.load %arg5[%c0_75, %c0_76] : memref<256x128xf32, #tpu.memory_space<vmem>>, vector<256x128xf32>
    tpu.vector_store %arg5[%c0_75, %c0_76], %53 {strides = array<i32>} : memref<256x128xf32, #tpu.memory_space<vmem>>, vector<256x128xf32>,
    %c2_77 = arith.constant 2 : index
    %c0_78 = arith.constant 0 : index
    %c0_79 = arith.constant 0 : index
    %55 = vector.load %arg4[%c2_77, %c0_78, %c0_79] : memref<18x18x128xbf16, #tpu.memory_space<vmem>>, vector<16x16x128xbf16>
    %56 = vector.shape_cast %55 : vector<16x16x128xbf16> to vector<256x128xbf16>
    %c6 = arith.constant 6 : index
    %c0_80 = arith.constant 0 : index
    %c0_81 = arith.constant 0 : index
    %57 = vector.load %arg2[%c6, %c0_80, %c0_81] : memref<9x128x128xbf16, #tpu.memory_space<vmem>>, vector<1x128x128xbf16>
    %58 = vector.shape_cast %57 : vector<1x128x128xbf16> to vector<128x128xbf16>
    %cst_82 = arith.constant dense<0.000000e+00> : vector<256x128xf32>
    %59 = tpu.matmul %56, %58, %cst_82 {dimension_numbers = #tpu.dot_dimension_numbers<[1], [0], [0], [1], [0, 0, 1, 1], [], []>} : vector<256x128xbf16>, vector<128x128xbf16>, vector<256x128xf32> -> vector<256x128xf32>
    %c0_83 = arith.constant 0 : index
    %c0_84 = arith.constant 0 : index
    %60 = vector.load %arg5[%c0_83, %c0_84] : memref<256x128xf32, #tpu.memory_space<vmem>>, vector<256x128xf32>
    %61 = arith.addf %60, %59 : vector<256x128xf32>
    %c0_85 = arith.constant 0 : index
    %c0_86 = arith.constant 0 : index
    %62 = vector.load %arg5[%c0_85, %c0_86] : memref<256x128xf32, #tpu.memory_space<vmem>>, vector<256x128xf32>
    tpu.vector_store %arg5[%c0_85, %c0_86], %61 {strides = array<i32>} : memref<256x128xf32, #tpu.memory_space<vmem>>, vector<256x128xf32>,
    %c2_87 = arith.constant 2 : index
    %c1_88 = arith.constant 1 : index
    %c0_89 = arith.constant 0 : index
    %63 = vector.load %arg4[%c2_87, %c1_88, %c0_89] : memref<18x18x128xbf16, #tpu.memory_space<vmem>>, vector<16x16x128xbf16>
    %64 = vector.shape_cast %63 : vector<16x16x128xbf16> to vector<256x128xbf16>
    %c7 = arith.constant 7 : index
    %c0_90 = arith.constant 0 : index
    %c0_91 = arith.constant 0 : index
    %65 = vector.load %arg2[%c7, %c0_90, %c0_91] : memref<9x128x128xbf16, #tpu.memory_space<vmem>>, vector<1x128x128xbf16>
    %66 = vector.shape_cast %65 : vector<1x128x128xbf16> to vector<128x128xbf16>
    %cst_92 = arith.constant dense<0.000000e+00> : vector<256x128xf32>
    %67 = tpu.matmul %64, %66, %cst_92 {dimension_numbers = #tpu.dot_dimension_numbers<[1], [0], [0], [1], [0, 0, 1, 1], [], []>} : vector<256x128xbf16>, vector<128x128xbf16>, vector<256x128xf32> -> vector<256x128xf32>
    %c0_93 = arith.constant 0 : index
    %c0_94 = arith.constant 0 : index
    %68 = vector.load %arg5[%c0_93, %c0_94] : memref<256x128xf32, #tpu.memory_space<vmem>>, vector<256x128xf32>
    %69 = arith.addf %68, %67 : vector<256x128xf32>
    %c0_95 = arith.constant 0 : index
    %c0_96 = arith.constant 0 : index
    %70 = vector.load %arg5[%c0_95, %c0_96] : memref<256x128xf32, #tpu.memory_space<vmem>>, vector<256x128xf32>
    tpu.vector_store %arg5[%c0_95, %c0_96], %69 {strides = array<i32>} : memref<256x128xf32, #tpu.memory_space<vmem>>, vector<256x128xf32>,
    %c2_97 = arith.constant 2 : index
    %c2_98 = arith.constant 2 : index
    %c0_99 = arith.constant 0 : index
    %71 = vector.load %arg4[%c2_97, %c2_98, %c0_99] : memref<18x18x128xbf16, #tpu.memory_space<vmem>>, vector<16x16x128xbf16>
    %72 = vector.shape_cast %71 : vector<16x16x128xbf16> to vector<256x128xbf16>
    %c8 = arith.constant 8 : index
    %c0_100 = arith.constant 0 : index
    %c0_101 = arith.constant 0 : index
    %73 = vector.load %arg2[%c8, %c0_100, %c0_101] : memref<9x128x128xbf16, #tpu.memory_space<vmem>>, vector<1x128x128xbf16>
    %74 = vector.shape_cast %73 : vector<1x128x128xbf16> to vector<128x128xbf16>
    %cst_102 = arith.constant dense<0.000000e+00> : vector<256x128xf32>
    %75 = tpu.matmul %72, %74, %cst_102 {dimension_numbers = #tpu.dot_dimension_numbers<[1], [0], [0], [1], [0, 0, 1, 1], [], []>} : vector<256x128xbf16>, vector<128x128xbf16>, vector<256x128xf32> -> vector<256x128xf32>
    %c0_103 = arith.constant 0 : index
    %c0_104 = arith.constant 0 : index
    %76 = vector.load %arg5[%c0_103, %c0_104] : memref<256x128xf32, #tpu.memory_space<vmem>>, vector<256x128xf32>
    %77 = arith.addf %76, %75 : vector<256x128xf32>
    %c0_105 = arith.constant 0 : index
    %c0_106 = arith.constant 0 : index
    %78 = vector.load %arg5[%c0_105, %c0_106] : memref<256x128xf32, #tpu.memory_space<vmem>>, vector<256x128xf32>
    tpu.vector_store %arg5[%c0_105, %c0_106], %77 {strides = array<i32>} : memref<256x128xf32, #tpu.memory_space<vmem>>, vector<256x128xf32>,
    %c0_107 = arith.constant 0 : index
    %c0_108 = arith.constant 0 : index
    %79 = vector.load %arg5[%c0_107, %c0_108] : memref<256x128xf32, #tpu.memory_space<vmem>>, vector<256x128xf32>
    %cst_109 = arith.constant dense<0.000000e+00> : vector<128xf32>
    %80 = vector.multi_reduction <add>, %79, %cst_109 [0] : vector<256x128xf32> to vector<128xf32>
    %81 = vector.shape_cast %80 : vector<128xf32> to vector<1x128xf32>
    %cst_110 = arith.constant 3.906250e-03 : f32
    %82 = vector.broadcast %cst_110 : f32 to vector<1x128xf32>
    %83 = arith.mulf %81, %82 : vector<1x128xf32>
    %84 = arith.mulf %79, %79 : vector<256x128xf32>
    %cst_111 = arith.constant dense<0.000000e+00> : vector<128xf32>
    %85 = vector.multi_reduction <add>, %84, %cst_111 [0] : vector<256x128xf32> to vector<128xf32>
    %86 = vector.shape_cast %85 : vector<128xf32> to vector<1x128xf32>
    %cst_112 = arith.constant 3.906250e-03 : f32
    %87 = vector.broadcast %cst_112 : f32 to vector<1x128xf32>
    %88 = arith.mulf %86, %87 : vector<1x128xf32>
    %89 = arith.mulf %83, %83 : vector<1x128xf32>
    %90 = arith.subf %88, %89 : vector<1x128xf32>
    %cst_113 = arith.constant 0.000000e+00 : f32
    %91 = vector.broadcast %cst_113 : f32 to vector<1x128xf32>
    %92 = arith.maximumf %90, %91 : vector<1x128xf32>
    %93 = vector.broadcast %83 : vector<1x128xf32> to vector<256x128xf32>
    %94 = arith.subf %79, %93 : vector<256x128xf32>
    %cst_114 = arith.constant 9.99999974E-6 : f32
    %95 = vector.broadcast %cst_114 : f32 to vector<1x128xf32>
    %96 = arith.addf %92, %95 : vector<1x128xf32>
    %97 = math.rsqrt %96 : vector<1x128xf32>
    %98 = vector.broadcast %97 : vector<1x128xf32> to vector<256x128xf32>
    %99 = arith.mulf %94, %98 : vector<256x128xf32>
    %cst_115 = arith.constant 0.000000e+00 : f32
    %100 = vector.broadcast %cst_115 : f32 to vector<256x128xf32>
    %101 = arith.cmpf ogt, %99, %100 : vector<256x128xf32>
    %cst_116 = arith.constant 2.000000e-01 : f32
    %102 = vector.broadcast %cst_116 : f32 to vector<256x128xf32>
    %103 = arith.mulf %102, %99 : vector<256x128xf32>
    %104 = arith.select %101, %99, %103 : vector<256x128xi1>, vector<256x128xf32>
    %105 = arith.truncf %104 : vector<256x128xf32> to vector<256x128xbf16>
    %c0_117 = arith.constant 0 : index
    %c0_118 = arith.constant 0 : index
    %c0_119 = arith.constant 0 : index
    %106 = vector.load %arg3[%c0_117, %c0_118, %c0_119] : memref<1x256x128xbf16, #tpu.memory_space<vmem>>, vector<1x256x128xbf16>
    %107 = vector.shape_cast %106 : vector<1x256x128xbf16> to vector<256x128xbf16>
    %108 = vector.shape_cast %105 : vector<256x128xbf16> to vector<1x256x128xbf16>
    tpu.vector_store %arg3[%c0_117, %c0_118, %c0_119], %108 {strides = array<i32>} : memref<1x256x128xbf16, #tpu.memory_space<vmem>>, vector<1x256x128xbf16>,
    return
  }
  func.func @transform_0(%arg0: i32) -> (i32, i32, i32, i32) {
    %c0_i32 = arith.constant 0 : i32
    %c0_i32_0 = arith.constant 0 : i32
    %c0_i32_1 = arith.constant 0 : i32
    %c0_i32_2 = arith.constant 0 : i32
    return %arg0, %c0_i32, %c0_i32_0, %c0_i32_1 : i32, i32, i32, i32
  }
  func.func @transform_1(%arg0: i32) -> (i32, i32, i32) {
    %c0_i32 = arith.constant 0 : i32
    %c0_i32_0 = arith.constant 0 : i32
    %c0_i32_1 = arith.constant 0 : i32
    %c0_i32_2 = arith.constant 0 : i32
    return %c0_i32, %c0_i32_0, %c0_i32_1 : i32, i32, i32
  }
  func.func @transform_2(%arg0: i32) -> (i32, i32, i32) {
    %c0_i32 = arith.constant 0 : i32
    %c0_i32_0 = arith.constant 0 : i32
    %c0_i32_1 = arith.constant 0 : i32
    return %arg0, %c0_i32, %c0_i32_0 : i32, i32, i32
  }
}

</mosaic_0001>

<llo_original>
// kernel: unet_conv2_forward.2
$region0: #{unet_conv2_forward.2}
  #allocation0 [shape = 'u32[]', space=smem, size = 0x4, offset = 0x4, fixed_abs, tag = 'smem constant byte address 0x4 - core index']
  #allocation1 [shape = 'u32[144,128]{1,0:T(1,128)}', space=vmem, size = 0x12000, scoped, tag = 'internal scratch']
  #allocation2 [shape = 'bf16[18,18,128]{2,1,0:T(8,128)(2,1)}', space=vmem, size = 0x1b000, scoped, tag = 'scratch operand']
  #allocation3 [shape = 'f32[256,128]{1,0:T(8,128)}', space=vmem, size = 0x20000, scoped, tag = 'scratch operand']
  %s0 = inlined_call_operand.vmem [shape: bf16[2,16,16,128], index: 0, kind: input, shape index: {}]
  %s1 = inlined_call_operand.vmem [shape: bf16[9,128,128], index: 1, kind: input, shape index: {}]
  %s2 = inlined_call_operand.vmem [shape: bf16[2,256,128], index: 2, kind: output, shape index: {}]
  %s3 = sld [smem:[#allocation0]]
  $region41: #{unet_conv2_forward.2} parent=0
    _
  %s5 = ssub.s32 1, %s3
  %s6 = scalar_select 0, %s5, %s3
  loop: start=0, step=1, limit=4
  $region2: #{unet_conv2_forward.2} parent=0 // loop_pre_header
    _
  $region3: #{unet_conv2_forward.2} parent=0 // loop_header
    %s8 = sphi 0, %s12
    %p9 = scmp.ge.s32.totalorder %s8, 4
    %s18 = sphi 0, %s20
    %s21 = sphi 0, %s18
    %s22 = sphi 0, %s21
    %s38 = sphi 0, %s22
    %s42 = sphi 0, %s42
    %s44 = sphi 0, %s42
    %s45 = sphi 0, %s44
    %s59 = sphi 0, %s45
    %s65 = sphi 0, %s67
    %s68 = sphi 0, %s65
    %s69 = sphi 0, %s68
    %s85 = sphi 0, %s69
  $region4: #{unet_conv2_forward.2} parent=0 // loop_header_branch
    %11 = sbr.rel (%p9) target = $region8
  $region5: #{unet_conv2_forward.2} parent=0 // loop_body
    %s13 = ssub.s32 %s8, 1
    %s14 = ssub.s32 %s8, 2
    %s15 = sadd.s32 %s8, 1
    %s16 = ssub.s32 %s8, %s15
    %p17 = scmp.eq.s32.totalorder %s16, 0
    %s19 = sadd.s32 %s18, 1
    %s20 = scalar_select %p17, %s18, %s19
    %p23 = pneg %p17
    %p24 = scmp.eq.s32.totalorder %s8, 1
    %p25 = por %p23, %p24
    %p26 = scmp.ne.s32.totalorder %s18, %s21
    %p27 = scmp.eq.s32.totalorder %s8, 0
    %p28 = por %p26, %p27
    %p29 = scmp.ne.s32.totalorder %s18, %s21
    %p30 = scmp.eq.s32.totalorder %s13, 1
    %p31 = por %p29, %p30
    %p32 = scmp.ne.s32.totalorder %s21, %s22
    %p33 = scmp.eq.s32.totalorder %s13, 0
    %p34 = por %p32, %p33
    %p35 = scmp.ne.s32.totalorder %s21, %s22
    %p36 = scmp.eq.s32.totalorder %s14, 1
    %p37 = por %p35, %p36
    %p39 = scmp.ne.s32.totalorder %s22, %s38
    %p40 = scmp.eq.s32.totalorder %s14, 0
    %p41 = por %p39, %p40
    %s43 = sadd.s32 %s42, 1
    %p46 = scmp.eq.s32.totalorder %s8, 1
    %p47 = scmp.ne.s32.totalorder %s42, %s44
    %p48 = scmp.eq.s32.totalorder %s8, 0
    %p49 = por %p47, %p48
    %p50 = scmp.ne.s32.totalorder %s42, %s44
    %p51 = scmp.eq.s32.totalorder %s13, 1
    %p52 = por %p50, %p51
    %p53 = scmp.ne.s32.totalorder %s44, %s45
    %p54 = scmp.eq.s32.totalorder %s13, 0
    %p55 = por %p53, %p54
    %p56 = scmp.ne.s32.totalorder %s44, %s45
    %p57 = scmp.eq.s32.totalorder %s14, 1
    %p58 = por %p56, %p57
    %p60 = scmp.ne.s32.totalorder %s45, %s59
    %p61 = scmp.eq.s32.totalorder %s14, 0
    %p62 = por %p60, %p61
    %s63 = ssub.s32 %s8, %s15
    %p64 = scmp.eq.s32.totalorder %s63, 0
    %s66 = sadd.s32 %s65, 1
    %s67 = scalar_select %p64, %s65, %s66
    %p70 = pneg %p64
    %p71 = scmp.eq.s32.totalorder %s8, 1
    %p72 = por %p70, %p71
    %p73 = scmp.ne.s32.totalorder %s65, %s68
    %p74 = scmp.eq.s32.totalorder %s8, 0
    %p75 = por %p73, %p74
    %p76 = scmp.ne.s32.totalorder %s65, %s68
    %p77 = scmp.eq.s32.totalorder %s13, 1
    %p78 = por %p76, %p77
    %p79 = scmp.ne.s32.totalorder %s68, %s69
    %p80 = scmp.eq.s32.totalorder %s13, 0
    %p81 = por %p79, %p80
    %p82 = scmp.ne.s32.totalorder %s68, %s69
    %p83 = scmp.eq.s32.totalorder %s14, 1
    %p84 = por %p82, %p83
    %p86 = scmp.ne.s32.totalorder %s69, %s85
    %p87 = scmp.eq.s32.totalorder %s14, 0
    %p88 = por %p86, %p87
    %p89 = scmp.le.s32.totalorder 1, %s8
    %p90 = scmp.lt.s32.totalorder %s8, 3
    %p91 = pnand %p89, %p90
    %p92 = pneg %p91
    // Predicated region
    $region9: #{unet_conv2_forward.2} parent=5 // pred_check
      _
    $region10: #{unet_conv2_forward.2} parent=5 // pred_check_branch
      %94 = sbr.rel (%p91) target = $region12
    $region11: #{unet_conv2_forward.2} parent=5 // pred_region
      %s95 = ssub.s32 %s8, 1
      // Predicated region
      $region13: #{unet_conv2_forward.2} parent=11 // pred_check
        %p96 = pneg %p55
      $region14: #{unet_conv2_forward.2} parent=11 // pred_check_branch
        %98 = sbr.rel (%p96) target = $region16
      $region15: #{unet_conv2_forward.2} parent=11 // pred_region
        _
      $region16: #{unet_conv2_forward.2} parent=11 // pred_fallthru
        _
    $region12: #{unet_conv2_forward.2} parent=5 // pred_fallthru
      _
    %p99 = scmp.lt.s32.totalorder %s8, 2
    // Predicated region
    $region17: #{unet_conv2_forward.2} parent=5 // pred_check
      %p100 = pneg %p99
    $region18: #{unet_conv2_forward.2} parent=5 // pred_check_branch
      %102 = sbr.rel (%p100) target = $region20
    $region19: #{unet_conv2_forward.2} parent=5 // pred_region
      // Predicated region
      $region21: #{unet_conv2_forward.2} parent=19 // pred_check
        %p103 = pneg %p28
      $region22: #{unet_conv2_forward.2} parent=19 // pred_check_branch
        %105 = sbr.rel (%p103) target = $region24
      $region23: #{unet_conv2_forward.2} parent=19 // pred_region
        %p106 = scmp.lt.s32.totalorder %s8, 1
        %s107 = scalar_select %p106, %s8, 1
        %s108 = smul.addr %s107, 32
        %s109 = smul.addr %s108, 4
        %s110 = scalar_lea.vmem %s0, %s109
      $region24: #{unet_conv2_forward.2} parent=19 // pred_fallthru
        _
    $region20: #{unet_conv2_forward.2} parent=5 // pred_fallthru
      _
    %p111 = scmp.le.s32.totalorder 1, %s8
    %p112 = scmp.lt.s32.totalorder %s8, 3
    %p113 = pnand %p111, %p112
    %p114 = pneg %p113
    // Predicated region
    $region25: #{unet_conv2_forward.2} parent=5 // pred_check
      _
    $region26: #{unet_conv2_forward.2} parent=5 // pred_check_branch
      %116 = sbr.rel (%p113) target = $region28
    $region27: #{unet_conv2_forward.2} parent=5 // pred_region
      %s117 = ssub.s32 %s8, 1
      %p118 = scmp.lt.s32.totalorder %s13, 1
      %s119 = scalar_select %p118, %s13, 1
      %s120 = smul.addr %s119, 32
      %s121 = smul.addr %s120, 4
      %s122 = scalar_lea.vmem %s0, %s121
      %p123 = pneg %p34
      %p124 = pneg %p31
      %p125 = pneg %p55
      %p126 = pneg %p52
      %p127 = pneg %p81
      %p128 = pneg %p78
      %p129 = scmp.lt.s32.totalorder %s13, 1
      %s130 = scalar_select %p129, %s13, 1
      %s131 = smul.addr %s130, 32
      %s132 = smul.addr %s131, 4
      %s133 = scalar_lea.vmem %s2, %s132
      %p134 = scmp.lt.s32.totalorder %s13, 1
      %s135 = scalar_select %p134, %s13, 1
      %s136 = smul.addr %s135, 32
      %s137 = smul.addr %s136, 4
      %s138 = scalar_lea.vmem %s0, %s137
      %p139 = scmp.lt.s32.totalorder %s13, 1
      %s140 = scalar_select %p139, %s13, 1
      %s141 = smul.addr %s140, 32
      %s142 = smul.addr %s141, 4
      %s143 = scalar_lea.vmem %s2, %s142
      %145 = vst [vmem:[#allocation2] sm:$0xf] 0
      %146 = vst [vmem:[#allocation2 + $0x4] sm:$0xf] 0
      %147 = vst [vmem:[#allocation2 + $0x8] sm:$0x1] 0
      %s148 = scalar_lea.vmem [#allocation2], 204
      %149 = vst [vmem:[%s148] sm:$0xf] 0
      %150 = vst [vmem:[%s148 + $0x4] sm:$0xf] 0
      %151 = vst [vmem:[%s148 + $0x8] sm:$0x1] 0
      %s152 = scalar_lea.vmem [#allocation2], 12
      %vm153 = vcmask 1040384
      %vm154 = vsmask.f32 256
      %vm155 = vmand %vm153, %vm154
      %v156 = vld [vmem:[%s152] sm:$0x1]
      %v157 = vsel %vm155, 0, %v156
      %158 = vst [vmem:[%s152] sm:$0x1] %v157
      %v159 = vld [vmem:[%s152 + $0xc] sm:$0x1]
      %v160 = vsel %vm155, 0, %v159
      %161 = vst [vmem:[%s152 + $0xc] sm:$0x1] %v160
      %v162 = vld [vmem:[%s152 + $0x18] sm:$0x1]
      %v163 = vsel %vm155, 0, %v162
      %164 = vst [vmem:[%s152 + $0x18] sm:$0x1] %v163
      %v165 = vld [vmem:[%s152 + $0x24] sm:$0x1]
      %v166 = vsel %vm155, 0, %v165
      %167 = vst [vmem:[%s152 + $0x24] sm:$0x1] %v166
      %v168 = vld [vmem:[%s152 + $0x30] sm:$0x1]
      %v169 = vsel %vm155, 0, %v168
      %170 = vst [vmem:[%s152 + $0x30] sm:$0x1] %v169
      %v171 = vld [vmem:[%s152 + $0x3c] sm:$0x1]
      %v172 = vsel %vm155, 0, %v171
      %173 = vst [vmem:[%s152 + $0x3c] sm:$0x1] %v172
      %v174 = vld [vmem:[%s152 + $0x48] sm:$0x1]
      %v175 = vsel %vm155, 0, %v174
      %176 = vst [vmem:[%s152 + $0x48] sm:$0x1] %v175
      %v177 = vld [vmem:[%s152 + $0x54] sm:$0x1]
      %v178 = vsel %vm155, 0, %v177
      %179 = vst [vmem:[%s152 + $0x54] sm:$0x1] %v178
      %v180 = vld [vmem:[%s152 + $0x60] sm:$0x1]
      %v181 = vsel %vm155, 0, %v180
      %182 = vst [vmem:[%s152 + $0x60] sm:$0x1] %v181
      %v183 = vld [vmem:[%s152 + $0x6c] sm:$0x1]
      %v184 = vsel %vm155, 0, %v183
      %185 = vst [vmem:[%s152 + $0x6c] sm:$0x1] %v184
      %v186 = vld [vmem:[%s152 + $0x78] sm:$0x1]
      %v187 = vsel %vm155, 0, %v186
      %188 = vst [vmem:[%s152 + $0x78] sm:$0x1] %v187
      %v189 = vld [vmem:[%s152 + $0x84] sm:$0x1]
      %v190 = vsel %vm155, 0, %v189
      %191 = vst [vmem:[%s152 + $0x84] sm:$0x1] %v190
      %v192 = vld [vmem:[%s152 + $0x90] sm:$0x1]
      %v193 = vsel %vm155, 0, %v192
      %194 = vst [vmem:[%s152 + $0x90] sm:$0x1] %v193
      %v195 = vld [vmem:[%s152 + $0x9c] sm:$0x1]
      %v196 = vsel %vm155, 0, %v195
      %197 = vst [vmem:[%s152 + $0x9c] sm:$0x1] %v196
      %v198 = vld [vmem:[%s152 + $0xa8] sm:$0x1]
      %v199 = vsel %vm155, 0, %v198
      %200 = vst [vmem:[%s152 + $0xa8] sm:$0x1] %v199
      %v201 = vld [vmem:[%s152 + $0xb4] sm:$0x1]
      %v202 = vsel %vm155, 0, %v201
      %203 = vst [vmem:[%s152 + $0xb4] sm:$0x1] %v202
      %vm204 = vsmask.f32 7938
      %vm205 = vmand %vm153, %vm204
      %v206 = vld [vmem:[%s152 + $0x8] sm:$0x1]
      %v207 = vsel %vm205, 0, %v206
      %208 = vst [vmem:[%s152 + $0x8] sm:$0x1] %v207
      %v209 = vld [vmem:[%s152 + $0x14] sm:$0x1]
      %v210 = vsel %vm205, 0, %v209
      %211 = vst [vmem:[%s152 + $0x14] sm:$0x1] %v210
      %v212 = vld [vmem:[%s152 + $0x20] sm:$0x1]
      %v213 = vsel %vm205, 0, %v212
      %214 = vst [vmem:[%s152 + $0x20] sm:$0x1] %v213
      %v215 = vld [vmem:[%s152 + $0x2c] sm:$0x1]
      %v216 = vsel %vm205, 0, %v215
      %217 = vst [vmem:[%s152 + $0x2c] sm:$0x1] %v216
      %v218 = vld [vmem:[%s152 + $0x38] sm:$0x1]
      %v219 = vsel %vm205, 0, %v218
      %220 = vst [vmem:[%s152 + $0x38] sm:$0x1] %v219
      %v221 = vld [vmem:[%s152 + $0x44] sm:$0x1]
      %v222 = vsel %vm205, 0, %v221
      %223 = vst [vmem:[%s152 + $0x44] sm:$0x1] %v222
      %v224 = vld [vmem:[%s152 + $0x50] sm:$0x1]
      %v225 = vsel %vm205, 0, %v224
      %226 = vst [vmem:[%s152 + $0x50] sm:$0x1] %v225
      %v227 = vld [vmem:[%s152 + $0x5c] sm:$0x1]
      %v228 = vsel %vm205, 0, %v227
      %229 = vst [vmem:[%s152 + $0x5c] sm:$0x1] %v228
      %v230 = vld [vmem:[%s152 + $0x68] sm:$0x1]
      %v231 = vsel %vm205, 0, %v230
      %232 = vst [vmem:[%s152 + $0x68] sm:$0x1] %v231
      %v233 = vld [vmem:[%s152 + $0x74] sm:$0x1]
      %v234 = vsel %vm205, 0, %v233
      %235 = vst [vmem:[%s152 + $0x74] sm:$0x1] %v234
      %v236 = vld [vmem:[%s152 + $0x80] sm:$0x1]
      %v237 = vsel %vm205, 0, %v236
      %238 = vst [vmem:[%s152 + $0x80] sm:$0x1] %v237
      %v239 = vld [vmem:[%s152 + $0x8c] sm:$0x1]
      %v240 = vsel %vm205, 0, %v239
      %241 = vst [vmem:[%s152 + $0x8c] sm:$0x1] %v240
      %v242 = vld [vmem:[%s152 + $0x98] sm:$0x1]
      %v243 = vsel %vm205, 0, %v242
      %244 = vst [vmem:[%s152 + $0x98] sm:$0x1] %v243
      %v245 = vld [vmem:[%s152 + $0xa4] sm:$0x1]
      %v246 = vsel %vm205, 0, %v245
      %247 = vst [vmem:[%s152 + $0xa4] sm:$0x1] %v246
      %v248 = vld [vmem:[%s152 + $0xb0] sm:$0x1]
      %v249 = vsel %vm205, 0, %v248
      %250 = vst [vmem:[%s152 + $0xb0] sm:$0x1] %v249
      %v251 = vld [vmem:[%s152 + $0xbc] sm:$0x1]
      %v252 = vsel %vm205, 0, %v251
      %253 = vst [vmem:[%s152 + $0xbc] sm:$0x1] %v252
      %v254 = vld [vmem:[%s138] sm:$0xf]
      %v255 = vld [vmem:[%s138 + $0x4] sm:$0xf]
      %v256 = vld [vmem:[%s138 + $0x8] sm:$0xf]
      %v257 = vld [vmem:[%s138 + $0xc] sm:$0xf]
      %v258 = vld [vmem:[%s138 + $0x10] sm:$0xf]
      %v259 = vld [vmem:[%s138 + $0x14] sm:$0xf]
      %v260 = vld [vmem:[%s138 + $0x18] sm:$0xf]
      %v261 = vld [vmem:[%s138 + $0x1c] sm:$0xf]
      %v262 = vld [vmem:[%s138 + $0x20] sm:$0xf]
      %v263 = vld [vmem:[%s138 + $0x24] sm:$0xf]
      %v264 = vld [vmem:[%s138 + $0x28] sm:$0xf]
      %v265 = vld [vmem:[%s138 + $0x2c] sm:$0xf]
      %v266 = vld [vmem:[%s138 + $0x30] sm:$0xf]
      %v267 = vld [vmem:[%s138 + $0x34] sm:$0xf]
      %v268 = vld [vmem:[%s138 + $0x38] sm:$0xf]
      %v269 = vld [vmem:[%s138 + $0x3c] sm:$0xf]
      %v270 = vld [vmem:[%s138 + $0x40] sm:$0xf]
      %v271 = vld [vmem:[%s138 + $0x44] sm:$0xf]
      %v272 = vld [vmem:[%s138 + $0x48] sm:$0xf]
      %v273 = vld [vmem:[%s138 + $0x4c] sm:$0xf]
      %v274 = vld [vmem:[%s138 + $0x50] sm:$0xf]
      %v275 = vld [vmem:[%s138 + $0x54] sm:$0xf]
      %v276 = vld [vmem:[%s138 + $0x58] sm:$0xf]
      %v277 = vld [vmem:[%s138 + $0x5c] sm:$0xf]
      %v278 = vld [vmem:[%s138 + $0x60] sm:$0xf]
      %v279 = vld [vmem:[%s138 + $0x64] sm:$0xf]
      %v280 = vld [vmem:[%s138 + $0x68] sm:$0xf]
      %v281 = vld [vmem:[%s138 + $0x6c] sm:$0xf]
      %v282 = vld [vmem:[%s138 + $0x70] sm:$0xf]
      %v283 = vld [vmem:[%s138 + $0x74] sm:$0xf]
      %v284 = vld [vmem:[%s138 + $0x78] sm:$0xf]
      %v285 = vld [vmem:[%s138 + $0x7c] sm:$0xf]
      %vm286 = vsmask.f32 4368
      %vm287 = vmor %vm154, %vm286
      %v289 = vshrl.u32 %v254, 16
      %v291 = vrot.slane %v289, 7
      %v292 = vshll.u32 %v254, 16
      %v294 = vor.u32 %v291, %v292
      %v295 = vrot.slane %v291, 4
      %v297 = vshrl.u32 %v255, 16
      %v299 = vrot.slane %v297, 7
      %v300 = vshll.u32 %v255, 16
      %v302 = vor.u32 %v299, %v300
      %v303 = vsel %vm287, %v295, %v302
      %v304 = vrot.slane %v299, 4
      %v306 = vshrl.u32 %v256, 16
      %v308 = vrot.slane %v306, 7
      %v309 = vshll.u32 %v256, 16
      %v311 = vor.u32 %v308, %v309
      %v312 = vrot.slane %v308, 4
      %v314 = vshrl.u32 %v257, 16
      %v316 = vrot.slane %v314, 7
      %v317 = vshll.u32 %v257, 16
      %v319 = vor.u32 %v316, %v317
      %v320 = vsel %vm287, %v312, %v319
      %v321 = vrot.slane %v316, 4
      %v323 = vshrl.u32 %v258, 16
      %v325 = vrot.slane %v323, 7
      %v326 = vshll.u32 %v258, 16
      %v328 = vor.u32 %v325, %v326
      %v329 = vrot.slane %v325, 4
      %v331 = vshrl.u32 %v259, 16
      %v333 = vrot.slane %v331, 7
      %v334 = vshll.u32 %v259, 16
      %v336 = vor.u32 %v333, %v334
      %v337 = vsel %vm287, %v329, %v336
      %v338 = vrot.slane %v333, 4
      %v340 = vshrl.u32 %v260, 16
      %v342 = vrot.slane %v340, 7
      %v343 = vshll.u32 %v260, 16
      %v345 = vor.u32 %v342, %v343
      %v346 = vrot.slane %v342, 4
      %v348 = vshrl.u32 %v261, 16
      %v350 = vrot.slane %v348, 7
      %v351 = vshll.u32 %v261, 16
      %v353 = vor.u32 %v350, %v351
      %v354 = vsel %vm287, %v346, %v353
      %v355 = vrot.slane %v350, 4
      %v357 = vshrl.u32 %v262, 16
      %v359 = vrot.slane %v357, 7
      %v360 = vshll.u32 %v262, 16
      %v362 = vor.u32 %v359, %v360
      %v363 = vrot.slane %v359, 4
      %v365 = vshrl.u32 %v263, 16
      %v367 = vrot.slane %v365, 7
      %v368 = vshll.u32 %v263, 16
      %v370 = vor.u32 %v367, %v368
      %v371 = vsel %vm287, %v363, %v370
      %v372 = vrot.slane %v367, 4
      %v374 = vshrl.u32 %v264, 16
      %v376 = vrot.slane %v374, 7
      %v377 = vshll.u32 %v264, 16
      %v379 = vor.u32 %v376, %v377
      %v380 = vrot.slane %v376, 4
      %v382 = vshrl.u32 %v265, 16
      %v384 = vrot.slane %v382, 7
      %v385 = vshll.u32 %v265, 16
      %v387 = vor.u32 %v384, %v385
      %v388 = vsel %vm287, %v380, %v387
      %v389 = vrot.slane %v384, 4
      %v391 = vshrl.u32 %v266, 16
      %v393 = vrot.slane %v391, 7
      %v394 = vshll.u32 %v266, 16
      %v396 = vor.u32 %v393, %v394
      %v397 = vrot.slane %v393, 4
      %v399 = vshrl.u32 %v267, 16
      %v401 = vrot.slane %v399, 7
      %v402 = vshll.u32 %v267, 16
      %v404 = vor.u32 %v401, %v402
      %v405 = vsel %vm287, %v397, %v404
      %v406 = vrot.slane %v401, 4
      %v408 = vshrl.u32 %v268, 16
      %v410 = vrot.slane %v408, 7
      %v411 = vshll.u32 %v268, 16
      %v413 = vor.u32 %v410, %v411
      %v414 = vrot.slane %v410, 4
      %v416 = vshrl.u32 %v269, 16
      %v418 = vrot.slane %v416, 7
      %v419 = vshll.u32 %v269, 16
      %v421 = vor.u32 %v418, %v419
      %v422 = vsel %vm287, %v414, %v421
      %v423 = vrot.slane %v418, 4
      %v425 = vshrl.u32 %v270, 16
      %v427 = vrot.slane %v425, 7
      %v428 = vshll.u32 %v270, 16
      %v430 = vor.u32 %v427, %v428
      %v431 = vrot.slane %v427, 4
      %v433 = vshrl.u32 %v271, 16
      %v435 = vrot.slane %v433, 7
      %v436 = vshll.u32 %v271, 16
      %v438 = vor.u32 %v435, %v436
      %v439 = vsel %vm287, %v431, %v438
      %v440 = vrot.slane %v435, 4
      %v442 = vshrl.u32 %v272, 16
      %v444 = vrot.slane %v442, 7
      %v445 = vshll.u32 %v272, 16
      %v447 = vor.u32 %v444, %v445
      %v448 = vrot.slane %v444, 4
      %v450 = vshrl.u32 %v273, 16
      %v452 = vrot.slane %v450, 7
      %v453 = vshll.u32 %v273, 16
      %v455 = vor.u32 %v452, %v453
      %v456 = vsel %vm287, %v448, %v455
      %v457 = vrot.slane %v452, 4
      %v459 = vshrl.u32 %v274, 16
      %v461 = vrot.slane %v459, 7
      %v462 = vshll.u32 %v274, 16
      %v464 = vor.u32 %v461, %v462
      %v465 = vrot.slane %v461, 4
      %v467 = vshrl.u32 %v275, 16
      %v469 = vrot.slane %v467, 7
      %v470 = vshll.u32 %v275, 16
      %v472 = vor.u32 %v469, %v470
      %v473 = vsel %vm287, %v465, %v472
      %v474 = vrot.slane %v469, 4
      %v476 = vshrl.u32 %v276, 16
      %v478 = vrot.slane %v476, 7
      %v479 = vshll.u32 %v276, 16
      %v481 = vor.u32 %v478, %v479
      %v482 = vrot.slane %v478, 4
      %v484 = vshrl.u32 %v277, 16
      %v486 = vrot.slane %v484, 7
      %v487 = vshll.u32 %v277, 16
      %v489 = vor.u32 %v486, %v487
      %v490 = vsel %vm287, %v482, %v489
      %v491 = vrot.slane %v486, 4
      %v493 = vshrl.u32 %v278, 16
      %v495 = vrot.slane %v493, 7
      %v496 = vshll.u32 %v278, 16
      %v498 = vor.u32 %v495, %v496
      %v499 = vrot.slane %v495, 4
      %v501 = vshrl.u32 %v279, 16
      %v503 = vrot.slane %v501, 7
      %v504 = vshll.u32 %v279, 16
      %v506 = vor.u32 %v503, %v504
      %v507 = vsel %vm287, %v499, %v506
      %v508 = vrot.slane %v503, 4
      %v510 = vshrl.u32 %v280, 16
      %v512 = vrot.slane %v510, 7
      %v513 = vshll.u32 %v280, 16
      %v515 = vor.u32 %v512, %v513
      %v516 = vrot.slane %v512, 4
      %v518 = vshrl.u32 %v281, 16
      %v520 = vrot.slane %v518, 7
      %v521 = vshll.u32 %v281, 16
      %v523 = vor.u32 %v520, %v521
      %v524 = vsel %vm287, %v516, %v523
      %v525 = vrot.slane %v520, 4
      %v527 = vshrl.u32 %v282, 16
      %v529 = vrot.slane %v527, 7
      %v530 = vshll.u32 %v282, 16
      %v532 = vor.u32 %v529, %v530
      %v533 = vrot.slane %v529, 4
      %v535 = vshrl.u32 %v283, 16
      %v537 = vrot.slane %v535, 7
      %v538 = vshll.u32 %v283, 16
      %v540 = vor.u32 %v537, %v538
      %v541 = vsel %vm287, %v533, %v540
      %v542 = vrot.slane %v537, 4
      %v544 = vshrl.u32 %v284, 16
      %v546 = vrot.slane %v544, 7
      %v547 = vshll.u32 %v284, 16
      %v549 = vor.u32 %v546, %v547
      %v550 = vrot.slane %v546, 4
      %v552 = vshrl.u32 %v285, 16
      %v554 = vrot.slane %v552, 7
      %v555 = vshll.u32 %v285, 16
      %v557 = vor.u32 %v554, %v555
      %v558 = vsel %vm287, %v550, %v557
      %v559 = vrot.slane %v554, 4
      %vm608 = vcmask 1043456
      %vm609 = vmand %vm608, %vm204
      %v610 = vld [vmem:[%s152] sm:$0xf]
      %v611 = vsel %vm609, %v294, %v610
      %612 = vst [vmem:[%s152] sm:$0xf] %v611
      %613 = vst [vmem:[%s152 + $0x4] sm:$0xf] %v303
      %v614 = vld [vmem:[%s152 + $0x8] sm:$0x1]
      %v615 = vsel %vm155, %v304, %v614
      %616 = vst [vmem:[%s152 + $0x8] sm:$0x1] %v615
      %v617 = vld [vmem:[%s152 + $0xc] sm:$0xf]
      %v618 = vsel %vm609, %v311, %v617
      %619 = vst [vmem:[%s152 + $0xc] sm:$0xf] %v618
      %620 = vst [vmem:[%s152 + $0x10] sm:$0xf] %v320
      %v621 = vld [vmem:[%s152 + $0x14] sm:$0x1]
      %v622 = vsel %vm155, %v321, %v621
      %623 = vst [vmem:[%s152 + $0x14] sm:$0x1] %v622
      %v624 = vld [vmem:[%s152 + $0x18] sm:$0xf]
      %v625 = vsel %vm609, %v328, %v624
      %626 = vst [vmem:[%s152 + $0x18] sm:$0xf] %v625
      %627 = vst [vmem:[%s152 + $0x1c] sm:$0xf] %v337
      %v628 = vld [vmem:[%s152 + $0x20] sm:$0x1]
      %v629 = vsel %vm155, %v338, %v628
      %630 = vst [vmem:[%s152 + $0x20] sm:$0x1] %v629
      %v631 = vld [vmem:[%s152 + $0x24] sm:$0xf]
      %v632 = vsel %vm609, %v345, %v631
      %633 = vst [vmem:[%s152 + $0x24] sm:$0xf] %v632
      %634 = vst [vmem:[%s152 + $0x28] sm:$0xf] %v354
      %v635 = vld [vmem:[%s152 + $0x2c] sm:$0x1]
      %v636 = vsel %vm155, %v355, %v635
      %637 = vst [vmem:[%s152 + $0x2c] sm:$0x1] %v636
      %v638 = vld [vmem:[%s152 + $0x30] sm:$0xf]
      %v639 = vsel %vm609, %v362, %v638
      %640 = vst [vmem:[%s152 + $0x30] sm:$0xf] %v639
      %641 = vst [vmem:[%s152 + $0x34] sm:$0xf] %v371
      %v642 = vld [vmem:[%s152 + $0x38] sm:$0x1]
      %v643 = vsel %vm155, %v372, %v642
      %644 = vst [vmem:[%s152 + $0x38] sm:$0x1] %v643
      %v645 = vld [vmem:[%s152 + $0x3c] sm:$0xf]
      %v646 = vsel %vm609, %v379, %v645
      %647 = vst [vmem:[%s152 + $0x3c] sm:$0xf] %v646
      %648 = vst [vmem:[%s152 + $0x40] sm:$0xf] %v388
      %v649 = vld [vmem:[%s152 + $0x44] sm:$0x1]
      %v650 = vsel %vm155, %v389, %v649
      %651 = vst [vmem:[%s152 + $0x44] sm:$0x1] %v650
      %v652 = vld [vmem:[%s152 + $0x48] sm:$0xf]
      %v653 = vsel %vm609, %v396, %v652
      %654 = vst [vmem:[%s152 + $0x48] sm:$0xf] %v653
      %655 = vst [vmem:[%s152 + $0x4c] sm:$0xf] %v405
      %v656 = vld [vmem:[%s152 + $0x50] sm:$0x1]
      %v657 = vsel %vm155, %v406, %v656
      %658 = vst [vmem:[%s152 + $0x50] sm:$0x1] %v657
      %v659 = vld [vmem:[%s152 + $0x54] sm:$0xf]
      %v660 = vsel %vm609, %v413, %v659
      %661 = vst [vmem:[%s152 + $0x54] sm:$0xf] %v660
      %662 = vst [vmem:[%s152 + $0x58] sm:$0xf] %v422
      %v663 = vld [vmem:[%s152 + $0x5c] sm:$0x1]
      %v664 = vsel %vm155, %v423, %v663
      %665 = vst [vmem:[%s152 + $0x5c] sm:$0x1] %v664
      %v666 = vld [vmem:[%s152 + $0x60] sm:$0xf]
      %v667 = vsel %vm609, %v430, %v666
      %668 = vst [vmem:[%s152 + $0x60] sm:$0xf] %v667
      %669 = vst [vmem:[%s152 + $0x64] sm:$0xf] %v439
      %v670 = vld [vmem:[%s152 + $0x68] sm:$0x1]
      %v671 = vsel %vm155, %v440, %v670
      %672 = vst [vmem:[%s152 + $0x68] sm:$0x1] %v671
      %v673 = vld [vmem:[%s152 + $0x6c] sm:$0xf]
      %v674 = vsel %vm609, %v447, %v673
      %675 = vst [vmem:[%s152 + $0x6c] sm:$0xf] %v674
      %676 = vst [vmem:[%s152 + $0x70] sm:$0xf] %v456
      %v677 = vld [vmem:[%s152 + $0x74] sm:$0x1]
      %v678 = vsel %vm155, %v457, %v677
      %679 = vst [vmem:[%s152 + $0x74] sm:$0x1] %v678
      %v680 = vld [vmem:[%s152 + $0x78] sm:$0xf]
      %v681 = vsel %vm609, %v464, %v680
      %682 = vst [vmem:[%s152 + $0x78] sm:$0xf] %v681
      %683 = vst [vmem:[%s152 + $0x7c] sm:$0xf] %v473
      %v684 = vld [vmem:[%s152 + $0x80] sm:$0x1]
      %v685 = vsel %vm155, %v474, %v684
      %686 = vst [vmem:[%s152 + $0x80] sm:$0x1] %v685
      %v687 = vld [vmem:[%s152 + $0x84] sm:$0xf]
      %v688 = vsel %vm609, %v481, %v687
      %689 = vst [vmem:[%s152 + $0x84] sm:$0xf] %v688
      %690 = vst [vmem:[%s152 + $0x88] sm:$0xf] %v490
      %v691 = vld [vmem:[%s152 + $0x8c] sm:$0x1]
      %v692 = vsel %vm155, %v491, %v691
      %693 = vst [vmem:[%s152 + $0x8c] sm:$0x1] %v692
      %v694 = vld [vmem:[%s152 + $0x90] sm:$0xf]
      %v695 = vsel %vm609, %v498, %v694
      %696 = vst [vmem:[%s152 + $0x90] sm:$0xf] %v695
      %697 = vst [vmem:[%s152 + $0x94] sm:$0xf] %v507
      %v698 = vld [vmem:[%s152 + $0x98] sm:$0x1]
      %v699 = vsel %vm155, %v508, %v698
      %700 = vst [vmem:[%s152 + $0x98] sm:$0x1] %v699
      %v701 = vld [vmem:[%s152 + $0x9c] sm:$0xf]
      %v702 = vsel %vm609, %v515, %v701
      %703 = vst [vmem:[%s152 + $0x9c] sm:$0xf] %v702
      %704 = vst [vmem:[%s152 + $0xa0] sm:$0xf] %v524
      %v705 = vld [vmem:[%s152 + $0xa4] sm:$0x1]
      %v706 = vsel %vm155, %v525, %v705
      %707 = vst [vmem:[%s152 + $0xa4] sm:$0x1] %v706
      %v708 = vld [vmem:[%s152 + $0xa8] sm:$0xf]
      %v709 = vsel %vm609, %v532, %v708
      %710 = vst [vmem:[%s152 + $0xa8] sm:$0xf] %v709
      %711 = vst [vmem:[%s152 + $0xac] sm:$0xf] %v541
      %v712 = vld [vmem:[%s152 + $0xb0] sm:$0x1]
      %v713 = vsel %vm155, %v542, %v712
      %714 = vst [vmem:[%s152 + $0xb0] sm:$0x1] %v713
      %v715 = vld [vmem:[%s152 + $0xb4] sm:$0xf]
      %v716 = vsel %vm609, %v549, %v715
      %717 = vst [vmem:[%s152 + $0xb4] sm:$0xf] %v716
      %718 = vst [vmem:[%s152 + $0xb8] sm:$0xf] %v558
      %v719 = vld [vmem:[%s152 + $0xbc] sm:$0x1]
      %v720 = vsel %vm155, %v559, %v719
      %721 = vst [vmem:[%s152 + $0xbc] sm:$0x1] %v720
      %v722 = vld [vmem:[#allocation2] sm:$0xf]
      %v723 = vld [vmem:[#allocation2 + $0x4] sm:$0xf]
      %v724 = vld [vmem:[#allocation2 + $0xc] sm:$0xf]
      %v725 = vld [vmem:[#allocation2 + $0x10] sm:$0xf]
      %v726 = vld [vmem:[#allocation2 + $0x18] sm:$0xf]
      %v727 = vld [vmem:[#allocation2 + $0x1c] sm:$0xf]
      %v728 = vld [vmem:[#allocation2 + $0x24] sm:$0xf]
      %v729 = vld [vmem:[#allocation2 + $0x28] sm:$0xf]
      %v730 = vld [vmem:[#allocation2 + $0x30] sm:$0xf]
      %v731 = vld [vmem:[#allocation2 + $0x34] sm:$0xf]
      %v732 = vld [vmem:[#allocation2 + $0x3c] sm:$0xf]
      %v733 = vld [vmem:[#allocation2 + $0x40] sm:$0xf]
      %v734 = vld [vmem:[#allocation2 + $0x48] sm:$0xf]
      %v735 = vld [vmem:[#allocation2 + $0x4c] sm:$0xf]
      %v736 = vld [vmem:[#allocation2 + $0x54] sm:$0xf]
      %v737 = vld [vmem:[#allocation2 + $0x58] sm:$0xf]
      %v738 = vld [vmem:[#allocation2 + $0x60] sm:$0xf]
      %v739 = vld [vmem:[#allocation2 + $0x64] sm:$0xf]
      %v740 = vld [vmem:[#allocation2 + $0x6c] sm:$0xf]
      %v741 = vld [vmem:[#allocation2 + $0x70] sm:$0xf]
      %v742 = vld [vmem:[#allocation2 + $0x78] sm:$0xf]
      %v743 = vld [vmem:[#allocation2 + $0x7c] sm:$0xf]
      %v744 = vld [vmem:[#allocation2 + $0x84] sm:$0xf]
      %v745 = vld [vmem:[#allocation2 + $0x88] sm:$0xf]
      %v746 = vld [vmem:[#allocation2 + $0x90] sm:$0xf]
      %v747 = vld [vmem:[#allocation2 + $0x94] sm:$0xf]
      %v748 = vld [vmem:[#allocation2 + $0x9c] sm:$0xf]
      %v749 = vld [vmem:[#allocation2 + $0xa0] sm:$0xf]
      %v750 = vld [vmem:[#allocation2 + $0xa8] sm:$0xf]
      %v751 = vld [vmem:[#allocation2 + $0xac] sm:$0xf]
      %v752 = vld [vmem:[#allocation2 + $0xb4] sm:$0xf]
      %v753 = vld [vmem:[#allocation2 + $0xb8] sm:$0xf]
      %v754 = vld [vmem:[%s1] sm:$0xf]
      %v755 = vld [vmem:[%s1 + $0x4] sm:$0xf]
      %v756 = vld [vmem:[%s1 + $0x8] sm:$0xf]
      %v757 = vld [vmem:[%s1 + $0xc] sm:$0xf]
      %v758 = vld [vmem:[%s1 + $0x10] sm:$0xf]
      %v759 = vld [vmem:[%s1 + $0x14] sm:$0xf]
      %v760 = vld [vmem:[%s1 + $0x18] sm:$0xf]
      %v761 = vld [vmem:[%s1 + $0x1c] sm:$0xf]
      %v762 = vld [vmem:[%s1 + $0x20] sm:$0xf]
      %v763 = vld [vmem:[%s1 + $0x24] sm:$0xf]
      %v764 = vld [vmem:[%s1 + $0x28] sm:$0xf]
      %v765 = vld [vmem:[%s1 + $0x2c] sm:$0xf]
      %v766 = vld [vmem:[%s1 + $0x30] sm:$0xf]
      %v767 = vld [vmem:[%s1 + $0x34] sm:$0xf]
      %v768 = vld [vmem:[%s1 + $0x38] sm:$0xf]
      %v769 = vld [vmem:[%s1 + $0x3c] sm:$0xf]
      %v802 = vunpack.c.l.b16 %v722
      %v803 = vunpack.c.l.b16 %v723
      %v804 = vunpack.c.l.b16 %v724
      %v805 = vunpack.c.l.b16 %v725
      %v806 = vunpack.c.l.b16 %v726
      %v807 = vunpack.c.l.b16 %v727
      %v808 = vunpack.c.l.b16 %v728
      %v809 = vunpack.c.l.b16 %v729
      %v810 = vunpack.c.l.b16 %v730
      %v811 = vunpack.c.l.b16 %v731
      %v812 = vunpack.c.l.b16 %v732
      %v813 = vunpack.c.l.b16 %v733
      %v814 = vunpack.c.l.b16 %v734
      %v815 = vunpack.c.l.b16 %v735
      %v816 = vunpack.c.l.b16 %v736
      %v817 = vunpack.c.l.b16 %v737
      %v818 = vunpack.c.l.b16 %v738
      %v819 = vunpack.c.l.b16 %v739
      %v820 = vunpack.c.l.b16 %v740
      %v821 = vunpack.c.l.b16 %v741
      %v822 = vunpack.c.l.b16 %v742
      %v823 = vunpack.c.l.b16 %v743
      %v824 = vunpack.c.l.b16 %v744
      %v825 = vunpack.c.l.b16 %v745
      %v826 = vunpack.c.l.b16 %v746
      %v827 = vunpack.c.l.b16 %v747
      %v828 = vunpack.c.l.b16 %v748
      %v829 = vunpack.c.l.b16 %v749
      %v830 = vunpack.c.l.b16 %v750
      %v831 = vunpack.c.l.b16 %v751
      %v832 = vunpack.c.l.b16 %v752
      %v833 = vunpack.c.l.b16 %v753
      %v834 = vpack.c.b16 %v803, %v802
      %v835 = vpack.c.b16 %v805, %v804
      %v836 = vpack.c.b16 %v807, %v806
      %v837 = vpack.c.b16 %v809, %v808
      %v838 = vpack.c.b16 %v811, %v810
      %v839 = vpack.c.b16 %v813, %v812
      %v840 = vpack.c.b16 %v815, %v814
      %v841 = vpack.c.b16 %v817, %v816
      %v842 = vpack.c.b16 %v819, %v818
      %v843 = vpack.c.b16 %v821, %v820
      %v844 = vpack.c.b16 %v823, %v822
      %v845 = vpack.c.b16 %v825, %v824
      %v846 = vpack.c.b16 %v827, %v826
      %v847 = vpack.c.b16 %v829, %v828
      %v848 = vpack.c.b16 %v831, %v830
      %v849 = vpack.c.b16 %v833, %v832
      %v882 = vunpack.c.l.b16 %v754
      %v883 = vunpack.c.l.b16 %v755
      %v884 = vunpack.c.l.b16 %v756
      %v885 = vunpack.c.l.b16 %v757
      %v886 = vunpack.c.l.b16 %v758
      %v887 = vunpack.c.l.b16 %v759
      %v888 = vunpack.c.l.b16 %v760
      %v889 = vunpack.c.l.b16 %v761
      %v890 = vunpack.c.l.b16 %v762
      %v891 = vunpack.c.l.b16 %v763
      %v892 = vunpack.c.l.b16 %v764
      %v893 = vunpack.c.l.b16 %v765
      %v894 = vunpack.c.l.b16 %v766
      %v895 = vunpack.c.l.b16 %v767
      %v896 = vunpack.c.l.b16 %v768
      %v897 = vunpack.c.l.b16 %v769
      %v898 = vpack.c.b16 %v883, %v882
      %v899 = vpack.c.b16 %v885, %v884
      %v900 = vpack.c.b16 %v887, %v886
      %v901 = vpack.c.b16 %v889, %v888
      %v902 = vpack.c.b16 %v891, %v890
      %v903 = vpack.c.b16 %v893, %v892
      %v904 = vpack.c.b16 %v895, %v894
      %v905 = vpack.c.b16 %v897, %v896
      %914 = vmatprep.subr.bf16.mxu0 0
      %915 = vmatpush1.bf16.msra.mxu0 %v898
      %916 = vmatprep.subr.bf16.mxu0 0
      %917 = vmatpush1.bf16.msra.mxu0 %v899
      %918 = vmatprep.subr.bf16.mxu0 0
      %919 = vmatpush1.bf16.msra.mxu0 %v900
      %920 = vmatprep.subr.bf16.mxu0 0
      %921 = vmatpush1.bf16.msra.mxu0 %v901
      %922 = vmatprep.subr.bf16.mxu0 0
      %923 = vmatpush1.bf16.msra.mxu0 %v902
      %924 = vmatprep.subr.bf16.mxu0 0
      %925 = vmatpush1.bf16.msra.mxu0 %v903
      %926 = vmatprep.subr.bf16.mxu0 0
      %927 = vmatpush1.bf16.msra.mxu0 %v904
      %928 = vmatprep.subr.bf16.mxu0 0
      %929 = vmatpush1.bf16.msra.mxu0 %v905
      %930 = vmatprep.subr.bf16.mxu0 0
      %931 = vmatpush1.bf16.msra.mxu0 0
      %932 = vmatprep.subr.bf16.mxu0 0
      %933 = vmatpush1.bf16.msra.mxu0 0
      %934 = vmatprep.subr.bf16.mxu0 0
      %935 = vmatpush1.bf16.msra.mxu0 0
      %936 = vmatprep.subr.bf16.mxu0 0
      %937 = vmatpush1.bf16.msra.mxu0 0
      %938 = vmatprep.subr.bf16.mxu0 0
      %939 = vmatpush1.bf16.msra.mxu0 0
      %940 = vmatprep.subr.bf16.mxu0 0
      %941 = vmatpush1.bf16.msra.mxu0 0
      %942 = vmatprep.subr.bf16.mxu0 0
      %943 = vmatpush1.bf16.msra.mxu0 0
      %944 = vmatprep.subr.bf16.mxu0 0
      %945 = vmatpush1.bf16.msra.mxu0 0
      %946 = vmatprep.mubr.bf16.mxu0 0
      %947 = vmatmul.mubr.bf16.gmra.mrb[0].mxu0 %v834
      %v948 = vpop.f32.mrb[0].mxu0
      %v949 = vadd.f32 0.0, %v948
      %v950 = vpop.f32.mrb[0].mxu0
      %v951 = vpop.f32.mrb[0].mxu0
      %v952 = vadd.f32 0.0, %v951
      %v953 = vpop.f32.mrb[0].mxu0
      %954 = vmatprep.mubr.bf16.mxu0 0
      %955 = vmatmul.mubr.bf16.gmra.mrb[0].mxu0 %v835
      %v956 = vpop.f32.mrb[0].mxu0
      %v957 = vadd.f32 0.0, %v956
      %v958 = vpop.f32.mrb[0].mxu0
      %v959 = vpop.f32.mrb[0].mxu0
      %v960 = vadd.f32 0.0, %v959
      %v961 = vpop.f32.mrb[0].mxu0
      %962 = vmatprep.mubr.bf16.mxu0 0
      %963 = vmatmul.mubr.bf16.gmra.mrb[0].mxu0 %v836
      %v964 = vpop.f32.mrb[0].mxu0
      %v965 = vadd.f32 0.0, %v964
      %v966 = vpop.f32.mrb[0].mxu0
      %v967 = vpop.f32.mrb[0].mxu0
      %v968 = vadd.f32 0.0, %v967
      %v969 = vpop.f32.mrb[0].mxu0
      %970 = vmatprep.mubr.bf16.mxu0 0
      %971 = vmatmul.mubr.bf16.gmra.mrb[0].mxu0 %v837
      %v972 = vpop.f32.mrb[0].mxu0
      %v973 = vadd.f32 0.0, %v972
      %v974 = vpop.f32.mrb[0].mxu0
      %v975 = vpop.f32.mrb[0].mxu0
      %v976 = vadd.f32 0.0, %v975
      %v977 = vpop.f32.mrb[0].mxu0
      %978 = vmatprep.mubr.bf16.mxu0 0
      %979 = vmatmul.mubr.bf16.gmra.mrb[0].mxu0 %v838
      %v980 = vpop.f32.mrb[0].mxu0
      %v981 = vadd.f32 0.0, %v980
      %v982 = vpop.f32.mrb[0].mxu0
      %v983 = vpop.f32.mrb[0].mxu0
      %v984 = vadd.f32 0.0, %v983
      %v985 = vpop.f32.mrb[0].mxu0
      %986 = vmatprep.mubr.bf16.mxu0 0
      %987 = vmatmul.mubr.bf16.gmra.mrb[0].mxu0 %v839
      %v988 = vpop.f32.mrb[0].mxu0
      %v989 = vadd.f32 0.0, %v988
      %v990 = vpop.f32.mrb[0].mxu0
      %v991 = vpop.f32.mrb[0].mxu0
      %v992 = vadd.f32 0.0, %v991
      %v993 = vpop.f32.mrb[0].mxu0
      %994 = vmatprep.mubr.bf16.mxu0 0
      %995 = vmatmul.mubr.bf16.gmra.mrb[0].mxu0 %v840
      %v996 = vpop.f32.mrb[0].mxu0
      %v997 = vadd.f32 0.0, %v996
      %v998 = vpop.f32.mrb[0].mxu0
      %v999 = vpop.f32.mrb[0].mxu0
      %v1000 = vadd.f32 0.0, %v999
      %v1001 = vpop.f32.mrb[0].mxu0
      %1002 = vmatprep.mubr.bf16.mxu0 0
      %1003 = vmatmul.mubr.bf16.gmra.mrb[0].mxu0 %v841
      %v1004 = vpop.f32.mrb[0].mxu0
      %v1005 = vadd.f32 0.0, %v1004
      %v1006 = vpop.f32.mrb[0].mxu0
      %v1007 = vpop.f32.mrb[0].mxu0
      %v1008 = vadd.f32 0.0, %v1007
      %v1009 = vpop.f32.mrb[0].mxu0
      %1010 = vmatprep.mubr.bf16.mxu0 0
      %1011 = vmatmul.mubr.bf16.gmra.mrb[0].mxu0 %v842
      %v1012 = vpop.f32.mrb[0].mxu0
      %v1013 = vadd.f32 0.0, %v1012
      %v1014 = vpop.f32.mrb[0].mxu0
      %v1015 = vpop.f32.mrb[0].mxu0
      %v1016 = vadd.f32 0.0, %v1015
      %v1017 = vpop.f32.mrb[0].mxu0
      %1018 = vmatprep.mubr.bf16.mxu0 0
      %1019 = vmatmul.mubr.bf16.gmra.mrb[0].mxu0 %v843
      %v1020 = vpop.f32.mrb[0].mxu0
      %v1021 = vadd.f32 0.0, %v1020
      %v1022 = vpop.f32.mrb[0].mxu0
      %v1023 = vpop.f32.mrb[0].mxu0
      %v1024 = vadd.f32 0.0, %v1023
      %v1025 = vpop.f32.mrb[0].mxu0
      %1026 = vmatprep.mubr.bf16.mxu0 0
      %1027 = vmatmul.mubr.bf16.gmra.mrb[0].mxu0 %v844
      %v1028 = vpop.f32.mrb[0].mxu0
      %v1029 = vadd.f32 0.0, %v1028
      %v1030 = vpop.f32.mrb[0].mxu0
      %v1031 = vpop.f32.mrb[0].mxu0
      %v1032 = vadd.f32 0.0, %v1031
      %v1033 = vpop.f32.mrb[0].mxu0
      %1034 = vmatprep.mubr.bf16.mxu0 0
      %1035 = vmatmul.mubr.bf16.gmra.mrb[0].mxu0 %v845
      %v1036 = vpop.f32.mrb[0].mxu0
      %v1037 = vadd.f32 0.0, %v1036
      %v1038 = vpop.f32.mrb[0].mxu0
      %v1039 = vpop.f32.mrb[0].mxu0
      %v1040 = vadd.f32 0.0, %v1039
      %v1041 = vpop.f32.mrb[0].mxu0
      %1042 = vmatprep.mubr.bf16.mxu0 0
      %1043 = vmatmul.mubr.bf16.gmra.mrb[0].mxu0 %v846
      %v1044 = vpop.f32.mrb[0].mxu0
      %v1045 = vadd.f32 0.0, %v1044
      %v1046 = vpop.f32.mrb[0].mxu0
      %v1047 = vpop.f32.mrb[0].mxu0
      %v1048 = vadd.f32 0.0, %v1047
      %v1049 = vpop.f32.mrb[0].mxu0
      %1050 = vmatprep.mubr.bf16.mxu0 0
      %1051 = vmatmul.mubr.bf16.gmra.mrb[0].mxu0 %v847
      %v1052 = vpop.f32.mrb[0].mxu0
      %v1053 = vadd.f32 0.0, %v1052
      %v1054 = vpop.f32.mrb[0].mxu0
      %v1055 = vpop.f32.mrb[0].mxu0
      %v1056 = vadd.f32 0.0, %v1055
      %v1057 = vpop.f32.mrb[0].mxu0
      %1058 = vmatprep.mubr.bf16.mxu0 0
      %1059 = vmatmul.mubr.bf16.gmra.mrb[0].mxu0 %v848
      %v1060 = vpop.f32.mrb[0].mxu0
      %v1061 = vadd.f32 0.0, %v1060
      %v1062 = vpop.f32.mrb[0].mxu0
      %v1063 = vpop.f32.mrb[0].mxu0
      %v1064 = vadd.f32 0.0, %v1063
      %v1065 = vpop.f32.mrb[0].mxu0
      %1066 = vmatprep.mubr.bf16.mxu0 0
      %1067 = vmatmul.mubr.bf16.gmra.mrb[0].mxu0 %v849
      %v1068 = vpop.f32.mrb[0].mxu0
      %v1069 = vadd.f32 0.0, %v1068
      %v1070 = vpop.f32.mrb[0].mxu0
      %v1071 = vpop.f32.mrb[0].mxu0
      %v1072 = vadd.f32 0.0, %v1071
      %v1073 = vpop.f32.mrb[0].mxu0
      %1074 = vdwg.mxu0
      %1075 = vst [vmem:[#allocation3] sm:$0xff] %v949
      %1076 = vst [vmem:[#allocation3 + $0x8] sm:$0xff] %v952
      %1077 = vst [vmem:[#allocation3 + $0x10] sm:$0xff] %v957
      %1078 = vst [vmem:[#allocation3 + $0x18] sm:$0xff] %v960
      %1079 = vst [vmem:[#allocation3 + $0x20] sm:$0xff] %v965
      %1080 = vst [vmem:[#allocation3 + $0x28] sm:$0xff] %v968
      %1081 = vst [vmem:[#allocation3 + $0x30] sm:$0xff] %v973
      %1082 = vst [vmem:[#allocation3 + $0x38] sm:$0xff] %v976
      %1083 = vst [vmem:[#allocation3 + $0x40] sm:$0xff] %v981
      %1084 = vst [vmem:[#allocation3 + $0x48] sm:$0xff] %v984
      %1085 = vst [vmem:[#allocation3 + $0x50] sm:$0xff] %v989
      %1086 = vst [vmem:[#allocation3 + $0x58] sm:$0xff] %v992
      %1087 = vst [vmem:[#allocation3 + $0x60] sm:$0xff] %v997
      %1088 = vst [vmem:[#allocation3 + $0x68] sm:$0xff] %v1000
      %1089 = vst [vmem:[#allocation3 + $0x70] sm:$0xff] %v1005
      %1090 = vst [vmem:[#allocation3 + $0x78] sm:$0xff] %v1008
      %1091 = vst [vmem:[#allocation3 + $0x80] sm:$0xff] %v1013
      %1092 = vst [vmem:[#allocation3 + $0x88] sm:$0xff] %v1016
      %1093 = vst [vmem:[#allocation3 + $0x90] sm:$0xff] %v1021
      %1094 = vst [vmem:[#allocation3 + $0x98] sm:$0xff] %v1024
      %1095 = vst [vmem:[#allocation3 + $0xa0] sm:$0xff] %v1029
      %1096 = vst [vmem:[#allocation3 + $0xa8] sm:$0xff] %v1032
      %1097 = vst [vmem:[#allocation3 + $0xb0] sm:$0xff] %v1037
      %1098 = vst [vmem:[#allocation3 + $0xb8] sm:$0xff] %v1040
      %1099 = vst [vmem:[#allocation3 + $0xc0] sm:$0xff] %v1045
      %1100 = vst [vmem:[#allocation3 + $0xc8] sm:$0xff] %v1048
      %1101 = vst [vmem:[#allocation3 + $0xd0] sm:$0xff] %v1053
      %1102 = vst [vmem:[#allocation3 + $0xd8] sm:$0xff] %v1056
      %1103 = vst [vmem:[#allocation3 + $0xe0] sm:$0xff] %v1061
      %1104 = vst [vmem:[#allocation3 + $0xe8] sm:$0xff] %v1064
      %1105 = vst [vmem:[#allocation3 + $0xf0] sm:$0xff] %v1069
      %1106 = vst [vmem:[#allocation3 + $0xf8] sm:$0xff] %v1072
      %v1107 = vld [vmem:[#allocation2] sm:$0xf]
      %v1108 = vld [vmem:[#allocation2 + $0x4] sm:$0xf]
      %v1109 = vld [vmem:[#allocation2 + $0x8] sm:$0x1]
      %v1110 = vld [vmem:[#allocation2 + $0xc] sm:$0xf]
      %v1111 = vld [vmem:[#allocation2 + $0x10] sm:$0xf]
      %v1112 = vld [vmem:[#allocation2 + $0x14] sm:$0x1]
      %v1113 = vld [vmem:[#allocation2 + $0x18] sm:$0xf]
      %v1114 = vld [vmem:[#allocation2 + $0x1c] sm:$0xf]
      %v1115 = vld [vmem:[#allocation2 + $0x20] sm:$0x1]
      %v1116 = vld [vmem:[#allocation2 + $0x24] sm:$0xf]
      %v1117 = vld [vmem:[#allocation2 + $0x28] sm:$0xf]
      %v1118 = vld [vmem:[#allocation2 + $0x2c] sm:$0x1]
      %v1119 = vld [vmem:[#allocation2 + $0x30] sm:$0xf]
      %v1120 = vld [vmem:[#allocation2 + $0x34] sm:$0xf]
      %v1121 = vld [vmem:[#allocation2 + $0x38] sm:$0x1]
      %v1122 = vld [vmem:[#allocation2 + $0x3c] sm:$0xf]
      %v1123 = vld [vmem:[#allocation2 + $0x40] sm:$0xf]
      %v1124 = vld [vmem:[#allocation2 + $0x44] sm:$0x1]
      %v1125 = vld [vmem:[#allocation2 + $0x48] sm:$0xf]
      %v1126 = vld [vmem:[#allocation2 + $0x4c] sm:$0xf]
      %v1127 = vld [vmem:[#allocation2 + $0x50] sm:$0x1]
      %v1128 = vld [vmem:[#allocation2 + $0x54] sm:$0xf]
      %v1129 = vld [vmem:[#allocation2 + $0x58] sm:$0xf]
      %v1130 = vld [vmem:[#allocation2 + $0x5c] sm:$0x1]
      %v1131 = vld [vmem:[#allocation2 + $0x60] sm:$0xf]
      %v1132 = vld [vmem:[#allocation2 + $0x64] sm:$0xf]
      %v1133 = vld [vmem:[#allocation2 + $0x68] sm:$0x1]
      %v1134 = vld [vmem:[#allocation2 + $0x6c] sm:$0xf]
      %v1135 = vld [vmem:[#allocation2 + $0x70] sm:$0xf]
      %v1136 = vld [vmem:[#allocation2 + $0x74] sm:$0x1]
      %v1137 = vld [vmem:[#allocation2 + $0x78] sm:$0xf]
      %v1138 = vld [vmem:[#allocation2 + $0x7c] sm:$0xf]
      %v1139 = vld [vmem:[#allocation2 + $0x80] sm:$0x1]
      %v1140 = vld [vmem:[#allocation2 + $0x84] sm:$0xf]
      %v1141 = vld [vmem:[#allocation2 + $0x88] sm:$0xf]
      %v1142 = vld [vmem:[#allocation2 + $0x8c] sm:$0x1]
      %v1143 = vld [vmem:[#allocation2 + $0x90] sm:$0xf]
      %v1144 = vld [vmem:[#allocation2 + $0x94] sm:$0xf]
      %v1145 = vld [vmem:[#allocation2 + $0x98] sm:$0x1]
      %v1146 = vld [vmem:[#allocation2 + $0x9c] sm:$0xf]
      %v1147 = vld [vmem:[#allocation2 + $0xa0] sm:$0xf]
      %v1148 = vld [vmem:[#allocation2 + $0xa4] sm:$0x1]
      %v1149 = vld [vmem:[#allocation2 + $0xa8] sm:$0xf]
      %v1150 = vld [vmem:[#allocation2 + $0xac] sm:$0xf]
      %v1151 = vld [vmem:[#allocation2 + $0xb0] sm:$0x1]
      %v1152 = vld [vmem:[#allocation2 + $0xb4] sm:$0xf]
      %v1153 = vld [vmem:[#allocation2 + $0xb8] sm:$0xf]
      %v1154 = vld [vmem:[#allocation2 + $0xbc] sm:$0x1]
      %vm1155 = vsmask.f32 3328
      %vm1156 = vsmask.f32 7440
      %vm1157 = vmor %vm1155, %vm1156
      %v1159 = vshrl.u32 %v1107, 16
      %v1161 = vrot.slane %v1159, 4
      %v1162 = vshll.u32 %v1107, 16
      %v1164 = vrot.slane %v1162, 5
      %v1165 = vor.u32 %v1161, %v1164
      %v1166 = vrot.slane %v1165, 4
      %v1168 = vshll.u32 %v1108, 16
      %v1170 = vrot.slane %v1168, 5
      %v1171 = vsel %vm1157, %v1166, %v1170
      %v1172 = vshrl.u32 %v1108, 16
      %v1174 = vrot.slane %v1172, 4
      %v1175 = vor.u32 %v1174, %v1170
      %v1176 = vrot.slane %v1175, 4
      %v1178 = vshll.u32 %v1109, 16
      %v1180 = vrot.slane %v1178, 5
      %v1181 = vsel %vm1157, %v1176, %v1180
      %v1183 = vshrl.u32 %v1110, 16
      %v1185 = vrot.slane %v1183, 4
      %v1186 = vshll.u32 %v1110, 16
      %v1188 = vrot.slane %v1186, 5
      %v1189 = vor.u32 %v1185, %v1188
      %v1190 = vrot.slane %v1189, 4
      %v1192 = vshll.u32 %v1111, 16
      %v1194 = vrot.slane %v1192, 5
      %v1195 = vsel %vm1157, %v1190, %v1194
      %v1196 = vshrl.u32 %v1111, 16
      %v1198 = vrot.slane %v1196, 4
      %v1199 = vor.u32 %v1198, %v1194
      %v1200 = vrot.slane %v1199, 4
      %v1202 = vshll.u32 %v1112, 16
      %v1204 = vrot.slane %v1202, 5
      %v1205 = vsel %vm1157, %v1200, %v1204
      %v1207 = vshrl.u32 %v1113, 16
      %v1209 = vrot.slane %v1207, 4
      %v1210 = vshll.u32 %v1113, 16
      %v1212 = vrot.slane %v1210, 5
      %v1213 = vor.u32 %v1209, %v1212
      %v1214 = vrot.slane %v1213, 4
      %v1216 = vshll.u32 %v1114, 16
      %v1218 = vrot.slane %v1216, 5
      %v1219 = vsel %vm1157, %v1214, %v1218
      %v1220 = vshrl.u32 %v1114, 16
      %v1222 = vrot.slane %v1220, 4
      %v1223 = vor.u32 %v1222, %v1218
      %v1224 = vrot.slane %v1223, 4
      %v1226 = vshll.u32 %v1115, 16
      %v1228 = vrot.slane %v1226, 5
      %v1229 = vsel %vm1157, %v1224, %v1228
      %v1231 = vshrl.u32 %v1116, 16
      %v1233 = vrot.slane %v1231, 4
      %v1234 = vshll.u32 %v1116, 16
      %v1236 = vrot.slane %v1234, 5
      %v1237 = vor.u32 %v1233, %v1236
      %v1238 = vrot.slane %v1237, 4
      %v1240 = vshll.u32 %v1117, 16
      %v1242 = vrot.slane %v1240, 5
      %v1243 = vsel %vm1157, %v1238, %v1242
      %v1244 = vshrl.u32 %v1117, 16
      %v1246 = vrot.slane %v1244, 4
      %v1247 = vor.u32 %v1246, %v1242
      %v1248 = vrot.slane %v1247, 4
      %v1250 = vshll.u32 %v1118, 16
      %v1252 = vrot.slane %v1250, 5
      %v1253 = vsel %vm1157, %v1248, %v1252
      %v1255 = vshrl.u32 %v1119, 16
      %v1257 = vrot.slane %v1255, 4
      %v1258 = vshll.u32 %v1119, 16
      %v1260 = vrot.slane %v1258, 5
      %v1261 = vor.u32 %v1257, %v1260
      %v1262 = vrot.slane %v1261, 4
      %v1264 = vshll.u32 %v1120, 16
      %v1266 = vrot.slane %v1264, 5
      %v1267 = vsel %vm1157, %v1262, %v1266
      %v1268 = vshrl.u32 %v1120, 16
      %v1270 = vrot.slane %v1268, 4
      %v1271 = vor.u32 %v1270, %v1266
      %v1272 = vrot.slane %v1271, 4
      %v1274 = vshll.u32 %v1121, 16
      %v1276 = vrot.slane %v1274, 5
      %v1277 = vsel %vm1157, %v1272, %v1276
      %v1279 = vshrl.u32 %v1122, 16
      %v1281 = vrot.slane %v1279, 4
      %v1282 = vshll.u32 %v1122, 16
      %v1284 = vrot.slane %v1282, 5
      %v1285 = vor.u32 %v1281, %v1284
      %v1286 = vrot.slane %v1285, 4
      %v1288 = vshll.u32 %v1123, 16
      %v1290 = vrot.slane %v1288, 5
      %v1291 = vsel %vm1157, %v1286, %v1290
      %v1292 = vshrl.u32 %v1123, 16
      %v1294 = vrot.slane %v1292, 4
      %v1295 = vor.u32 %v1294, %v1290
      %v1296 = vrot.slane %v1295, 4
      %v1298 = vshll.u32 %v1124, 16
      %v1300 = vrot.slane %v1298, 5
      %v1301 = vsel %vm1157, %v1296, %v1300
      %v1303 = vshrl.u32 %v1125, 16
      %v1305 = vrot.slane %v1303, 4
      %v1306 = vshll.u32 %v1125, 16
      %v1308 = vrot.slane %v1306, 5
      %v1309 = vor.u32 %v1305, %v1308
      %v1310 = vrot.slane %v1309, 4
      %v1312 = vshll.u32 %v1126, 16
      %v1314 = vrot.slane %v1312, 5
      %v1315 = vsel %vm1157, %v1310, %v1314
      %v1316 = vshrl.u32 %v1126, 16
      %v1318 = vrot.slane %v1316, 4
      %v1319 = vor.u32 %v1318, %v1314
      %v1320 = vrot.slane %v1319, 4
      %v1322 = vshll.u32 %v1127, 16
      %v1324 = vrot.slane %v1322, 5
      %v1325 = vsel %vm1157, %v1320, %v1324
      %v1327 = vshrl.u32 %v1128, 16
      %v1329 = vrot.slane %v1327, 4
      %v1330 = vshll.u32 %v1128, 16
      %v1332 = vrot.slane %v1330, 5
      %v1333 = vor.u32 %v1329, %v1332
      %v1334 = vrot.slane %v1333, 4
      %v1336 = vshll.u32 %v1129, 16
      %v1338 = vrot.slane %v1336, 5
      %v1339 = vsel %vm1157, %v1334, %v1338
      %v1340 = vshrl.u32 %v1129, 16
      %v1342 = vrot.slane %v1340, 4
      %v1343 = vor.u32 %v1342, %v1338
      %v1344 = vrot.slane %v1343, 4
      %v1346 = vshll.u32 %v1130, 16
      %v1348 = vrot.slane %v1346, 5
      %v1349 = vsel %vm1157, %v1344, %v1348
      %v1351 = vshrl.u32 %v1131, 16
      %v1353 = vrot.slane %v1351, 4
      %v1354 = vshll.u32 %v1131, 16
      %v1356 = vrot.slane %v1354, 5
      %v1357 = vor.u32 %v1353, %v1356
      %v1358 = vrot.slane %v1357, 4
      %v1360 = vshll.u32 %v1132, 16
      %v1362 = vrot.slane %v1360, 5
      %v1363 = vsel %vm1157, %v1358, %v1362
      %v1364 = vshrl.u32 %v1132, 16
      %v1366 = vrot.slane %v1364, 4
      %v1367 = vor.u32 %v1366, %v1362
      %v1368 = vrot.slane %v1367, 4
      %v1370 = vshll.u32 %v1133, 16
      %v1372 = vrot.slane %v1370, 5
      %v1373 = vsel %vm1157, %v1368, %v1372
      %v1375 = vshrl.u32 %v1134, 16
      %v1377 = vrot.slane %v1375, 4
      %v1378 = vshll.u32 %v1134, 16
      %v1380 = vrot.slane %v1378, 5
      %v1381 = vor.u32 %v1377, %v1380
      %v1382 = vrot.slane %v1381, 4
      %v1384 = vshll.u32 %v1135, 16
      %v1386 = vrot.slane %v1384, 5
      %v1387 = vsel %vm1157, %v1382, %v1386
      %v1388 = vshrl.u32 %v1135, 16
      %v1390 = vrot.slane %v1388, 4
      %v1391 = vor.u32 %v1390, %v1386
      %v1392 = vrot.slane %v1391, 4
      %v1394 = vshll.u32 %v1136, 16
      %v1396 = vrot.slane %v1394, 5
      %v1397 = vsel %vm1157, %v1392, %v1396
      %v1399 = vshrl.u32 %v1137, 16
      %v1401 = vrot.slane %v1399, 4
      %v1402 = vshll.u32 %v1137, 16
      %v1404 = vrot.slane %v1402, 5
      %v1405 = vor.u32 %v1401, %v1404
      %v1406 = vrot.slane %v1405, 4
      %v1408 = vshll.u32 %v1138, 16
      %v1410 = vrot.slane %v1408, 5
      %v1411 = vsel %vm1157, %v1406, %v1410
      %v1412 = vshrl.u32 %v1138, 16
      %v1414 = vrot.slane %v1412, 4
      %v1415 = vor.u32 %v1414, %v1410
      %v1416 = vrot.slane %v1415, 4
      %v1418 = vshll.u32 %v1139, 16
      %v1420 = vrot.slane %v1418, 5
      %v1421 = vsel %vm1157, %v1416, %v1420
      %v1423 = vshrl.u32 %v1140, 16
      %v1425 = vrot.slane %v1423, 4
      %v1426 = vshll.u32 %v1140, 16
      %v1428 = vrot.slane %v1426, 5
      %v1429 = vor.u32 %v1425, %v1428
      %v1430 = vrot.slane %v1429, 4
      %v1432 = vshll.u32 %v1141, 16
      %v1434 = vrot.slane %v1432, 5
      %v1435 = vsel %vm1157, %v1430, %v1434
      %v1436 = vshrl.u32 %v1141, 16
      %v1438 = vrot.slane %v1436, 4
      %v1439 = vor.u32 %v1438, %v1434
      %v1440 = vrot.slane %v1439, 4
      %v1442 = vshll.u32 %v1142, 16
      %v1444 = vrot.slane %v1442, 5
      %v1445 = vsel %vm1157, %v1440, %v1444
      %v1447 = vshrl.u32 %v1143, 16
      %v1449 = vrot.slane %v1447, 4
      %v1450 = vshll.u32 %v1143, 16
      %v1452 = vrot.slane %v1450, 5
      %v1453 = vor.u32 %v1449, %v1452
      %v1454 = vrot.slane %v1453, 4
      %v1456 = vshll.u32 %v1144, 16
      %v1458 = vrot.slane %v1456, 5
      %v1459 = vsel %vm1157, %v1454, %v1458
      %v1460 = vshrl.u32 %v1144, 16
      %v1462 = vrot.slane %v1460, 4
      %v1463 = vor.u32 %v1462, %v1458
      %v1464 = vrot.slane %v1463, 4
      %v1466 = vshll.u32 %v1145, 16
      %v1468 = vrot.slane %v1466, 5
      %v1469 = vsel %vm1157, %v1464, %v1468
      %v1471 = vshrl.u32 %v1146, 16
      %v1473 = vrot.slane %v1471, 4
      %v1474 = vshll.u32 %v1146, 16
      %v1476 = vrot.slane %v1474, 5
      %v1477 = vor.u32 %v1473, %v1476
      %v1478 = vrot.slane %v1477, 4
      %v1480 = vshll.u32 %v1147, 16
      %v1482 = vrot.slane %v1480, 5
      %v1483 = vsel %vm1157, %v1478, %v1482
      %v1484 = vshrl.u32 %v1147, 16
      %v1486 = vrot.slane %v1484, 4
      %v1487 = vor.u32 %v1486, %v1482
      %v1488 = vrot.slane %v1487, 4
      %v1490 = vshll.u32 %v1148, 16
      %v1492 = vrot.slane %v1490, 5
      %v1493 = vsel %vm1157, %v1488, %v1492
      %v1495 = vshrl.u32 %v1149, 16
      %v1497 = vrot.slane %v1495, 4
      %v1498 = vshll.u32 %v1149, 16
      %v1500 = vrot.slane %v1498, 5
      %v1501 = vor.u32 %v1497, %v1500
      %v1502 = vrot.slane %v1501, 4
      %v1504 = vshll.u32 %v1150, 16
      %v1506 = vrot.slane %v1504, 5
      %v1507 = vsel %vm1157, %v1502, %v1506
      %v1508 = vshrl.u32 %v1150, 16
      %v1510 = vrot.slane %v1508, 4
      %v1511 = vor.u32 %v1510, %v1506
      %v1512 = vrot.slane %v1511, 4
      %v1514 = vshll.u32 %v1151, 16
      %v1516 = vrot.slane %v1514, 5
      %v1517 = vsel %vm1157, %v1512, %v1516
      %v1519 = vshrl.u32 %v1152, 16
      %v1521 = vrot.slane %v1519, 4
      %v1522 = vshll.u32 %v1152, 16
      %v1524 = vrot.slane %v1522, 5
      %v1525 = vor.u32 %v1521, %v1524
      %v1526 = vrot.slane %v1525, 4
      %v1528 = vshll.u32 %v1153, 16
      %v1530 = vrot.slane %v1528, 5
      %v1531 = vsel %vm1157, %v1526, %v1530
      %v1532 = vshrl.u32 %v1153, 16
      %v1534 = vrot.slane %v1532, 4
      %v1535 = vor.u32 %v1534, %v1530
      %v1536 = vrot.slane %v1535, 4
      %v1538 = vshll.u32 %v1154, 16
      %v1540 = vrot.slane %v1538, 5
      %v1541 = vsel %vm1157, %v1536, %v1540
      %s1542 = scalar_lea.vmem %s1, 64
      %v1543 = vld [vmem:[%s1542] sm:$0xf]
      %v1544 = vld [vmem:[%s1542 + $0x4] sm:$0xf]
      %v1545 = vld [vmem:[%s1542 + $0x8] sm:$0xf]
      %v1546 = vld [vmem:[%s1542 + $0xc] sm:$0xf]
      %v1547 = vld [vmem:[%s1542 + $0x10] sm:$0xf]
      %v1548 = vld [vmem:[%s1542 + $0x14] sm:$0xf]
      %v1549 = vld [vmem:[%s1542 + $0x18] sm:$0xf]
      %v1550 = vld [vmem:[%s1542 + $0x1c] sm:$0xf]
      %v1551 = vld [vmem:[%s1542 + $0x20] sm:$0xf]
      %v1552 = vld [vmem:[%s1542 + $0x24] sm:$0xf]
      %v1553 = vld [vmem:[%s1542 + $0x28] sm:$0xf]
      %v1554 = vld [vmem:[%s1542 + $0x2c] sm:$0xf]
      %v1555 = vld [vmem:[%s1542 + $0x30] sm:$0xf]
      %v1556 = vld [vmem:[%s1542 + $0x34] sm:$0xf]
      %v1557 = vld [vmem:[%s1542 + $0x38] sm:$0xf]
      %v1558 = vld [vmem:[%s1542 + $0x3c] sm:$0xf]
      %v1559 = vunpack.c.l.b16 %v1171
      %v1560 = vunpack.c.l.b16 %v1181
      %v1561 = vunpack.c.l.b16 %v1195
      %v1562 = vunpack.c.l.b16 %v1205
      %v1563 = vunpack.c.l.b16 %v1219
      %v1564 = vunpack.c.l.b16 %v1229
      %v1565 = vunpack.c.l.b16 %v1243
      %v1566 = vunpack.c.l.b16 %v1253
      %v1567 = vunpack.c.l.b16 %v1267
      %v1568 = vunpack.c.l.b16 %v1277
      %v1569 = vunpack.c.l.b16 %v1291
      %v1570 = vunpack.c.l.b16 %v1301
      %v1571 = vunpack.c.l.b16 %v1315
      %v1572 = vunpack.c.l.b16 %v1325
      %v1573 = vunpack.c.l.b16 %v1339
      %v1574 = vunpack.c.l.b16 %v1349
      %v1575 = vunpack.c.l.b16 %v1363
      %v1576 = vunpack.c.l.b16 %v1373
      %v1577 = vunpack.c.l.b16 %v1387
      %v1578 = vunpack.c.l.b16 %v1397
      %v1579 = vunpack.c.l.b16 %v1411
      %v1580 = vunpack.c.l.b16 %v1421
      %v1581 = vunpack.c.l.b16 %v1435
      %v1582 = vunpack.c.l.b16 %v1445
      %v1583 = vunpack.c.l.b16 %v1459
      %v1584 = vunpack.c.l.b16 %v1469
      %v1585 = vunpack.c.l.b16 %v1483
      %v1586 = vunpack.c.l.b16 %v1493
      %v1587 = vunpack.c.l.b16 %v1507
      %v1588 = vunpack.c.l.b16 %v1517
      %v1589 = vunpack.c.l.b16 %v1531
      %v1590 = vunpack.c.l.b16 %v1541
      %v1591 = vpack.c.b16 %v1560, %v1559
      %v1592 = vpack.c.b16 %v1562, %v1561
      %v1593 = vpack.c.b16 %v1564, %v1563
      %v1594 = vpack.c.b16 %v1566, %v1565
      %v1595 = vpack.c.b16 %v1568, %v1567
      %v1596 = vpack.c.b16 %v1570, %v1569
      %v1597 = vpack.c.b16 %v1572, %v1571
      %v1598 = vpack.c.b16 %v1574, %v1573
      %v1599 = vpack.c.b16 %v1576, %v1575
      %v1600 = vpack.c.b16 %v1578, %v1577
      %v1601 = vpack.c.b16 %v1580, %v1579
      %v1602 = vpack.c.b16 %v1582, %v1581
      %v1603 = vpack.c.b16 %v1584, %v1583
      %v1604 = vpack.c.b16 %v1586, %v1585
      %v1605 = vpack.c.b16 %v1588, %v1587
      %v1606 = vpack.c.b16 %v1590, %v1589
      %v1639 = vunpack.c.l.b16 %v1543
      %v1640 = vunpack.c.l.b16 %v1544
      %v1641 = vunpack.c.l.b16 %v1545
      %v1642 = vunpack.c.l.b16 %v1546
      %v1643 = vunpack.c.l.b16 %v1547
      %v1644 = vunpack.c.l.b16 %v1548
      %v1645 = vunpack.c.l.b16 %v1549
      %v1646 = vunpack.c.l.b16 %v1550
      %v1647 = vunpack.c.l.b16 %v1551
      %v1648 = vunpack.c.l.b16 %v1552
      %v1649 = vunpack.c.l.b16 %v1553
      %v1650 = vunpack.c.l.b16 %v1554
      %v1651 = vunpack.c.l.b16 %v1555
      %v1652 = vunpack.c.l.b16 %v1556
      %v1653 = vunpack.c.l.b16 %v1557
      %v1654 = vunpack.c.l.b16 %v1558
      %v1655 = vpack.c.b16 %v1640, %v1639
      %v1656 = vpack.c.b16 %v1642, %v1641
      %v1657 = vpack.c.b16 %v1644, %v1643
      %v1658 = vpack.c.b16 %v1646, %v1645
      %v1659 = vpack.c.b16 %v1648, %v1647
      %v1660 = vpack.c.b16 %v1650, %v1649
      %v1661 = vpack.c.b16 %v1652, %v1651
      %v1662 = vpack.c.b16 %v1654, %v1653
      %1671 = vmatprep.subr.bf16.mxu0 0
      %1672 = vmatpush1.bf16.msra.mxu0 %v1655
      %1673 = vmatprep.subr.bf16.mxu0 0
      %1674 = vmatpush1.bf16.msra.mxu0 %v1656
      %1675 = vmatprep.subr.bf16.mxu0 0
      %1676 = vmatpush1.bf16.msra.mxu0 %v1657
      %1677 = vmatprep.subr.bf16.mxu0 0
      %1678 = vmatpush1.bf16.msra.mxu0 %v1658
      %1679 = vmatprep.subr.bf16.mxu0 0
      %1680 = vmatpush1.bf16.msra.mxu0 %v1659
      %1681 = vmatprep.subr.bf16.mxu0 0
      %1682 = vmatpush1.bf16.msra.mxu0 %v1660
      %1683 = vmatprep.subr.bf16.mxu0 0
      %1684 = vmatpush1.bf16.msra.mxu0 %v1661
      %1685 = vmatprep.subr.bf16.mxu0 0
      %1686 = vmatpush1.bf16.msra.mxu0 %v1662
      %1687 = vmatprep.subr.bf16.mxu0 0
      %1688 = vmatpush1.bf16.msra.mxu0 0
      %1689 = vmatprep.subr.bf16.mxu0 0
      %1690 = vmatpush1.bf16.msra.mxu0 0
      %1691 = vmatprep.subr.bf16.mxu0 0
      %1692 = vmatpush1.bf16.msra.mxu0 0
      %1693 = vmatprep.subr.bf16.mxu0 0
      %1694 = vmatpush1.bf16.msra.mxu0 0
      %1695 = vmatprep.subr.bf16.mxu0 0
      %1696 = vmatpush1.bf16.msra.mxu0 0
      %1697 = vmatprep.subr.bf16.mxu0 0
      %1698 = vmatpush1.bf16.msra.mxu0 0
      %1699 = vmatprep.subr.bf16.mxu0 0
      %1700 = vmatpush1.bf16.msra.mxu0 0
      %1701 = vmatprep.subr.bf16.mxu0 0
      %1702 = vmatpush1.bf16.msra.mxu0 0
      %1703 = vmatprep.mubr.bf16.mxu0 0
      %1704 = vmatmul.mubr.bf16.gmra.mrb[0].mxu0 %v1591
      %v1705 = vpop.f32.mrb[0].mxu0
      %v1706 = vadd.f32 0.0, %v1705
      %v1707 = vpop.f32.mrb[0].mxu0
      %v1708 = vpop.f32.mrb[0].mxu0
      %v1709 = vadd.f32 0.0, %v1708
      %v1710 = vpop.f32.mrb[0].mxu0
      %1711 = vmatprep.mubr.bf16.mxu0 0
      %1712 = vmatmul.mubr.bf16.gmra.mrb[0].mxu0 %v1592
      %v1713 = vpop.f32.mrb[0].mxu0
      %v1714 = vadd.f32 0.0, %v1713
      %v1715 = vpop.f32.mrb[0].mxu0
      %v1716 = vpop.f32.mrb[0].mxu0
      %v1717 = vadd.f32 0.0, %v1716
      %v1718 = vpop.f32.mrb[0].mxu0
      %1719 = vmatprep.mubr.bf16.mxu0 0
      %1720 = vmatmul.mubr.bf16.gmra.mrb[0].mxu0 %v1593
      %v1721 = vpop.f32.mrb[0].mxu0
      %v1722 = vadd.f32 0.0, %v1721
      %v1723 = vpop.f32.mrb[0].mxu0
      %v1724 = vpop.f32.mrb[0].mxu0
      %v1725 = vadd.f32 0.0, %v1724
      %v1726 = vpop.f32.mrb[0].mxu0
      %1727 = vmatprep.mubr.bf16.mxu0 0
      %1728 = vmatmul.mubr.bf16.gmra.mrb[0].mxu0 %v1594
      %v1729 = vpop.f32.mrb[0].mxu0
      %v1730 = vadd.f32 0.0, %v1729
      %v1731 = vpop.f32.mrb[0].mxu0
      %v1732 = vpop.f32.mrb[0].mxu0
      %v1733 = vadd.f32 0.0, %v1732
      %v1734 = vpop.f32.mrb[0].mxu0
      %1735 = vmatprep.mubr.bf16.mxu0 0
      %1736 = vmatmul.mubr.bf16.gmra.mrb[0].mxu0 %v1595
      %v1737 = vpop.f32.mrb[0].mxu0
      %v1738 = vadd.f32 0.0, %v1737
      %v1739 = vpop.f32.mrb[0].mxu0
      %v1740 = vpop.f32.mrb[0].mxu0
      %v1741 = vadd.f32 0.0, %v1740
      %v1742 = vpop.f32.mrb[0].mxu0
      %1743 = vmatprep.mubr.bf16.mxu0 0
      %1744 = vmatmul.mubr.bf16.gmra.mrb[0].mxu0 %v1596
      %v1745 = vpop.f32.mrb[0].mxu0
      %v1746 = vadd.f32 0.0, %v1745
      %v1747 = vpop.f32.mrb[0].mxu0
      %v1748 = vpop.f32.mrb[0].mxu0
      %v1749 = vadd.f32 0.0, %v1748
      %v1750 = vpop.f32.mrb[0].mxu0
      %1751 = vmatprep.mubr.bf16.mxu0 0
      %1752 = vmatmul.mubr.bf16.gmra.mrb[0].mxu0 %v1597
      %v1753 = vpop.f32.mrb[0].mxu0
      %v1754 = vadd.f32 0.0, %v1753
      %v1755 = vpop.f32.mrb[0].mxu0
      %v1756 = vpop.f32.mrb[0].mxu0
      %v1757 = vadd.f32 0.0, %v1756
      %v1758 = vpop.f32.mrb[0].mxu0
      %1759 = vmatprep.mubr.bf16.mxu0 0
      %1760 = vmatmul.mubr.bf16.gmra.mrb[0].mxu0 %v1598
      %v1761 = vpop.f32.mrb[0].mxu0
      %v1762 = vadd.f32 0.0, %v1761
      %v1763 = vpop.f32.mrb[0].mxu0
      %v1764 = vpop.f32.mrb[0].mxu0
      %v1765 = vadd.f32 0.0, %v1764
      %v1766 = vpop.f32.mrb[0].mxu0
      %1767 = vmatprep.mubr.bf16.mxu0 0
      %1768 = vmatmul.mubr.bf16.gmra.mrb[0].mxu0 %v1599
      %v1769 = vpop.f32.mrb[0].mxu0
      %v1770 = vadd.f32 0.0, %v1769
      %v1771 = vpop.f32.mrb[0].mxu0
      %v1772 = vpop.f32.mrb[0].mxu0
      %v1773 = vadd.f32 0.0, %v1772
      %v1774 = vpop.f32.mrb[0].mxu0
      %1775 = vmatprep.mubr.bf16.mxu0 0
      %1776 = vmatmul.mubr.bf16.gmra.mrb[0].mxu0 %v1600
      %v1777 = vpop.f32.mrb[0].mxu0
      %v1778 = vadd.f32 0.0, %v1777
      %v1779 = vpop.f32.mrb[0].mxu0
      %v1780 = vpop.f32.mrb[0].mxu0
      %v1781 = vadd.f32 0.0, %v1780
      %v1782 = vpop.f32.mrb[0].mxu0
      %1783 = vmatprep.mubr.bf16.mxu0 0
      %1784 = vmatmul.mubr.bf16.gmra.mrb[0].mxu0 %v1601
      %v1785 = vpop.f32.mrb[0].mxu0
      %v1786 = vadd.f32 0.0, %v1785
      %v1787 = vpop.f32.mrb[0].mxu0
      %v1788 = vpop.f32.mrb[0].mxu0
      %v1789 = vadd.f32 0.0, %v1788
      %v1790 = vpop.f32.mrb[0].mxu0
      %1791 = vmatprep.mubr.bf16.mxu0 0
      %1792 = vmatmul.mubr.bf16.gmra.mrb[0].mxu0 %v1602
      %v1793 = vpop.f32.mrb[0].mxu0
      %v1794 = vadd.f32 0.0, %v1793
      %v1795 = vpop.f32.mrb[0].mxu0
      %v1796 = vpop.f32.mrb[0].mxu0
      %v1797 = vadd.f32 0.0, %v1796
      %v1798 = vpop.f32.mrb[0].mxu0
      %1799 = vmatprep.mubr.bf16.mxu0 0
      %1800 = vmatmul.mubr.bf16.gmra.mrb[0].mxu0 %v1603
      %v1801 = vpop.f32.mrb[0].mxu0
      %v1802 = vadd.f32 0.0, %v1801
      %v1803 = vpop.f32.mrb[0].mxu0
      %v1804 = vpop.f32.mrb[0].mxu0
      %v1805 = vadd.f32 0.0, %v1804
      %v1806 = vpop.f32.mrb[0].mxu0
      %1807 = vmatprep.mubr.bf16.mxu0 0
      %1808 = vmatmul.mubr.bf16.gmra.mrb[0].mxu0 %v1604
      %v1809 = vpop.f32.mrb[0].mxu0
      %v1810 = vadd.f32 0.0, %v1809
      %v1811 = vpop.f32.mrb[0].mxu0
      %v1812 = vpop.f32.mrb[0].mxu0
      %v1813 = vadd.f32 0.0, %v1812
      %v1814 = vpop.f32.mrb[0].mxu0
      %1815 = vmatprep.mubr.bf16.mxu0 0
      %1816 = vmatmul.mubr.bf16.gmra.mrb[0].mxu0 %v1605
      %v1817 = vpop.f32.mrb[0].mxu0
      %v1818 = vadd.f32 0.0, %v1817
      %v1819 = vpop.f32.mrb[0].mxu0
      %v1820 = vpop.f32.mrb[0].mxu0
      %v1821 = vadd.f32 0.0, %v1820
      %v1822 = vpop.f32.mrb[0].mxu0
      %1823 = vmatprep.mubr.bf16.mxu0 0
      %1824 = vmatmul.mubr.bf16.gmra.mrb[0].mxu0 %v1606
      %v1825 = vpop.f32.mrb[0].mxu0
      %v1826 = vadd.f32 0.0, %v1825
      %v1827 = vpop.f32.mrb[0].mxu0
      %v1828 = vpop.f32.mrb[0].mxu0
      %v1829 = vadd.f32 0.0, %v1828
      %v1830 = vpop.f32.mrb[0].mxu0
      %1831 = vdwg.mxu0
      %v1832 = vld [vmem:[#allocation3] sm:$0xff]
      %v1833 = vld [vmem:[#allocation3 + $0x8] sm:$0xff]
      %v1834 = vld [vmem:[#allocation3 + $0x10] sm:$0xff]
      %v1835 = vld [vmem:[#allocation3 + $0x18] sm:$0xff]
      %v1836 = vld [vmem:[#allocation3 + $0x20] sm:$0xff]
      %v1837 = vld [vmem:[#allocation3 + $0x28] sm:$0xff]
      %v1838 = vld [vmem:[#allocation3 + $0x30] sm:$0xff]
      %v1839 = vld [vmem:[#allocation3 + $0x38] sm:$0xff]
      %v1840 = vld [vmem:[#allocation3 + $0x40] sm:$0xff]
      %v1841 = vld [vmem:[#allocation3 + $0x48] sm:$0xff]
      %v1842 = vld [vmem:[#allocation3 + $0x50] sm:$0xff]
      %v1843 = vld [vmem:[#allocation3 + $0x58] sm:$0xff]
      %v1844 = vld [vmem:[#allocation3 + $0x60] sm:$0xff]
      %v1845 = vld [vmem:[#allocation3 + $0x68] sm:$0xff]
      %v1846 = vld [vmem:[#allocation3 + $0x70] sm:$0xff]
      %v1847 = vld [vmem:[#allocation3 + $0x78] sm:$0xff]
      %v1848 = vld [vmem:[#allocation3 + $0x80] sm:$0xff]
      %v1849 = vld [vmem:[#allocation3 + $0x88] sm:$0xff]
      %v1850 = vld [vmem:[#allocation3 + $0x90] sm:$0xff]
      %v1851 = vld [vmem:[#allocation3 + $0x98] sm:$0xff]
      %v1852 = vld [vmem:[#allocation3 + $0xa0] sm:$0xff]
      %v1853 = vld [vmem:[#allocation3 + $0xa8] sm:$0xff]
      %v1854 = vld [vmem:[#allocation3 + $0xb0] sm:$0xff]
      %v1855 = vld [vmem:[#allocation3 + $0xb8] sm:$0xff]
      %v1856 = vld [vmem:[#allocation3 + $0xc0] sm:$0xff]
      %v1857 = vld [vmem:[#allocation3 + $0xc8] sm:$0xff]
      %v1858 = vld [vmem:[#allocation3 + $0xd0] sm:$0xff]
      %v1859 = vld [vmem:[#allocation3 + $0xd8] sm:$0xff]
      %v1860 = vld [vmem:[#allocation3 + $0xe0] sm:$0xff]
      %v1861 = vld [vmem:[#allocation3 + $0xe8] sm:$0xff]
      %v1862 = vld [vmem:[#allocation3 + $0xf0] sm:$0xff]
      %v1863 = vld [vmem:[#allocation3 + $0xf8] sm:$0xff]
      %v1864 = vadd.f32 %v1832, %v1706
      %v1865 = vadd.f32 %v1833, %v1709
      %v1866 = vadd.f32 %v1834, %v1714
      %v1867 = vadd.f32 %v1835, %v1717
      %v1868 = vadd.f32 %v1836, %v1722
      %v1869 = vadd.f32 %v1837, %v1725
      %v1870 = vadd.f32 %v1838, %v1730
      %v1871 = vadd.f32 %v1839, %v1733
      %v1872 = vadd.f32 %v1840, %v1738
      %v1873 = vadd.f32 %v1841, %v1741
      %v1874 = vadd.f32 %v1842, %v1746
      %v1875 = vadd.f32 %v1843, %v1749
      %v1876 = vadd.f32 %v1844, %v1754
      %v1877 = vadd.f32 %v1845, %v1757
      %v1878 = vadd.f32 %v1846, %v1762
      %v1879 = vadd.f32 %v1847, %v1765
      %v1880 = vadd.f32 %v1848, %v1770
      %v1881 = vadd.f32 %v1849, %v1773
      %v1882 = vadd.f32 %v1850, %v1778
      %v1883 = vadd.f32 %v1851, %v1781
      %v1884 = vadd.f32 %v1852, %v1786
      %v1885 = vadd.f32 %v1853, %v1789
      %v1886 = vadd.f32 %v1854, %v1794
      %v1887 = vadd.f32 %v1855, %v1797
      %v1888 = vadd.f32 %v1856, %v1802
      %v1889 = vadd.f32 %v1857, %v1805
      %v1890 = vadd.f32 %v1858, %v1810
      %v1891 = vadd.f32 %v1859, %v1813
      %v1892 = vadd.f32 %v1860, %v1818
      %v1893 = vadd.f32 %v1861, %v1821
      %v1894 = vadd.f32 %v1862, %v1826
      %v1895 = vadd.f32 %v1863, %v1829
      %1896 = vst [vmem:[#allocation3] sm:$0xff] %v1864
      %1897 = vst [vmem:[#allocation3 + $0x8] sm:$0xff] %v1865
      %1898 = vst [vmem:[#allocation3 + $0x10] sm:$0xff] %v1866
      %1899 = vst [vmem:[#allocation3 + $0x18] sm:$0xff] %v1867
      %1900 = vst [vmem:[#allocation3 + $0x20] sm:$0xff] %v1868
      %1901 = vst [vmem:[#allocation3 + $0x28] sm:$0xff] %v1869
      %1902 = vst [vmem:[#allocation3 + $0x30] sm:$0xff] %v1870
      %1903 = vst [vmem:[#allocation3 + $0x38] sm:$0xff] %v1871
      %1904 = vst [vmem:[#allocation3 + $0x40] sm:$0xff] %v1872
      %1905 = vst [vmem:[#allocation3 + $0x48] sm:$0xff] %v1873
      %1906 = vst [vmem:[#allocation3 + $0x50] sm:$0xff] %v1874
      %1907 = vst [vmem:[#allocation3 + $0x58] sm:$0xff] %v1875
      %1908 = vst [vmem:[#allocation3 + $0x60] sm:$0xff] %v1876
      %1909 = vst [vmem:[#allocation3 + $0x68] sm:$0xff] %v1877
      %1910 = vst [vmem:[#allocation3 + $0x70] sm:$0xff] %v1878
      %1911 = vst [vmem:[#allocation3 + $0x78] sm:$0xff] %v1879
      %1912 = vst [vmem:[#allocation3 + $0x80] sm:$0xff] %v1880
      %1913 = vst [vmem:[#allocation3 + $0x88] sm:$0xff] %v1881
      %1914 = vst [vmem:[#allocation3 + $0x90] sm:$0xff] %v1882
      %1915 = vst [vmem:[#allocation3 + $0x98] sm:$0xff] %v1883
      %1916 = vst [vmem:[#allocation3 + $0xa0] sm:$0xff] %v1884
      %1917 = vst [vmem:[#allocation3 + $0xa8] sm:$0xff] %v1885
      %1918 = vst [vmem:[#allocation3 + $0xb0] sm:$0xff] %v1886
      %1919 = vst [vmem:[#allocation3 + $0xb8] sm:$0xff] %v1887
      %1920 = vst [vmem:[#allocation3 + $0xc0] sm:$0xff] %v1888
      %1921 = vst [vmem:[#allocation3 + $0xc8] sm:$0xff] %v1889
      %1922 = vst [vmem:[#allocation3 + $0xd0] sm:$0xff] %v1890
      %1923 = vst [vmem:[#allocation3 + $0xd8] sm:$0xff] %v1891
      %1924 = vst [vmem:[#allocation3 + $0xe0] sm:$0xff] %v1892
      %1925 = vst [vmem:[#allocation3 + $0xe8] sm:$0xff] %v1893
      %1926 = vst [vmem:[#allocation3 + $0xf0] sm:$0xff] %v1894
      %1927 = vst [vmem:[#allocation3 + $0xf8] sm:$0xff] %v1895
      %v1928 = vld [vmem:[#allocation2] sm:$0xe]
      %v1929 = vld [vmem:[#allocation2 + $0x4] sm:$0xf]
      %v1930 = vld [vmem:[#allocation2 + $0x8] sm:$0x1]
      %v1931 = vld [vmem:[#allocation2 + $0xc] sm:$0xe]
      %v1932 = vld [vmem:[#allocation2 + $0x10] sm:$0xf]
      %v1933 = vld [vmem:[#allocation2 + $0x14] sm:$0x1]
      %v1934 = vld [vmem:[#allocation2 + $0x18] sm:$0xe]
      %v1935 = vld [vmem:[#allocation2 + $0x1c] sm:$0xf]
      %v1936 = vld [vmem:[#allocation2 + $0x20] sm:$0x1]
      %v1937 = vld [vmem:[#allocation2 + $0x24] sm:$0xe]
      %v1938 = vld [vmem:[#allocation2 + $0x28] sm:$0xf]
      %v1939 = vld [vmem:[#allocation2 + $0x2c] sm:$0x1]
      %v1940 = vld [vmem:[#allocation2 + $0x30] sm:$0xe]
      %v1941 = vld [vmem:[#allocation2 + $0x34] sm:$0xf]
      %v1942 = vld [vmem:[#allocation2 + $0x38] sm:$0x1]
      %v1943 = vld [vmem:[#allocation2 + $0x3c] sm:$0xe]
      %v1944 = vld [vmem:[#allocation2 + $0x40] sm:$0xf]
      %v1945 = vld [vmem:[#allocation2 + $0x44] sm:$0x1]
      %v1946 = vld [vmem:[#allocation2 + $0x48] sm:$0xe]
      %v1947 = vld [vmem:[#allocation2 + $0x4c] sm:$0xf]
      %v1948 = vld [vmem:[#allocation2 + $0x50] sm:$0x1]
      %v1949 = vld [vmem:[#allocation2 + $0x54] sm:$0xe]
      %v1950 = vld [vmem:[#allocation2 + $0x58] sm:$0xf]
      %v1951 = vld [vmem:[#allocation2 + $0x5c] sm:$0x1]
      %v1952 = vld [vmem:[#allocation2 + $0x60] sm:$0xe]
      %v1953 = vld [vmem:[#allocation2 + $0x64] sm:$0xf]
      %v1954 = vld [vmem:[#allocation2 + $0x68] sm:$0x1]
      %v1955 = vld [vmem:[#allocation2 + $0x6c] sm:$0xe]
      %v1956 = vld [vmem:[#allocation2 + $0x70] sm:$0xf]
      %v1957 = vld [vmem:[#allocation2 + $0x74] sm:$0x1]
      %v1958 = vld [vmem:[#allocation2 + $0x78] sm:$0xe]
      %v1959 = vld [vmem:[#allocation2 + $0x7c] sm:$0xf]
      %v1960 = vld [vmem:[#allocation2 + $0x80] sm:$0x1]
      %v1961 = vld [vmem:[#allocation2 + $0x84] sm:$0xe]
      %v1962 = vld [vmem:[#allocation2 + $0x88] sm:$0xf]
      %v1963 = vld [vmem:[#allocation2 + $0x8c] sm:$0x1]
      %v1964 = vld [vmem:[#allocation2 + $0x90] sm:$0xe]
      %v1965 = vld [vmem:[#allocation2 + $0x94] sm:$0xf]
      %v1966 = vld [vmem:[#allocation2 + $0x98] sm:$0x1]
      %v1967 = vld [vmem:[#allocation2 + $0x9c] sm:$0xe]
      %v1968 = vld [vmem:[#allocation2 + $0xa0] sm:$0xf]
      %v1969 = vld [vmem:[#allocation2 + $0xa4] sm:$0x1]
      %v1970 = vld [vmem:[#allocation2 + $0xa8] sm:$0xe]
      %v1971 = vld [vmem:[#allocation2 + $0xac] sm:$0xf]
      %v1972 = vld [vmem:[#allocation2 + $0xb0] sm:$0x1]
      %v1973 = vld [vmem:[#allocation2 + $0xb4] sm:$0xe]
      %v1974 = vld [vmem:[#allocation2 + $0xb8] sm:$0xf]
      %v1975 = vld [vmem:[#allocation2 + $0xbc] sm:$0x1]
      %vm2024 = vcmask 1042432
      %vm2025 = vcmask 1046532
      %vm2026 = vmor %vm2024, %vm2025
      %v2027 = vrot.slane %v1928, 5
      %v2028 = vrot.slane %v2027, 4
      %v2029 = vrot.slane %v1929, 5
      %v2030 = vsel %vm2026, %v2028, %v2029
      %v2031 = vrot.slane %v2029, 4
      %v2032 = vrot.slane %v1930, 5
      %v2033 = vsel %vm2026, %v2031, %v2032
      %v2034 = vrot.slane %v1931, 5
      %v2035 = vrot.slane %v2034, 4
      %v2036 = vrot.slane %v1932, 5
      %v2037 = vsel %vm2026, %v2035, %v2036
      %v2038 = vrot.slane %v2036, 4
      %v2039 = vrot.slane %v1933, 5
      %v2040 = vsel %vm2026, %v2038, %v2039
      %v2041 = vrot.slane %v1934, 5
      %v2042 = vrot.slane %v2041, 4
      %v2043 = vrot.slane %v1935, 5
      %v2044 = vsel %vm2026, %v2042, %v2043
      %v2045 = vrot.slane %v2043, 4
      %v2046 = vrot.slane %v1936, 5
      %v2047 = vsel %vm2026, %v2045, %v2046
      %v2048 = vrot.slane %v1937, 5
      %v2049 = vrot.slane %v2048, 4
      %v2050 = vrot.slane %v1938, 5
      %v2051 = vsel %vm2026, %v2049, %v2050
      %v2052 = vrot.slane %v2050, 4
      %v2053 = vrot.slane %v1939, 5
      %v2054 = vsel %vm2026, %v2052, %v2053
      %v2055 = vrot.slane %v1940, 5
      %v2056 = vrot.slane %v2055, 4
      %v2057 = vrot.slane %v1941, 5
      %v2058 = vsel %vm2026, %v2056, %v2057
      %v2059 = vrot.slane %v2057, 4
      %v2060 = vrot.slane %v1942, 5
      %v2061 = vsel %vm2026, %v2059, %v2060
      %v2062 = vrot.slane %v1943, 5
      %v2063 = vrot.slane %v2062, 4
      %v2064 = vrot.slane %v1944, 5
      %v2065 = vsel %vm2026, %v2063, %v2064
      %v2066 = vrot.slane %v2064, 4
      %v2067 = vrot.slane %v1945, 5
      %v2068 = vsel %vm2026, %v2066, %v2067
      %v2069 = vrot.slane %v1946, 5
      %v2070 = vrot.slane %v2069, 4
      %v2071 = vrot.slane %v1947, 5
      %v2072 = vsel %vm2026, %v2070, %v2071
      %v2073 = vrot.slane %v2071, 4
      %v2074 = vrot.slane %v1948, 5
      %v2075 = vsel %vm2026, %v2073, %v2074
      %v2076 = vrot.slane %v1949, 5
      %v2077 = vrot.slane %v2076, 4
      %v2078 = vrot.slane %v1950, 5
      %v2079 = vsel %vm2026, %v2077, %v2078
      %v2080 = vrot.slane %v2078, 4
      %v2081 = vrot.slane %v1951, 5
      %v2082 = vsel %vm2026, %v2080, %v2081
      %v2083 = vrot.slane %v1952, 5
      %v2084 = vrot.slane %v2083, 4
      %v2085 = vrot.slane %v1953, 5
      %v2086 = vsel %vm2026, %v2084, %v2085
      %v2087 = vrot.slane %v2085, 4
      %v2088 = vrot.slane %v1954, 5
      %v2089 = vsel %vm2026, %v2087, %v2088
      %v2090 = vrot.slane %v1955, 5
      %v2091 = vrot.slane %v2090, 4
      %v2092 = vrot.slane %v1956, 5
      %v2093 = vsel %vm2026, %v2091, %v2092
      %v2094 = vrot.slane %v2092, 4
      %v2095 = vrot.slane %v1957, 5
      %v2096 = vsel %vm2026, %v2094, %v2095
      %v2097 = vrot.slane %v1958, 5
      %v2098 = vrot.slane %v2097, 4
      %v2099 = vrot.slane %v1959, 5
      %v2100 = vsel %vm2026, %v2098, %v2099
      %v2101 = vrot.slane %v2099, 4
      %v2102 = vrot.slane %v1960, 5
      %v2103 = vsel %vm2026, %v2101, %v2102
      %v2104 = vrot.slane %v1961, 5
      %v2105 = vrot.slane %v2104, 4
      %v2106 = vrot.slane %v1962, 5
      %v2107 = vsel %vm2026, %v2105, %v2106
      %v2108 = vrot.slane %v2106, 4
      %v2109 = vrot.slane %v1963, 5
      %v2110 = vsel %vm2026, %v2108, %v2109
      %v2111 = vrot.slane %v1964, 5
      %v2112 = vrot.slane %v2111, 4
      %v2113 = vrot.slane %v1965, 5
      %v2114 = vsel %vm2026, %v2112, %v2113
      %v2115 = vrot.slane %v2113, 4
      %v2116 = vrot.slane %v1966, 5
      %v2117 = vsel %vm2026, %v2115, %v2116
      %v2118 = vrot.slane %v1967, 5
      %v2119 = vrot.slane %v2118, 4
      %v2120 = vrot.slane %v1968, 5
      %v2121 = vsel %vm2026, %v2119, %v2120
      %v2122 = vrot.slane %v2120, 4
      %v2123 = vrot.slane %v1969, 5
      %v2124 = vsel %vm2026, %v2122, %v2123
      %v2125 = vrot.slane %v1970, 5
      %v2126 = vrot.slane %v2125, 4
      %v2127 = vrot.slane %v1971, 5
      %v2128 = vsel %vm2026, %v2126, %v2127
      %v2129 = vrot.slane %v2127, 4
      %v2130 = vrot.slane %v1972, 5
      %v2131 = vsel %vm2026, %v2129, %v2130
      %v2132 = vrot.slane %v1973, 5
      %v2133 = vrot.slane %v2132, 4
      %v2134 = vrot.slane %v1974, 5
      %v2135 = vsel %vm2026, %v2133, %v2134
      %v2136 = vrot.slane %v2134, 4
      %v2137 = vrot.slane %v1975, 5
      %v2138 = vsel %vm2026, %v2136, %v2137
      %s2139 = scalar_lea.vmem %s1, 128
      %v2140 = vld [vmem:[%s2139] sm:$0xf]
      %v2141 = vld [vmem:[%s2139 + $0x4] sm:$0xf]
      %v2142 = vld [vmem:[%s2139 + $0x8] sm:$0xf]
      %v2143 = vld [vmem:[%s2139 + $0xc] sm:$0xf]
      %v2144 = vld [vmem:[%s2139 + $0x10] sm:$0xf]
      %v2145 = vld [vmem:[%s2139 + $0x14] sm:$0xf]
      %v2146 = vld [vmem:[%s2139 + $0x18] sm:$0xf]
      %v2147 = vld [vmem:[%s2139 + $0x1c] sm:$0xf]
      %v2148 = vld [vmem:[%s2139 + $0x20] sm:$0xf]
      %v2149 = vld [vmem:[%s2139 + $0x24] sm:$0xf]
      %v2150 = vld [vmem:[%s2139 + $0x28] sm:$0xf]
      %v2151 = vld [vmem:[%s2139 + $0x2c] sm:$0xf]
      %v2152 = vld [vmem:[%s2139 + $0x30] sm:$0xf]
      %v2153 = vld [vmem:[%s2139 + $0x34] sm:$0xf]
      %v2154 = vld [vmem:[%s2139 + $0x38] sm:$0xf]
      %v2155 = vld [vmem:[%s2139 + $0x3c] sm:$0xf]
      %v2156 = vunpack.c.l.b16 %v2030
      %v2157 = vunpack.c.l.b16 %v2033
      %v2158 = vunpack.c.l.b16 %v2037
      %v2159 = vunpack.c.l.b16 %v2040
      %v2160 = vunpack.c.l.b16 %v2044
      %v2161 = vunpack.c.l.b16 %v2047
      %v2162 = vunpack.c.l.b16 %v2051
      %v2163 = vunpack.c.l.b16 %v2054
      %v2164 = vunpack.c.l.b16 %v2058
      %v2165 = vunpack.c.l.b16 %v2061
      %v2166 = vunpack.c.l.b16 %v2065
      %v2167 = vunpack.c.l.b16 %v2068
      %v2168 = vunpack.c.l.b16 %v2072
      %v2169 = vunpack.c.l.b16 %v2075
      %v2170 = vunpack.c.l.b16 %v2079
      %v2171 = vunpack.c.l.b16 %v2082
      %v2172 = vunpack.c.l.b16 %v2086
      %v2173 = vunpack.c.l.b16 %v2089
      %v2174 = vunpack.c.l.b16 %v2093
      %v2175 = vunpack.c.l.b16 %v2096
      %v2176 = vunpack.c.l.b16 %v2100
      %v2177 = vunpack.c.l.b16 %v2103
      %v2178 = vunpack.c.l.b16 %v2107
      %v2179 = vunpack.c.l.b16 %v2110
      %v2180 = vunpack.c.l.b16 %v2114
      %v2181 = vunpack.c.l.b16 %v2117
      %v2182 = vunpack.c.l.b16 %v2121
      %v2183 = vunpack.c.l.b16 %v2124
      %v2184 = vunpack.c.l.b16 %v2128
      %v2185 = vunpack.c.l.b16 %v2131
      %v2186 = vunpack.c.l.b16 %v2135
      %v2187 = vunpack.c.l.b16 %v2138
      %v2188 = vpack.c.b16 %v2157, %v2156
      %v2189 = vpack.c.b16 %v2159, %v2158
      %v2190 = vpack.c.b16 %v2161, %v2160
      %v2191 = vpack.c.b16 %v2163, %v2162
      %v2192 = vpack.c.b16 %v2165, %v2164
      %v2193 = vpack.c.b16 %v2167, %v2166
      %v2194 = vpack.c.b16 %v2169, %v2168
      %v2195 = vpack.c.b16 %v2171, %v2170
      %v2196 = vpack.c.b16 %v2173, %v2172
      %v2197 = vpack.c.b16 %v2175, %v2174
      %v2198 = vpack.c.b16 %v2177, %v2176
      %v2199 = vpack.c.b16 %v2179, %v2178
      %v2200 = vpack.c.b16 %v2181, %v2180
      %v2201 = vpack.c.b16 %v2183, %v2182
      %v2202 = vpack.c.b16 %v2185, %v2184
      %v2203 = vpack.c.b16 %v2187, %v2186
      %v2236 = vunpack.c.l.b16 %v2140
      %v2237 = vunpack.c.l.b16 %v2141
      %v2238 = vunpack.c.l.b16 %v2142
      %v2239 = vunpack.c.l.b16 %v2143
      %v2240 = vunpack.c.l.b16 %v2144
      %v2241 = vunpack.c.l.b16 %v2145
      %v2242 = vunpack.c.l.b16 %v2146
      %v2243 = vunpack.c.l.b16 %v2147
      %v2244 = vunpack.c.l.b16 %v2148
      %v2245 = vunpack.c.l.b16 %v2149
      %v2246 = vunpack.c.l.b16 %v2150
      %v2247 = vunpack.c.l.b16 %v2151
      %v2248 = vunpack.c.l.b16 %v2152
      %v2249 = vunpack.c.l.b16 %v2153
      %v2250 = vunpack.c.l.b16 %v2154
      %v2251 = vunpack.c.l.b16 %v2155
      %v2252 = vpack.c.b16 %v2237, %v2236
      %v2253 = vpack.c.b16 %v2239, %v2238
      %v2254 = vpack.c.b16 %v2241, %v2240
      %v2255 = vpack.c.b16 %v2243, %v2242
      %v2256 = vpack.c.b16 %v2245, %v2244
      %v2257 = vpack.c.b16 %v2247, %v2246
      %v2258 = vpack.c.b16 %v2249, %v2248
      %v2259 = vpack.c.b16 %v2251, %v2250
      %2268 = vmatprep.subr.bf16.mxu0 0
      %2269 = vmatpush1.bf16.msra.mxu0 %v2252
      %2270 = vmatprep.subr.bf16.mxu0 0
      %2271 = vmatpush1.bf16.msra.mxu0 %v2253
      %2272 = vmatprep.subr.bf16.mxu0 0
      %2273 = vmatpush1.bf16.msra.mxu0 %v2254
      %2274 = vmatprep.subr.bf16.mxu0 0
      %2275 = vmatpush1.bf16.msra.mxu0 %v2255
      %2276 = vmatprep.subr.bf16.mxu0 0
      %2277 = vmatpush1.bf16.msra.mxu0 %v2256
      %2278 = vmatprep.subr.bf16.mxu0 0
      %2279 = vmatpush1.bf16.msra.mxu0 %v2257
      %2280 = vmatprep.subr.bf16.mxu0 0
      %2281 = vmatpush1.bf16.msra.mxu0 %v2258
      %2282 = vmatprep.subr.bf16.mxu0 0
      %2283 = vmatpush1.bf16.msra.mxu0 %v2259
      %2284 = vmatprep.subr.bf16.mxu0 0
      %2285 = vmatpush1.bf16.msra.mxu0 0
      %2286 = vmatprep.subr.bf16.mxu0 0
      %2287 = vmatpush1.bf16.msra.mxu0 0
      %2288 = vmatprep.subr.bf16.mxu0 0
      %2289 = vmatpush1.bf16.msra.mxu0 0
      %2290 = vmatprep.subr.bf16.mxu0 0
      %2291 = vmatpush1.bf16.msra.mxu0 0
      %2292 = vmatprep.subr.bf16.mxu0 0
      %2293 = vmatpush1.bf16.msra.mxu0 0
      %2294 = vmatprep.subr.bf16.mxu0 0
      %2295 = vmatpush1.bf16.msra.mxu0 0
      %2296 = vmatprep.subr.bf16.mxu0 0
      %2297 = vmatpush1.bf16.msra.mxu0 0
      %2298 = vmatprep.subr.bf16.mxu0 0
      %2299 = vmatpush1.bf16.msra.mxu0 0
      %2300 = vmatprep.mubr.bf16.mxu0 0
      %2301 = vmatmul.mubr.bf16.gmra.mrb[0].mxu0 %v2188
      %v2302 = vpop.f32.mrb[0].mxu0
      %v2303 = vadd.f32 0.0, %v2302
      %v2304 = vpop.f32.mrb[0].mxu0
      %v2305 = vpop.f32.mrb[0].mxu0
      %v2306 = vadd.f32 0.0, %v2305
      %v2307 = vpop.f32.mrb[0].mxu0
      %2308 = vmatprep.mubr.bf16.mxu0 0
      %2309 = vmatmul.mubr.bf16.gmra.mrb[0].mxu0 %v2189
      %v2310 = vpop.f32.mrb[0].mxu0
      %v2311 = vadd.f32 0.0, %v2310
      %v2312 = vpop.f32.mrb[0].mxu0
      %v2313 = vpop.f32.mrb[0].mxu0
      %v2314 = vadd.f32 0.0, %v2313
      %v2315 = vpop.f32.mrb[0].mxu0
      %2316 = vmatprep.mubr.bf16.mxu0 0
      %2317 = vmatmul.mubr.bf16.gmra.mrb[0].mxu0 %v2190
      %v2318 = vpop.f32.mrb[0].mxu0
      %v2319 = vadd.f32 0.0, %v2318
      %v2320 = vpop.f32.mrb[0].mxu0
      %v2321 = vpop.f32.mrb[0].mxu0
      %v2322 = vadd.f32 0.0, %v2321
      %v2323 = vpop.f32.mrb[0].mxu0
      %2324 = vmatprep.mubr.bf16.mxu0 0
      %2325 = vmatmul.mubr.bf16.gmra.mrb[0].mxu0 %v2191
      %v2326 = vpop.f32.mrb[0].mxu0
      %v2327 = vadd.f32 0.0, %v2326
      %v2328 = vpop.f32.mrb[0].mxu0
      %v2329 = vpop.f32.mrb[0].mxu0
      %v2330 = vadd.f32 0.0, %v2329
      %v2331 = vpop.f32.mrb[0].mxu0
      %2332 = vmatprep.mubr.bf16.mxu0 0
      %2333 = vmatmul.mubr.bf16.gmra.mrb[0].mxu0 %v2192
      %v2334 = vpop.f32.mrb[0].mxu0
      %v2335 = vadd.f32 0.0, %v2334
      %v2336 = vpop.f32.mrb[0].mxu0
      %v2337 = vpop.f32.mrb[0].mxu0
      %v2338 = vadd.f32 0.0, %v2337
      %v2339 = vpop.f32.mrb[0].mxu0
      %2340 = vmatprep.mubr.bf16.mxu0 0
      %2341 = vmatmul.mubr.bf16.gmra.mrb[0].mxu0 %v2193
      %v2342 = vpop.f32.mrb[0].mxu0
      %v2343 = vadd.f32 0.0, %v2342
      %v2344 = vpop.f32.mrb[0].mxu0
      %v2345 = vpop.f32.mrb[0].mxu0
      %v2346 = vadd.f32 0.0, %v2345
      %v2347 = vpop.f32.mrb[0].mxu0
      %2348 = vmatprep.mubr.bf16.mxu0 0
      %2349 = vmatmul.mubr.bf16.gmra.mrb[0].mxu0 %v2194
      %v2350 = vpop.f32.mrb[0].mxu0
      %v2351 = vadd.f32 0.0, %v2350
      %v2352 = vpop.f32.mrb[0].mxu0
      %v2353 = vpop.f32.mrb[0].mxu0
      %v2354 = vadd.f32 0.0, %v2353
      %v2355 = vpop.f32.mrb[0].mxu0
      %2356 = vmatprep.mubr.bf16.mxu0 0
      %2357 = vmatmul.mubr.bf16.gmra.mrb[0].mxu0 %v2195
      %v2358 = vpop.f32.mrb[0].mxu0
      %v2359 = vadd.f32 0.0, %v2358
      %v2360 = vpop.f32.mrb[0].mxu0
      %v2361 = vpop.f32.mrb[0].mxu0
      %v2362 = vadd.f32 0.0, %v2361
      %v2363 = vpop.f32.mrb[0].mxu0
      %2364 = vmatprep.mubr.bf16.mxu0 0
      %2365 = vmatmul.mubr.bf16.gmra.mrb[0].mxu0 %v2196
      %v2366 = vpop.f32.mrb[0].mxu0
      %v2367 = vadd.f32 0.0, %v2366
      %v2368 = vpop.f32.mrb[0].mxu0
      %v2369 = vpop.f32.mrb[0].mxu0
      %v2370 = vadd.f32 0.0, %v2369
      %v2371 = vpop.f32.mrb[0].mxu0
      %2372 = vmatprep.mubr.bf16.mxu0 0
      %2373 = vmatmul.mubr.bf16.gmra.mrb[0].mxu0 %v2197
      %v2374 = vpop.f32.mrb[0].mxu0
      %v2375 = vadd.f32 0.0, %v2374
      %v2376 = vpop.f32.mrb[0].mxu0
      %v2377 = vpop.f32.mrb[0].mxu0
      %v2378 = vadd.f32 0.0, %v2377
      %v2379 = vpop.f32.mrb[0].mxu0
      %2380 = vmatprep.mubr.bf16.mxu0 0
      %2381 = vmatmul.mubr.bf16.gmra.mrb[0].mxu0 %v2198
      %v2382 = vpop.f32.mrb[0].mxu0
      %v2383 = vadd.f32 0.0, %v2382
      %v2384 = vpop.f32.mrb[0].mxu0
      %v2385 = vpop.f32.mrb[0].mxu0
      %v2386 = vadd.f32 0.0, %v2385
      %v2387 = vpop.f32.mrb[0].mxu0
      %2388 = vmatprep.mubr.bf16.mxu0 0
      %2389 = vmatmul.mubr.bf16.gmra.mrb[0].mxu0 %v2199
      %v2390 = vpop.f32.mrb[0].mxu0
      %v2391 = vadd.f32 0.0, %v2390
      %v2392 = vpop.f32.mrb[0].mxu0
      %v2393 = vpop.f32.mrb[0].mxu0
      %v2394 = vadd.f32 0.0, %v2393
      %v2395 = vpop.f32.mrb[0].mxu0
      %2396 = vmatprep.mubr.bf16.mxu0 0
      %2397 = vmatmul.mubr.bf16.gmra.mrb[0].mxu0 %v2200
      %v2398 = vpop.f32.mrb[0].mxu0
      %v2399 = vadd.f32 0.0, %v2398
      %v2400 = vpop.f32.mrb[0].mxu0
      %v2401 = vpop.f32.mrb[0].mxu0
      %v2402 = vadd.f32 0.0, %v2401
      %v2403 = vpop.f32.mrb[0].mxu0
      %2404 = vmatprep.mubr.bf16.mxu0 0
      %2405 = vmatmul.mubr.bf16.gmra.mrb[0].mxu0 %v2201
      %v2406 = vpop.f32.mrb[0].mxu0
      %v2407 = vadd.f32 0.0, %v2406
      %v2408 = vpop.f32.mrb[0].mxu0
      %v2409 = vpop.f32.mrb[0].mxu0
      %v2410 = vadd.f32 0.0, %v2409
      %v2411 = vpop.f32.mrb[0].mxu0
      %2412 = vmatprep.mubr.bf16.mxu0 0
      %2413 = vmatmul.mubr.bf16.gmra.mrb[0].mxu0 %v2202
      %v2414 = vpop.f32.mrb[0].mxu0
      %v2415 = vadd.f32 0.0, %v2414
      %v2416 = vpop.f32.mrb[0].mxu0
      %v2417 = vpop.f32.mrb[0].mxu0
      %v2418 = vadd.f32 0.0, %v2417
      %v2419 = vpop.f32.mrb[0].mxu0
      %2420 = vmatprep.mubr.bf16.mxu0 0
      %2421 = vmatmul.mubr.bf16.gmra.mrb[0].mxu0 %v2203
      %v2422 = vpop.f32.mrb[0].mxu0
      %v2423 = vadd.f32 0.0, %v2422
      %v2424 = vpop.f32.mrb[0].mxu0
      %v2425 = vpop.f32.mrb[0].mxu0
      %v2426 = vadd.f32 0.0, %v2425
      %v2427 = vpop.f32.mrb[0].mxu0
      %2428 = vdwg.mxu0
      %v2429 = vld [vmem:[#allocation3] sm:$0xff]
      %v2430 = vld [vmem:[#allocation3 + $0x8] sm:$0xff]
      %v2431 = vld [vmem:[#allocation3 + $0x10] sm:$0xff]
      %v2432 = vld [vmem:[#allocation3 + $0x18] sm:$0xff]
      %v2433 = vld [vmem:[#allocation3 + $0x20] sm:$0xff]
      %v2434 = vld [vmem:[#allocation3 + $0x28] sm:$0xff]
      %v2435 = vld [vmem:[#allocation3 + $0x30] sm:$0xff]
      %v2436 = vld [vmem:[#allocation3 + $0x38] sm:$0xff]
      %v2437 = vld [vmem:[#allocation3 + $0x40] sm:$0xff]
      %v2438 = vld [vmem:[#allocation3 + $0x48] sm:$0xff]
      %v2439 = vld [vmem:[#allocation3 + $0x50] sm:$0xff]
      %v2440 = vld [vmem:[#allocation3 + $0x58] sm:$0xff]
      %v2441 = vld [vmem:[#allocation3 + $0x60] sm:$0xff]
      %v2442 = vld [vmem:[#allocation3 + $0x68] sm:$0xff]
      %v2443 = vld [vmem:[#allocation3 + $0x70] sm:$0xff]
      %v2444 = vld [vmem:[#allocation3 + $0x78] sm:$0xff]
      %v2445 = vld [vmem:[#allocation3 + $0x80] sm:$0xff]
      %v2446 = vld [vmem:[#allocation3 + $0x88] sm:$0xff]
      %v2447 = vld [vmem:[#allocation3 + $0x90] sm:$0xff]
      %v2448 = vld [vmem:[#allocation3 + $0x98] sm:$0xff]
      %v2449 = vld [vmem:[#allocation3 + $0xa0] sm:$0xff]
      %v2450 = vld [vmem:[#allocation3 + $0xa8] sm:$0xff]
      %v2451 = vld [vmem:[#allocation3 + $0xb0] sm:$0xff]
      %v2452 = vld [vmem:[#allocation3 + $0xb8] sm:$0xff]
      %v2453 = vld [vmem:[#allocation3 + $0xc0] sm:$0xff]
      %v2454 = vld [vmem:[#allocation3 + $0xc8] sm:$0xff]
      %v2455 = vld [vmem:[#allocation3 + $0xd0] sm:$0xff]
      %v2456 = vld [vmem:[#allocation3 + $0xd8] sm:$0xff]
      %v2457 = vld [vmem:[#allocation3 + $0xe0] sm:$0xff]
      %v2458 = vld [vmem:[#allocation3 + $0xe8] sm:$0xff]
      %v2459 = vld [vmem:[#allocation3 + $0xf0] sm:$0xff]
      %v2460 = vld [vmem:[#allocation3 + $0xf8] sm:$0xff]
      %v2461 = vadd.f32 %v2429, %v2303
      %v2462 = vadd.f32 %v2430, %v2306
      %v2463 = vadd.f32 %v2431, %v2311
      %v2464 = vadd.f32 %v2432, %v2314
      %v2465 = vadd.f32 %v2433, %v2319
      %v2466 = vadd.f32 %v2434, %v2322
      %v2467 = vadd.f32 %v2435, %v2327
      %v2468 = vadd.f32 %v2436, %v2330
      %v2469 = vadd.f32 %v2437, %v2335
      %v2470 = vadd.f32 %v2438, %v2338
      %v2471 = vadd.f32 %v2439, %v2343
      %v2472 = vadd.f32 %v2440, %v2346
      %v2473 = vadd.f32 %v2441, %v2351
      %v2474 = vadd.f32 %v2442, %v2354
      %v2475 = vadd.f32 %v2443, %v2359
      %v2476 = vadd.f32 %v2444, %v2362
      %v2477 = vadd.f32 %v2445, %v2367
      %v2478 = vadd.f32 %v2446, %v2370
      %v2479 = vadd.f32 %v2447, %v2375
      %v2480 = vadd.f32 %v2448, %v2378
      %v2481 = vadd.f32 %v2449, %v2383
      %v2482 = vadd.f32 %v2450, %v2386
      %v2483 = vadd.f32 %v2451, %v2391
      %v2484 = vadd.f32 %v2452, %v2394
      %v2485 = vadd.f32 %v2453, %v2399
      %v2486 = vadd.f32 %v2454, %v2402
      %v2487 = vadd.f32 %v2455, %v2407
      %v2488 = vadd.f32 %v2456, %v2410
      %v2489 = vadd.f32 %v2457, %v2415
      %v2490 = vadd.f32 %v2458, %v2418
      %v2491 = vadd.f32 %v2459, %v2423
      %v2492 = vadd.f32 %v2460, %v2426
      %2493 = vst [vmem:[#allocation3] sm:$0xff] %v2461
      %2494 = vst [vmem:[#allocation3 + $0x8] sm:$0xff] %v2462
      %2495 = vst [vmem:[#allocation3 + $0x10] sm:$0xff] %v2463
      %2496 = vst [vmem:[#allocation3 + $0x18] sm:$0xff] %v2464
      %2497 = vst [vmem:[#allocation3 + $0x20] sm:$0xff] %v2465
      %2498 = vst [vmem:[#allocation3 + $0x28] sm:$0xff] %v2466
      %2499 = vst [vmem:[#allocation3 + $0x30] sm:$0xff] %v2467
      %2500 = vst [vmem:[#allocation3 + $0x38] sm:$0xff] %v2468
      %2501 = vst [vmem:[#allocation3 + $0x40] sm:$0xff] %v2469
      %2502 = vst [vmem:[#allocation3 + $0x48] sm:$0xff] %v2470
      %2503 = vst [vmem:[#allocation3 + $0x50] sm:$0xff] %v2471
      %2504 = vst [vmem:[#allocation3 + $0x58] sm:$0xff] %v2472
      %2505 = vst [vmem:[#allocation3 + $0x60] sm:$0xff] %v2473
      %2506 = vst [vmem:[#allocation3 + $0x68] sm:$0xff] %v2474
      %2507 = vst [vmem:[#allocation3 + $0x70] sm:$0xff] %v2475
      %2508 = vst [vmem:[#allocation3 + $0x78] sm:$0xff] %v2476
      %2509 = vst [vmem:[#allocation3 + $0x80] sm:$0xff] %v2477
      %2510 = vst [vmem:[#allocation3 + $0x88] sm:$0xff] %v2478
      %2511 = vst [vmem:[#allocation3 + $0x90] sm:$0xff] %v2479
      %2512 = vst [vmem:[#allocation3 + $0x98] sm:$0xff] %v2480
      %2513 = vst [vmem:[#allocation3 + $0xa0] sm:$0xff] %v2481
      %2514 = vst [vmem:[#allocation3 + $0xa8] sm:$0xff] %v2482
      %2515 = vst [vmem:[#allocation3 + $0xb0] sm:$0xff] %v2483
      %2516 = vst [vmem:[#allocation3 + $0xb8] sm:$0xff] %v2484
      %2517 = vst [vmem:[#allocation3 + $0xc0] sm:$0xff] %v2485
      %2518 = vst [vmem:[#allocation3 + $0xc8] sm:$0xff] %v2486
      %2519 = vst [vmem:[#allocation3 + $0xd0] sm:$0xff] %v2487
      %2520 = vst [vmem:[#allocation3 + $0xd8] sm:$0xff] %v2488
      %2521 = vst [vmem:[#allocation3 + $0xe0] sm:$0xff] %v2489
      %2522 = vst [vmem:[#allocation3 + $0xe8] sm:$0xff] %v2490
      %2523 = vst [vmem:[#allocation3 + $0xf0] sm:$0xff] %v2491
      %2524 = vst [vmem:[#allocation3 + $0xf8] sm:$0xff] %v2492
      %v2525 = vld [vmem:[%s152] sm:$0xf]
      %v2526 = vld [vmem:[%s152 + $0x4] sm:$0xf]
      %v2527 = vld [vmem:[%s152 + $0xc] sm:$0xf]
      %v2528 = vld [vmem:[%s152 + $0x10] sm:$0xf]
      %v2529 = vld [vmem:[%s152 + $0x18] sm:$0xf]
      %v2530 = vld [vmem:[%s152 + $0x1c] sm:$0xf]
      %v2531 = vld [vmem:[%s152 + $0x24] sm:$0xf]
      %v2532 = vld [vmem:[%s152 + $0x28] sm:$0xf]
      %v2533 = vld [vmem:[%s152 + $0x30] sm:$0xf]
      %v2534 = vld [vmem:[%s152 + $0x34] sm:$0xf]
      %v2535 = vld [vmem:[%s152 + $0x3c] sm:$0xf]
      %v2536 = vld [vmem:[%s152 + $0x40] sm:$0xf]
      %v2537 = vld [vmem:[%s152 + $0x48] sm:$0xf]
      %v2538 = vld [vmem:[%s152 + $0x4c] sm:$0xf]
      %v2539 = vld [vmem:[%s152 + $0x54] sm:$0xf]
      %v2540 = vld [vmem:[%s152 + $0x58] sm:$0xf]
      %v2541 = vld [vmem:[%s152 + $0x60] sm:$0xf]
      %v2542 = vld [vmem:[%s152 + $0x64] sm:$0xf]
      %v2543 = vld [vmem:[%s152 + $0x6c] sm:$0xf]
      %v2544 = vld [vmem:[%s152 + $0x70] sm:$0xf]
      %v2545 = vld [vmem:[%s152 + $0x78] sm:$0xf]
      %v2546 = vld [vmem:[%s152 + $0x7c] sm:$0xf]
      %v2547 = vld [vmem:[%s152 + $0x84] sm:$0xf]
      %v2548 = vld [vmem:[%s152 + $0x88] sm:$0xf]
      %v2549 = vld [vmem:[%s152 + $0x90] sm:$0xf]
      %v2550 = vld [vmem:[%s152 + $0x94] sm:$0xf]
      %v2551 = vld [vmem:[%s152 + $0x9c] sm:$0xf]
      %v2552 = vld [vmem:[%s152 + $0xa0] sm:$0xf]
      %v2553 = vld [vmem:[%s152 + $0xa8] sm:$0xf]
      %v2554 = vld [vmem:[%s152 + $0xac] sm:$0xf]
      %v2555 = vld [vmem:[%s152 + $0xb4] sm:$0xf]
      %v2556 = vld [vmem:[%s152 + $0xb8] sm:$0xf]
      %s2557 = scalar_lea.vmem %s1, 192
      %v2558 = vld [vmem:[%s2557] sm:$0xf]
      %v2559 = vld [vmem:[%s2557 + $0x4] sm:$0xf]
      %v2560 = vld [vmem:[%s2557 + $0x8] sm:$0xf]
      %v2561 = vld [vmem:[%s2557 + $0xc] sm:$0xf]
      %v2562 = vld [vmem:[%s2557 + $0x10] sm:$0xf]
      %v2563 = vld [vmem:[%s2557 + $0x14] sm:$0xf]
      %v2564 = vld [vmem:[%s2557 + $0x18] sm:$0xf]
      %v2565 = vld [vmem:[%s2557 + $0x1c] sm:$0xf]
      %v2566 = vld [vmem:[%s2557 + $0x20] sm:$0xf]
      %v2567 = vld [vmem:[%s2557 + $0x24] sm:$0xf]
      %v2568 = vld [vmem:[%s2557 + $0x28] sm:$0xf]
      %v2569 = vld [vmem:[%s2557 + $0x2c] sm:$0xf]
      %v2570 = vld [vmem:[%s2557 + $0x30] sm:$0xf]
      %v2571 = vld [vmem:[%s2557 + $0x34] sm:$0xf]
      %v2572 = vld [vmem:[%s2557 + $0x38] sm:$0xf]
      %v2573 = vld [vmem:[%s2557 + $0x3c] sm:$0xf]
      %v2606 = vunpack.c.l.b16 %v2525
      %v2607 = vunpack.c.l.b16 %v2526
      %v2608 = vunpack.c.l.b16 %v2527
      %v2609 = vunpack.c.l.b16 %v2528
      %v2610 = vunpack.c.l.b16 %v2529
      %v2611 = vunpack.c.l.b16 %v2530
      %v2612 = vunpack.c.l.b16 %v2531
      %v2613 = vunpack.c.l.b16 %v2532
      %v2614 = vunpack.c.l.b16 %v2533
      %v2615 = vunpack.c.l.b16 %v2534
      %v2616 = vunpack.c.l.b16 %v2535
      %v2617 = vunpack.c.l.b16 %v2536
      %v2618 = vunpack.c.l.b16 %v2537
      %v2619 = vunpack.c.l.b16 %v2538
      %v2620 = vunpack.c.l.b16 %v2539
      %v2621 = vunpack.c.l.b16 %v2540
      %v2622 = vunpack.c.l.b16 %v2541
      %v2623 = vunpack.c.l.b16 %v2542
      %v2624 = vunpack.c.l.b16 %v2543
      %v2625 = vunpack.c.l.b16 %v2544
      %v2626 = vunpack.c.l.b16 %v2545
      %v2627 = vunpack.c.l.b16 %v2546
      %v2628 = vunpack.c.l.b16 %v2547
      %v2629 = vunpack.c.l.b16 %v2548
      %v2630 = vunpack.c.l.b16 %v2549
      %v2631 = vunpack.c.l.b16 %v2550
      %v2632 = vunpack.c.l.b16 %v2551
      %v2633 = vunpack.c.l.b16 %v2552
      %v2634 = vunpack.c.l.b16 %v2553
      %v2635 = vunpack.c.l.b16 %v2554
      %v2636 = vunpack.c.l.b16 %v2555
      %v2637 = vunpack.c.l.b16 %v2556
      %v2638 = vpack.c.b16 %v2607, %v2606
      %v2639 = vpack.c.b16 %v2609, %v2608
      %v2640 = vpack.c.b16 %v2611, %v2610
      %v2641 = vpack.c.b16 %v2613, %v2612
      %v2642 = vpack.c.b16 %v2615, %v2614
      %v2643 = vpack.c.b16 %v2617, %v2616
      %v2644 = vpack.c.b16 %v2619, %v2618
      %v2645 = vpack.c.b16 %v2621, %v2620
      %v2646 = vpack.c.b16 %v2623, %v2622
      %v2647 = vpack.c.b16 %v2625, %v2624
      %v2648 = vpack.c.b16 %v2627, %v2626
      %v2649 = vpack.c.b16 %v2629, %v2628
      %v2650 = vpack.c.b16 %v2631, %v2630
      %v2651 = vpack.c.b16 %v2633, %v2632
      %v2652 = vpack.c.b16 %v2635, %v2634
      %v2653 = vpack.c.b16 %v2637, %v2636
      %v2686 = vunpack.c.l.b16 %v2558
      %v2687 = vunpack.c.l.b16 %v2559
      %v2688 = vunpack.c.l.b16 %v2560
      %v2689 = vunpack.c.l.b16 %v2561
      %v2690 = vunpack.c.l.b16 %v2562
      %v2691 = vunpack.c.l.b16 %v2563
      %v2692 = vunpack.c.l.b16 %v2564
      %v2693 = vunpack.c.l.b16 %v2565
      %v2694 = vunpack.c.l.b16 %v2566
      %v2695 = vunpack.c.l.b16 %v2567
      %v2696 = vunpack.c.l.b16 %v2568
      %v2697 = vunpack.c.l.b16 %v2569
      %v2698 = vunpack.c.l.b16 %v2570
      %v2699 = vunpack.c.l.b16 %v2571
      %v2700 = vunpack.c.l.b16 %v2572
      %v2701 = vunpack.c.l.b16 %v2573
      %v2702 = vpack.c.b16 %v2687, %v2686
      %v2703 = vpack.c.b16 %v2689, %v2688
      %v2704 = vpack.c.b16 %v2691, %v2690
      %v2705 = vpack.c.b16 %v2693, %v2692
      %v2706 = vpack.c.b16 %v2695, %v2694
      %v2707 = vpack.c.b16 %v2697, %v2696
      %v2708 = vpack.c.b16 %v2699, %v2698
      %v2709 = vpack.c.b16 %v2701, %v2700
      %2718 = vmatprep.subr.bf16.mxu0 0
      %2719 = vmatpush1.bf16.msra.mxu0 %v2702
      %2720 = vmatprep.subr.bf16.mxu0 0
      %2721 = vmatpush1.bf16.msra.mxu0 %v2703
      %2722 = vmatprep.subr.bf16.mxu0 0
      %2723 = vmatpush1.bf16.msra.mxu0 %v2704
      %2724 = vmatprep.subr.bf16.mxu0 0
      %2725 = vmatpush1.bf16.msra.mxu0 %v2705
      %2726 = vmatprep.subr.bf16.mxu0 0
      %2727 = vmatpush1.bf16.msra.mxu0 %v2706
      %2728 = vmatprep.subr.bf16.mxu0 0
      %2729 = vmatpush1.bf16.msra.mxu0 %v2707
      %2730 = vmatprep.subr.bf16.mxu0 0
      %2731 = vmatpush1.bf16.msra.mxu0 %v2708
      %2732 = vmatprep.subr.bf16.mxu0 0
      %2733 = vmatpush1.bf16.msra.mxu0 %v2709
      %2734 = vmatprep.subr.bf16.mxu0 0
      %2735 = vmatpush1.bf16.msra.mxu0 0
      %2736 = vmatprep.subr.bf16.mxu0 0
      %2737 = vmatpush1.bf16.msra.mxu0 0
      %2738 = vmatprep.subr.bf16.mxu0 0
      %2739 = vmatpush1.bf16.msra.mxu0 0
      %2740 = vmatprep.subr.bf16.mxu0 0
      %2741 = vmatpush1.bf16.msra.mxu0 0
      %2742 = vmatprep.subr.bf16.mxu0 0
      %2743 = vmatpush1.bf16.msra.mxu0 0
      %2744 = vmatprep.subr.bf16.mxu0 0
      %2745 = vmatpush1.bf16.msra.mxu0 0
      %2746 = vmatprep.subr.bf16.mxu0 0
      %2747 = vmatpush1.bf16.msra.mxu0 0
      %2748 = vmatprep.subr.bf16.mxu0 0
      %2749 = vmatpush1.bf16.msra.mxu0 0
      %2750 = vmatprep.mubr.bf16.mxu0 0
      %2751 = vmatmul.mubr.bf16.gmra.mrb[0].mxu0 %v2638
      %v2752 = vpop.f32.mrb[0].mxu0
      %v2753 = vadd.f32 0.0, %v2752
      %v2754 = vpop.f32.mrb[0].mxu0
      %v2755 = vpop.f32.mrb[0].mxu0
      %v2756 = vadd.f32 0.0, %v2755
      %v2757 = vpop.f32.mrb[0].mxu0
      %2758 = vmatprep.mubr.bf16.mxu0 0
      %2759 = vmatmul.mubr.bf16.gmra.mrb[0].mxu0 %v2639
      %v2760 = vpop.f32.mrb[0].mxu0
      %v2761 = vadd.f32 0.0, %v2760
      %v2762 = vpop.f32.mrb[0].mxu0
      %v2763 = vpop.f32.mrb[0].mxu0
      %v2764 = vadd.f32 0.0, %v2763
      %v2765 = vpop.f32.mrb[0].mxu0
      %2766 = vmatprep.mubr.bf16.mxu0 0
      %2767 = vmatmul.mubr.bf16.gmra.mrb[0].mxu0 %v2640
      %v2768 = vpop.f32.mrb[0].mxu0
      %v2769 = vadd.f32 0.0, %v2768
      %v2770 = vpop.f32.mrb[0].mxu0
      %v2771 = vpop.f32.mrb[0].mxu0
      %v2772 = vadd.f32 0.0, %v2771
      %v2773 = vpop.f32.mrb[0].mxu0
      %2774 = vmatprep.mubr.bf16.mxu0 0
      %2775 = vmatmul.mubr.bf16.gmra.mrb[0].mxu0 %v2641
      %v2776 = vpop.f32.mrb[0].mxu0
      %v2777 = vadd.f32 0.0, %v2776
      %v2778 = vpop.f32.mrb[0].mxu0
      %v2779 = vpop.f32.mrb[0].mxu0
      %v2780 = vadd.f32 0.0, %v2779
      %v2781 = vpop.f32.mrb[0].mxu0
      %2782 = vmatprep.mubr.bf16.mxu0 0
      %2783 = vmatmul.mubr.bf16.gmra.mrb[0].mxu0 %v2642
      %v2784 = vpop.f32.mrb[0].mxu0
      %v2785 = vadd.f32 0.0, %v2784
      %v2786 = vpop.f32.mrb[0].mxu0
      %v2787 = vpop.f32.mrb[0].mxu0
      %v2788 = vadd.f32 0.0, %v2787
      %v2789 = vpop.f32.mrb[0].mxu0
      %2790 = vmatprep.mubr.bf16.mxu0 0
      %2791 = vmatmul.mubr.bf16.gmra.mrb[0].mxu0 %v2643
      %v2792 = vpop.f32.mrb[0].mxu0
      %v2793 = vadd.f32 0.0, %v2792
      %v2794 = vpop.f32.mrb[0].mxu0
      %v2795 = vpop.f32.mrb[0].mxu0
      %v2796 = vadd.f32 0.0, %v2795
      %v2797 = vpop.f32.mrb[0].mxu0
      %2798 = vmatprep.mubr.bf16.mxu0 0
      %2799 = vmatmul.mubr.bf16.gmra.mrb[0].mxu0 %v2644
      %v2800 = vpop.f32.mrb[0].mxu0
      %v2801 = vadd.f32 0.0, %v2800
      %v2802 = vpop.f32.mrb[0].mxu0
      %v2803 = vpop.f32.mrb[0].mxu0
      %v2804 = vadd.f32 0.0, %v2803
      %v2805 = vpop.f32.mrb[0].mxu0
      %2806 = vmatprep.mubr.bf16.mxu0 0
      %2807 = vmatmul.mubr.bf16.gmra.mrb[0].mxu0 %v2645
      %v2808 = vpop.f32.mrb[0].mxu0
      %v2809 = vadd.f32 0.0, %v2808
      %v2810 = vpop.f32.mrb[0].mxu0
      %v2811 = vpop.f32.mrb[0].mxu0
      %v2812 = vadd.f32 0.0, %v2811
      %v2813 = vpop.f32.mrb[0].mxu0
      %2814 = vmatprep.mubr.bf16.mxu0 0
      %2815 = vmatmul.mubr.bf16.gmra.mrb[0].mxu0 %v2646
      %v2816 = vpop.f32.mrb[0].mxu0
      %v2817 = vadd.f32 0.0, %v2816
      %v2818 = vpop.f32.mrb[0].mxu0
      %v2819 = vpop.f32.mrb[0].mxu0
      %v2820 = vadd.f32 0.0, %v2819
      %v2821 = vpop.f32.mrb[0].mxu0
      %2822 = vmatprep.mubr.bf16.mxu0 0
      %2823 = vmatmul.mubr.bf16.gmra.mrb[0].mxu0 %v2647
      %v2824 = vpop.f32.mrb[0].mxu0
      %v2825 = vadd.f32 0.0, %v2824
      %v2826 = vpop.f32.mrb[0].mxu0
      %v2827 = vpop.f32.mrb[0].mxu0
      %v2828 = vadd.f32 0.0, %v2827
      %v2829 = vpop.f32.mrb[0].mxu0
      %2830 = vmatprep.mubr.bf16.mxu0 0
      %2831 = vmatmul.mubr.bf16.gmra.mrb[0].mxu0 %v2648
      %v2832 = vpop.f32.mrb[0].mxu0
      %v2833 = vadd.f32 0.0, %v2832
      %v2834 = vpop.f32.mrb[0].mxu0
      %v2835 = vpop.f32.mrb[0].mxu0
      %v2836 = vadd.f32 0.0, %v2835
      %v2837 = vpop.f32.mrb[0].mxu0
      %2838 = vmatprep.mubr.bf16.mxu0 0
      %2839 = vmatmul.mubr.bf16.gmra.mrb[0].mxu0 %v2649
      %v2840 = vpop.f32.mrb[0].mxu0
      %v2841 = vadd.f32 0.0, %v2840
      %v2842 = vpop.f32.mrb[0].mxu0
      %v2843 = vpop.f32.mrb[0].mxu0
      %v2844 = vadd.f32 0.0, %v2843
      %v2845 = vpop.f32.mrb[0].mxu0
      %2846 = vmatprep.mubr.bf16.mxu0 0
      %2847 = vmatmul.mubr.bf16.gmra.mrb[0].mxu0 %v2650
      %v2848 = vpop.f32.mrb[0].mxu0
      %v2849 = vadd.f32 0.0, %v2848
      %v2850 = vpop.f32.mrb[0].mxu0
      %v2851 = vpop.f32.mrb[0].mxu0
      %v2852 = vadd.f32 0.0, %v2851
      %v2853 = vpop.f32.mrb[0].mxu0
      %2854 = vmatprep.mubr.bf16.mxu0 0
      %2855 = vmatmul.mubr.bf16.gmra.mrb[0].mxu0 %v2651
      %v2856 = vpop.f32.mrb[0].mxu0
      %v2857 = vadd.f32 0.0, %v2856
      %v2858 = vpop.f32.mrb[0].mxu0
      %v2859 = vpop.f32.mrb[0].mxu0
      %v2860 = vadd.f32 0.0, %v2859
      %v2861 = vpop.f32.mrb[0].mxu0
      %2862 = vmatprep.mubr.bf16.mxu0 0
      %2863 = vmatmul.mubr.bf16.gmra.mrb[0].mxu0 %v2652
      %v2864 = vpop.f32.mrb[0].mxu0
      %v2865 = vadd.f32 0.0, %v2864
      %v2866 = vpop.f32.mrb[0].mxu0
      %v2867 = vpop.f32.mrb[0].mxu0
      %v2868 = vadd.f32 0.0, %v2867
      %v2869 = vpop.f32.mrb[0].mxu0
      %2870 = vmatprep.mubr.bf16.mxu0 0
      %2871 = vmatmul.mubr.bf16.gmra.mrb[0].mxu0 %v2653
      %v2872 = vpop.f32.mrb[0].mxu0
      %v2873 = vadd.f32 0.0, %v2872
      %v2874 = vpop.f32.mrb[0].mxu0
      %v2875 = vpop.f32.mrb[0].mxu0
      %v2876 = vadd.f32 0.0, %v2875
      %v2877 = vpop.f32.mrb[0].mxu0
      %2878 = vdwg.mxu0
      %v2879 = vld [vmem:[#allocation3] sm:$0xff]
      %v2880 = vld [vmem:[#allocation3 + $0x8] sm:$0xff]
      %v2881 = vld [vmem:[#allocation3 + $0x10] sm:$0xff]
      %v2882 = vld [vmem:[#allocation3 + $0x18] sm:$0xff]
      %v2883 = vld [vmem:[#allocation3 + $0x20] sm:$0xff]
      %v2884 = vld [vmem:[#allocation3 + $0x28] sm:$0xff]
      %v2885 = vld [vmem:[#allocation3 + $0x30] sm:$0xff]
      %v2886 = vld [vmem:[#allocation3 + $0x38] sm:$0xff]
      %v2887 = vld [vmem:[#allocation3 + $0x40] sm:$0xff]
      %v2888 = vld [vmem:[#allocation3 + $0x48] sm:$0xff]
      %v2889 = vld [vmem:[#allocation3 + $0x50] sm:$0xff]
      %v2890 = vld [vmem:[#allocation3 + $0x58] sm:$0xff]
      %v2891 = vld [vmem:[#allocation3 + $0x60] sm:$0xff]
      %v2892 = vld [vmem:[#allocation3 + $0x68] sm:$0xff]
      %v2893 = vld [vmem:[#allocation3 + $0x70] sm:$0xff]
      %v2894 = vld [vmem:[#allocation3 + $0x78] sm:$0xff]
      %v2895 = vld [vmem:[#allocation3 + $0x80] sm:$0xff]
      %v2896 = vld [vmem:[#allocation3 + $0x88] sm:$0xff]
      %v2897 = vld [vmem:[#allocation3 + $0x90] sm:$0xff]
      %v2898 = vld [vmem:[#allocation3 + $0x98] sm:$0xff]
      %v2899 = vld [vmem:[#allocation3 + $0xa0] sm:$0xff]
      %v2900 = vld [vmem:[#allocation3 + $0xa8] sm:$0xff]
      %v2901 = vld [vmem:[#allocation3 + $0xb0] sm:$0xff]
      %v2902 = vld [vmem:[#allocation3 + $0xb8] sm:$0xff]
      %v2903 = vld [vmem:[#allocation3 + $0xc0] sm:$0xff]
      %v2904 = vld [vmem:[#allocation3 + $0xc8] sm:$0xff]
      %v2905 = vld [vmem:[#allocation3 + $0xd0] sm:$0xff]
      %v2906 = vld [vmem:[#allocation3 + $0xd8] sm:$0xff]
      %v2907 = vld [vmem:[#allocation3 + $0xe0] sm:$0xff]
      %v2908 = vld [vmem:[#allocation3 + $0xe8] sm:$0xff]
      %v2909 = vld [vmem:[#allocation3 + $0xf0] sm:$0xff]
      %v2910 = vld [vmem:[#allocation3 + $0xf8] sm:$0xff]
      %v2911 = vadd.f32 %v2879, %v2753
      %v2912 = vadd.f32 %v2880, %v2756
      %v2913 = vadd.f32 %v2881, %v2761
      %v2914 = vadd.f32 %v2882, %v2764
      %v2915 = vadd.f32 %v2883, %v2769
      %v2916 = vadd.f32 %v2884, %v2772
      %v2917 = vadd.f32 %v2885, %v2777
      %v2918 = vadd.f32 %v2886, %v2780
      %v2919 = vadd.f32 %v2887, %v2785
      %v2920 = vadd.f32 %v2888, %v2788
      %v2921 = vadd.f32 %v2889, %v2793
      %v2922 = vadd.f32 %v2890, %v2796
      %v2923 = vadd.f32 %v2891, %v2801
      %v2924 = vadd.f32 %v2892, %v2804
      %v2925 = vadd.f32 %v2893, %v2809
      %v2926 = vadd.f32 %v2894, %v2812
      %v2927 = vadd.f32 %v2895, %v2817
      %v2928 = vadd.f32 %v2896, %v2820
      %v2929 = vadd.f32 %v2897, %v2825
      %v2930 = vadd.f32 %v2898, %v2828
      %v2931 = vadd.f32 %v2899, %v2833
      %v2932 = vadd.f32 %v2900, %v2836
      %v2933 = vadd.f32 %v2901, %v2841
      %v2934 = vadd.f32 %v2902, %v2844
      %v2935 = vadd.f32 %v2903, %v2849
      %v2936 = vadd.f32 %v2904, %v2852
      %v2937 = vadd.f32 %v2905, %v2857
      %v2938 = vadd.f32 %v2906, %v2860
      %v2939 = vadd.f32 %v2907, %v2865
      %v2940 = vadd.f32 %v2908, %v2868
      %v2941 = vadd.f32 %v2909, %v2873
      %v2942 = vadd.f32 %v2910, %v2876
      %2943 = vst [vmem:[#allocation3] sm:$0xff] %v2911
      %2944 = vst [vmem:[#allocation3 + $0x8] sm:$0xff] %v2912
      %2945 = vst [vmem:[#allocation3 + $0x10] sm:$0xff] %v2913
      %2946 = vst [vmem:[#allocation3 + $0x18] sm:$0xff] %v2914
      %2947 = vst [vmem:[#allocation3 + $0x20] sm:$0xff] %v2915
      %2948 = vst [vmem:[#allocation3 + $0x28] sm:$0xff] %v2916
      %2949 = vst [vmem:[#allocation3 + $0x30] sm:$0xff] %v2917
      %2950 = vst [vmem:[#allocation3 + $0x38] sm:$0xff] %v2918
      %2951 = vst [vmem:[#allocation3 + $0x40] sm:$0xff] %v2919
      %2952 = vst [vmem:[#allocation3 + $0x48] sm:$0xff] %v2920
      %2953 = vst [vmem:[#allocation3 + $0x50] sm:$0xff] %v2921
      %2954 = vst [vmem:[#allocation3 + $0x58] sm:$0xff] %v2922
      %2955 = vst [vmem:[#allocation3 + $0x60] sm:$0xff] %v2923
      %2956 = vst [vmem:[#allocation3 + $0x68] sm:$0xff] %v2924
      %2957 = vst [vmem:[#allocation3 + $0x70] sm:$0xff] %v2925
      %2958 = vst [vmem:[#allocation3 + $0x78] sm:$0xff] %v2926
      %2959 = vst [vmem:[#allocation3 + $0x80] sm:$0xff] %v2927
      %2960 = vst [vmem:[#allocation3 + $0x88] sm:$0xff] %v2928
      %2961 = vst [vmem:[#allocation3 + $0x90] sm:$0xff] %v2929
      %2962 = vst [vmem:[#allocation3 + $0x98] sm:$0xff] %v2930
      %2963 = vst [vmem:[#allocation3 + $0xa0] sm:$0xff] %v2931
      %2964 = vst [vmem:[#allocation3 + $0xa8] sm:$0xff] %v2932
      %2965 = vst [vmem:[#allocation3 + $0xb0] sm:$0xff] %v2933
      %2966 = vst [vmem:[#allocation3 + $0xb8] sm:$0xff] %v2934
      %2967 = vst [vmem:[#allocation3 + $0xc0] sm:$0xff] %v2935
      %2968 = vst [vmem:[#allocation3 + $0xc8] sm:$0xff] %v2936
      %2969 = vst [vmem:[#allocation3 + $0xd0] sm:$0xff] %v2937
      %2970 = vst [vmem:[#allocation3 + $0xd8] sm:$0xff] %v2938
      %2971 = vst [vmem:[#allocation3 + $0xe0] sm:$0xff] %v2939
      %2972 = vst [vmem:[#allocation3 + $0xe8] sm:$0xff] %v2940
      %2973 = vst [vmem:[#allocation3 + $0xf0] sm:$0xff] %v2941
      %2974 = vst [vmem:[#allocation3 + $0xf8] sm:$0xff] %v2942
      %v2975 = vld [vmem:[%s152] sm:$0xf]
      %v2976 = vld [vmem:[%s152 + $0x4] sm:$0xf]
      %v2977 = vld [vmem:[%s152 + $0x8] sm:$0x1]
      %v2978 = vld [vmem:[%s152 + $0xc] sm:$0xf]
      %v2979 = vld [vmem:[%s152 + $0x10] sm:$0xf]
      %v2980 = vld [vmem:[%s152 + $0x14] sm:$0x1]
      %v2981 = vld [vmem:[%s152 + $0x18] sm:$0xf]
      %v2982 = vld [vmem:[%s152 + $0x1c] sm:$0xf]
      %v2983 = vld [vmem:[%s152 + $0x20] sm:$0x1]
      %v2984 = vld [vmem:[%s152 + $0x24] sm:$0xf]
      %v2985 = vld [vmem:[%s152 + $0x28] sm:$0xf]
      %v2986 = vld [vmem:[%s152 + $0x2c] sm:$0x1]
      %v2987 = vld [vmem:[%s152 + $0x30] sm:$0xf]
      %v2988 = vld [vmem:[%s152 + $0x34] sm:$0xf]
      %v2989 = vld [vmem:[%s152 + $0x38] sm:$0x1]
      %v2990 = vld [vmem:[%s152 + $0x3c] sm:$0xf]
      %v2991 = vld [vmem:[%s152 + $0x40] sm:$0xf]
      %v2992 = vld [vmem:[%s152 + $0x44] sm:$0x1]
      %v2993 = vld [vmem:[%s152 + $0x48] sm:$0xf]
      %v2994 = vld [vmem:[%s152 + $0x4c] sm:$0xf]
      %v2995 = vld [vmem:[%s152 + $0x50] sm:$0x1]
      %v2996 = vld [vmem:[%s152 + $0x54] sm:$0xf]
      %v2997 = vld [vmem:[%s152 + $0x58] sm:$0xf]
      %v2998 = vld [vmem:[%s152 + $0x5c] sm:$0x1]
      %v2999 = vld [vmem:[%s152 + $0x60] sm:$0xf]
      %v3000 = vld [vmem:[%s152 + $0x64] sm:$0xf]
      %v3001 = vld [vmem:[%s152 + $0x68] sm:$0x1]
      %v3002 = vld [vmem:[%s152 + $0x6c] sm:$0xf]
      %v3003 = vld [vmem:[%s152 + $0x70] sm:$0xf]
      %v3004 = vld [vmem:[%s152 + $0x74] sm:$0x1]
      %v3005 = vld [vmem:[%s152 + $0x78] sm:$0xf]
      %v3006 = vld [vmem:[%s152 + $0x7c] sm:$0xf]
      %v3007 = vld [vmem:[%s152 + $0x80] sm:$0x1]
      %v3008 = vld [vmem:[%s152 + $0x84] sm:$0xf]
      %v3009 = vld [vmem:[%s152 + $0x88] sm:$0xf]
      %v3010 = vld [vmem:[%s152 + $0x8c] sm:$0x1]
      %v3011 = vld [vmem:[%s152 + $0x90] sm:$0xf]
      %v3012 = vld [vmem:[%s152 + $0x94] sm:$0xf]
      %v3013 = vld [vmem:[%s152 + $0x98] sm:$0x1]
      %v3014 = vld [vmem:[%s152 + $0x9c] sm:$0xf]
      %v3015 = vld [vmem:[%s152 + $0xa0] sm:$0xf]
      %v3016 = vld [vmem:[%s152 + $0xa4] sm:$0x1]
      %v3017 = vld [vmem:[%s152 + $0xa8] sm:$0xf]
      %v3018 = vld [vmem:[%s152 + $0xac] sm:$0xf]
      %v3019 = vld [vmem:[%s152 + $0xb0] sm:$0x1]
      %v3020 = vld [vmem:[%s152 + $0xb4] sm:$0xf]
      %v3021 = vld [vmem:[%s152 + $0xb8] sm:$0xf]
      %v3022 = vld [vmem:[%s152 + $0xbc] sm:$0x1]
      %v3024 = vshrl.u32 %v2975, 16
      %v3026 = vrot.slane %v3024, 4
      %v3027 = vshll.u32 %v2975, 16
      %v3029 = vrot.slane %v3027, 5
      %v3030 = vor.u32 %v3026, %v3029
      %v3031 = vrot.slane %v3030, 4
      %v3033 = vshll.u32 %v2976, 16
      %v3035 = vrot.slane %v3033, 5
      %v3036 = vsel %vm1157, %v3031, %v3035
      %v3037 = vshrl.u32 %v2976, 16
      %v3039 = vrot.slane %v3037, 4
      %v3040 = vor.u32 %v3039, %v3035
      %v3041 = vrot.slane %v3040, 4
      %v3043 = vshll.u32 %v2977, 16
      %v3045 = vrot.slane %v3043, 5
      %v3046 = vsel %vm1157, %v3041, %v3045
      %v3048 = vshrl.u32 %v2978, 16
      %v3050 = vrot.slane %v3048, 4
      %v3051 = vshll.u32 %v2978, 16
      %v3053 = vrot.slane %v3051, 5
      %v3054 = vor.u32 %v3050, %v3053
      %v3055 = vrot.slane %v3054, 4
      %v3057 = vshll.u32 %v2979, 16
      %v3059 = vrot.slane %v3057, 5
      %v3060 = vsel %vm1157, %v3055, %v3059
      %v3061 = vshrl.u32 %v2979, 16
      %v3063 = vrot.slane %v3061, 4
      %v3064 = vor.u32 %v3063, %v3059
      %v3065 = vrot.slane %v3064, 4
      %v3067 = vshll.u32 %v2980, 16
      %v3069 = vrot.slane %v3067, 5
      %v3070 = vsel %vm1157, %v3065, %v3069
      %v3072 = vshrl.u32 %v2981, 16
      %v3074 = vrot.slane %v3072, 4
      %v3075 = vshll.u32 %v2981, 16
      %v3077 = vrot.slane %v3075, 5
      %v3078 = vor.u32 %v3074, %v3077
      %v3079 = vrot.slane %v3078, 4
      %v3081 = vshll.u32 %v2982, 16
      %v3083 = vrot.slane %v3081, 5
      %v3084 = vsel %vm1157, %v3079, %v3083
      %v3085 = vshrl.u32 %v2982, 16
      %v3087 = vrot.slane %v3085, 4
      %v3088 = vor.u32 %v3087, %v3083
      %v3089 = vrot.slane %v3088, 4
      %v3091 = vshll.u32 %v2983, 16
      %v3093 = vrot.slane %v3091, 5
      %v3094 = vsel %vm1157, %v3089, %v3093
      %v3096 = vshrl.u32 %v2984, 16
      %v3098 = vrot.slane %v3096, 4
      %v3099 = vshll.u32 %v2984, 16
      %v3101 = vrot.slane %v3099, 5
      %v3102 = vor.u32 %v3098, %v3101
      %v3103 = vrot.slane %v3102, 4
      %v3105 = vshll.u32 %v2985, 16
      %v3107 = vrot.slane %v3105, 5
      %v3108 = vsel %vm1157, %v3103, %v3107
      %v3109 = vshrl.u32 %v2985, 16
      %v3111 = vrot.slane %v3109, 4
      %v3112 = vor.u32 %v3111, %v3107
      %v3113 = vrot.slane %v3112, 4
      %v3115 = vshll.u32 %v2986, 16
      %v3117 = vrot.slane %v3115, 5
      %v3118 = vsel %vm1157, %v3113, %v3117
      %v3120 = vshrl.u32 %v2987, 16
      %v3122 = vrot.slane %v3120, 4
      %v3123 = vshll.u32 %v2987, 16
      %v3125 = vrot.slane %v3123, 5
      %v3126 = vor.u32 %v3122, %v3125
      %v3127 = vrot.slane %v3126, 4
      %v3129 = vshll.u32 %v2988, 16
      %v3131 = vrot.slane %v3129, 5
      %v3132 = vsel %vm1157, %v3127, %v3131
      %v3133 = vshrl.u32 %v2988, 16
      %v3135 = vrot.slane %v3133, 4
      %v3136 = vor.u32 %v3135, %v3131
      %v3137 = vrot.slane %v3136, 4
      %v3139 = vshll.u32 %v2989, 16
      %v3141 = vrot.slane %v3139, 5
      %v3142 = vsel %vm1157, %v3137, %v3141
      %v3144 = vshrl.u32 %v2990, 16
      %v3146 = vrot.slane %v3144, 4
      %v3147 = vshll.u32 %v2990, 16
      %v3149 = vrot.slane %v3147, 5
      %v3150 = vor.u32 %v3146, %v3149
      %v3151 = vrot.slane %v3150, 4
      %v3153 = vshll.u32 %v2991, 16
      %v3155 = vrot.slane %v3153, 5
      %v3156 = vsel %vm1157, %v3151, %v3155
      %v3157 = vshrl.u32 %v2991, 16
      %v3159 = vrot.slane %v3157, 4
      %v3160 = vor.u32 %v3159, %v3155
      %v3161 = vrot.slane %v3160, 4
      %v3163 = vshll.u32 %v2992, 16
      %v3165 = vrot.slane %v3163, 5
      %v3166 = vsel %vm1157, %v3161, %v3165
      %v3168 = vshrl.u32 %v2993, 16
      %v3170 = vrot.slane %v3168, 4
      %v3171 = vshll.u32 %v2993, 16
      %v3173 = vrot.slane %v3171, 5
      %v3174 = vor.u32 %v3170, %v3173
      %v3175 = vrot.slane %v3174, 4
      %v3177 = vshll.u32 %v2994, 16
      %v3179 = vrot.slane %v3177, 5
      %v3180 = vsel %vm1157, %v3175, %v3179
      %v3181 = vshrl.u32 %v2994, 16
      %v3183 = vrot.slane %v3181, 4
      %v3184 = vor.u32 %v3183, %v3179
      %v3185 = vrot.slane %v3184, 4
      %v3187 = vshll.u32 %v2995, 16
      %v3189 = vrot.slane %v3187, 5
      %v3190 = vsel %vm1157, %v3185, %v3189
      %v3192 = vshrl.u32 %v2996, 16
      %v3194 = vrot.slane %v3192, 4
      %v3195 = vshll.u32 %v2996, 16
      %v3197 = vrot.slane %v3195, 5
      %v3198 = vor.u32 %v3194, %v3197
      %v3199 = vrot.slane %v3198, 4
      %v3201 = vshll.u32 %v2997, 16
      %v3203 = vrot.slane %v3201, 5
      %v3204 = vsel %vm1157, %v3199, %v3203
      %v3205 = vshrl.u32 %v2997, 16
      %v3207 = vrot.slane %v3205, 4
      %v3208 = vor.u32 %v3207, %v3203
      %v3209 = vrot.slane %v3208, 4
      %v3211 = vshll.u32 %v2998, 16
      %v3213 = vrot.slane %v3211, 5
      %v3214 = vsel %vm1157, %v3209, %v3213
      %v3216 = vshrl.u32 %v2999, 16
      %v3218 = vrot.slane %v3216, 4
      %v3219 = vshll.u32 %v2999, 16
      %v3221 = vrot.slane %v3219, 5
      %v3222 = vor.u32 %v3218, %v3221
      %v3223 = vrot.slane %v3222, 4
      %v3225 = vshll.u32 %v3000, 16
      %v3227 = vrot.slane %v3225, 5
      %v3228 = vsel %vm1157, %v3223, %v3227
      %v3229 = vshrl.u32 %v3000, 16
      %v3231 = vrot.slane %v3229, 4
      %v3232 = vor.u32 %v3231, %v3227
      %v3233 = vrot.slane %v3232, 4
      %v3235 = vshll.u32 %v3001, 16
      %v3237 = vrot.slane %v3235, 5
      %v3238 = vsel %vm1157, %v3233, %v3237
      %v3240 = vshrl.u32 %v3002, 16
      %v3242 = vrot.slane %v3240, 4
      %v3243 = vshll.u32 %v3002, 16
      %v3245 = vrot.slane %v3243, 5
      %v3246 = vor.u32 %v3242, %v3245
      %v3247 = vrot.slane %v3246, 4
      %v3249 = vshll.u32 %v3003, 16
      %v3251 = vrot.slane %v3249, 5
      %v3252 = vsel %vm1157, %v3247, %v3251
      %v3253 = vshrl.u32 %v3003, 16
      %v3255 = vrot.slane %v3253, 4
      %v3256 = vor.u32 %v3255, %v3251
      %v3257 = vrot.slane %v3256, 4
      %v3259 = vshll.u32 %v3004, 16
      %v3261 = vrot.slane %v3259, 5
      %v3262 = vsel %vm1157, %v3257, %v3261
      %v3264 = vshrl.u32 %v3005, 16
      %v3266 = vrot.slane %v3264, 4
      %v3267 = vshll.u32 %v3005, 16
      %v3269 = vrot.slane %v3267, 5
      %v3270 = vor.u32 %v3266, %v3269
      %v3271 = vrot.slane %v3270, 4
      %v3273 = vshll.u32 %v3006, 16
      %v3275 = vrot.slane %v3273, 5
      %v3276 = vsel %vm1157, %v3271, %v3275
      %v3277 = vshrl.u32 %v3006, 16
      %v3279 = vrot.slane %v3277, 4
      %v3280 = vor.u32 %v3279, %v3275
      %v3281 = vrot.slane %v3280, 4
      %v3283 = vshll.u32 %v3007, 16
      %v3285 = vrot.slane %v3283, 5
      %v3286 = vsel %vm1157, %v3281, %v3285
      %v3288 = vshrl.u32 %v3008, 16
      %v3290 = vrot.slane %v3288, 4
      %v3291 = vshll.u32 %v3008, 16
      %v3293 = vrot.slane %v3291, 5
      %v3294 = vor.u32 %v3290, %v3293
      %v3295 = vrot.slane %v3294, 4
      %v3297 = vshll.u32 %v3009, 16
      %v3299 = vrot.slane %v3297, 5
      %v3300 = vsel %vm1157, %v3295, %v3299
      %v3301 = vshrl.u32 %v3009, 16
      %v3303 = vrot.slane %v3301, 4
      %v3304 = vor.u32 %v3303, %v3299
      %v3305 = vrot.slane %v3304, 4
      %v3307 = vshll.u32 %v3010, 16
      %v3309 = vrot.slane %v3307, 5
      %v3310 = vsel %vm1157, %v3305, %v3309
      %v3312 = vshrl.u32 %v3011, 16
      %v3314 = vrot.slane %v3312, 4
      %v3315 = vshll.u32 %v3011, 16
      %v3317 = vrot.slane %v3315, 5
      %v3318 = vor.u32 %v3314, %v3317
      %v3319 = vrot.slane %v3318, 4
      %v3321 = vshll.u32 %v3012, 16
      %v3323 = vrot.slane %v3321, 5
      %v3324 = vsel %vm1157, %v3319, %v3323
      %v3325 = vshrl.u32 %v3012, 16
      %v3327 = vrot.slane %v3325, 4
      %v3328 = vor.u32 %v3327, %v3323
      %v3329 = vrot.slane %v3328, 4
      %v3331 = vshll.u32 %v3013, 16
      %v3333 = vrot.slane %v3331, 5
      %v3334 = vsel %vm1157, %v3329, %v3333
      %v3336 = vshrl.u32 %v3014, 16
      %v3338 = vrot.slane %v3336, 4
      %v3339 = vshll.u32 %v3014, 16
      %v3341 = vrot.slane %v3339, 5
      %v3342 = vor.u32 %v3338, %v3341
      %v3343 = vrot.slane %v3342, 4
      %v3345 = vshll.u32 %v3015, 16
      %v3347 = vrot.slane %v3345, 5
      %v3348 = vsel %vm1157, %v3343, %v3347
      %v3349 = vshrl.u32 %v3015, 16
      %v3351 = vrot.slane %v3349, 4
      %v3352 = vor.u32 %v3351, %v3347
      %v3353 = vrot.slane %v3352, 4
      %v3355 = vshll.u32 %v3016, 16
      %v3357 = vrot.slane %v3355, 5
      %v3358 = vsel %vm1157, %v3353, %v3357
      %v3360 = vshrl.u32 %v3017, 16
      %v3362 = vrot.slane %v3360, 4
      %v3363 = vshll.u32 %v3017, 16
      %v3365 = vrot.slane %v3363, 5
      %v3366 = vor.u32 %v3362, %v3365
      %v3367 = vrot.slane %v3366, 4
      %v3369 = vshll.u32 %v3018, 16
      %v3371 = vrot.slane %v3369, 5
      %v3372 = vsel %vm1157, %v3367, %v3371
      %v3373 = vshrl.u32 %v3018, 16
      %v3375 = vrot.slane %v3373, 4
      %v3376 = vor.u32 %v3375, %v3371
      %v3377 = vrot.slane %v3376, 4
      %v3379 = vshll.u32 %v3019, 16
      %v3381 = vrot.slane %v3379, 5
      %v3382 = vsel %vm1157, %v3377, %v3381
      %v3384 = vshrl.u32 %v3020, 16
      %v3386 = vrot.slane %v3384, 4
      %v3387 = vshll.u32 %v3020, 16
      %v3389 = vrot.slane %v3387, 5
      %v3390 = vor.u32 %v3386, %v3389
      %v3391 = vrot.slane %v3390, 4
      %v3393 = vshll.u32 %v3021, 16
      %v3395 = vrot.slane %v3393, 5
      %v3396 = vsel %vm1157, %v3391, %v3395
      %v3397 = vshrl.u32 %v3021, 16
      %v3399 = vrot.slane %v3397, 4
      %v3400 = vor.u32 %v3399, %v3395
      %v3401 = vrot.slane %v3400, 4
      %v3403 = vshll.u32 %v3022, 16
      %v3405 = vrot.slane %v3403, 5
      %v3406 = vsel %vm1157, %v3401, %v3405
      %s3407 = scalar_lea.vmem %s1, 256
      %v3408 = vld [vmem:[%s3407] sm:$0xf]
      %v3409 = vld [vmem:[%s3407 + $0x4] sm:$0xf]
      %v3410 = vld [vmem:[%s3407 + $0x8] sm:$0xf]
      %v3411 = vld [vmem:[%s3407 + $0xc] sm:$0xf]
      %v3412 = vld [vmem:[%s3407 + $0x10] sm:$0xf]
      %v3413 = vld [vmem:[%s3407 + $0x14] sm:$0xf]
      %v3414 = vld [vmem:[%s3407 + $0x18] sm:$0xf]
      %v3415 = vld [vmem:[%s3407 + $0x1c] sm:$0xf]
      %v3416 = vld [vmem:[%s3407 + $0x20] sm:$0xf]
      %v3417 = vld [vmem:[%s3407 + $0x24] sm:$0xf]
      %v3418 = vld [vmem:[%s3407 + $0x28] sm:$0xf]
      %v3419 = vld [vmem:[%s3407 + $0x2c] sm:$0xf]
      %v3420 = vld [vmem:[%s3407 + $0x30] sm:$0xf]
      %v3421 = vld [vmem:[%s3407 + $0x34] sm:$0xf]
      %v3422 = vld [vmem:[%s3407 + $0x38] sm:$0xf]
      %v3423 = vld [vmem:[%s3407 + $0x3c] sm:$0xf]
      %v3424 = vunpack.c.l.b16 %v3036
      %v3425 = vunpack.c.l.b16 %v3046
      %v3426 = vunpack.c.l.b16 %v3060
      %v3427 = vunpack.c.l.b16 %v3070
      %v3428 = vunpack.c.l.b16 %v3084
      %v3429 = vunpack.c.l.b16 %v3094
      %v3430 = vunpack.c.l.b16 %v3108
      %v3431 = vunpack.c.l.b16 %v3118
      %v3432 = vunpack.c.l.b16 %v3132
      %v3433 = vunpack.c.l.b16 %v3142
      %v3434 = vunpack.c.l.b16 %v3156
      %v3435 = vunpack.c.l.b16 %v3166
      %v3436 = vunpack.c.l.b16 %v3180
      %v3437 = vunpack.c.l.b16 %v3190
      %v3438 = vunpack.c.l.b16 %v3204
      %v3439 = vunpack.c.l.b16 %v3214
      %v3440 = vunpack.c.l.b16 %v3228
      %v3441 = vunpack.c.l.b16 %v3238
      %v3442 = vunpack.c.l.b16 %v3252
      %v3443 = vunpack.c.l.b16 %v3262
      %v3444 = vunpack.c.l.b16 %v3276
      %v3445 = vunpack.c.l.b16 %v3286
      %v3446 = vunpack.c.l.b16 %v3300
      %v3447 = vunpack.c.l.b16 %v3310
      %v3448 = vunpack.c.l.b16 %v3324
      %v3449 = vunpack.c.l.b16 %v3334
      %v3450 = vunpack.c.l.b16 %v3348
      %v3451 = vunpack.c.l.b16 %v3358
      %v3452 = vunpack.c.l.b16 %v3372
      %v3453 = vunpack.c.l.b16 %v3382
      %v3454 = vunpack.c.l.b16 %v3396
      %v3455 = vunpack.c.l.b16 %v3406
      %v3456 = vpack.c.b16 %v3425, %v3424
      %v3457 = vpack.c.b16 %v3427, %v3426
      %v3458 = vpack.c.b16 %v3429, %v3428
      %v3459 = vpack.c.b16 %v3431, %v3430
      %v3460 = vpack.c.b16 %v3433, %v3432
      %v3461 = vpack.c.b16 %v3435, %v3434
      %v3462 = vpack.c.b16 %v3437, %v3436
      %v3463 = vpack.c.b16 %v3439, %v3438
      %v3464 = vpack.c.b16 %v3441, %v3440
      %v3465 = vpack.c.b16 %v3443, %v3442
      %v3466 = vpack.c.b16 %v3445, %v3444
      %v3467 = vpack.c.b16 %v3447, %v3446
      %v3468 = vpack.c.b16 %v3449, %v3448
      %v3469 = vpack.c.b16 %v3451, %v3450
      %v3470 = vpack.c.b16 %v3453, %v3452
      %v3471 = vpack.c.b16 %v3455, %v3454
      %v3504 = vunpack.c.l.b16 %v3408
      %v3505 = vunpack.c.l.b16 %v3409
      %v3506 = vunpack.c.l.b16 %v3410
      %v3507 = vunpack.c.l.b16 %v3411
      %v3508 = vunpack.c.l.b16 %v3412
      %v3509 = vunpack.c.l.b16 %v3413
      %v3510 = vunpack.c.l.b16 %v3414
      %v3511 = vunpack.c.l.b16 %v3415
      %v3512 = vunpack.c.l.b16 %v3416
      %v3513 = vunpack.c.l.b16 %v3417
      %v3514 = vunpack.c.l.b16 %v3418
      %v3515 = vunpack.c.l.b16 %v3419
      %v3516 = vunpack.c.l.b16 %v3420
      %v3517 = vunpack.c.l.b16 %v3421
      %v3518 = vunpack.c.l.b16 %v3422
      %v3519 = vunpack.c.l.b16 %v3423
      %v3520 = vpack.c.b16 %v3505, %v3504
      %v3521 = vpack.c.b16 %v3507, %v3506
      %v3522 = vpack.c.b16 %v3509, %v3508
      %v3523 = vpack.c.b16 %v3511, %v3510
      %v3524 = vpack.c.b16 %v3513, %v3512
      %v3525 = vpack.c.b16 %v3515, %v3514
      %v3526 = vpack.c.b16 %v3517, %v3516
      %v3527 = vpack.c.b16 %v3519, %v3518
      %3536 = vmatprep.subr.bf16.mxu0 0
      %3537 = vmatpush1.bf16.msra.mxu0 %v3520
      %3538 = vmatprep.subr.bf16.mxu0 0
      %3539 = vmatpush1.bf16.msra.mxu0 %v3521
      %3540 = vmatprep.subr.bf16.mxu0 0
      %3541 = vmatpush1.bf16.msra.mxu0 %v3522
      %3542 = vmatprep.subr.bf16.mxu0 0
      %3543 = vmatpush1.bf16.msra.mxu0 %v3523
      %3544 = vmatprep.subr.bf16.mxu0 0
      %3545 = vmatpush1.bf16.msra.mxu0 %v3524
      %3546 = vmatprep.subr.bf16.mxu0 0
      %3547 = vmatpush1.bf16.msra.mxu0 %v3525
      %3548 = vmatprep.subr.bf16.mxu0 0
      %3549 = vmatpush1.bf16.msra.mxu0 %v3526
      %3550 = vmatprep.subr.bf16.mxu0 0
      %3551 = vmatpush1.bf16.msra.mxu0 %v3527
      %3552 = vmatprep.subr.bf16.mxu0 0
      %3553 = vmatpush1.bf16.msra.mxu0 0
      %3554 = vmatprep.subr.bf16.mxu0 0
      %3555 = vmatpush1.bf16.msra.mxu0 0
      %3556 = vmatprep.subr.bf16.mxu0 0
      %3557 = vmatpush1.bf16.msra.mxu0 0
      %3558 = vmatprep.subr.bf16.mxu0 0
      %3559 = vmatpush1.bf16.msra.mxu0 0
      %3560 = vmatprep.subr.bf16.mxu0 0
      %3561 = vmatpush1.bf16.msra.mxu0 0
      %3562 = vmatprep.subr.bf16.mxu0 0
      %3563 = vmatpush1.bf16.msra.mxu0 0
      %3564 = vmatprep.subr.bf16.mxu0 0
      %3565 = vmatpush1.bf16.msra.mxu0 0
      %3566 = vmatprep.subr.bf16.mxu0 0
      %3567 = vmatpush1.bf16.msra.mxu0 0
      %3568 = vmatprep.mubr.bf16.mxu0 0
      %3569 = vmatmul.mubr.bf16.gmra.mrb[0].mxu0 %v3456
      %v3570 = vpop.f32.mrb[0].mxu0
      %v3571 = vadd.f32 0.0, %v3570
      %v3572 = vpop.f32.mrb[0].mxu0
      %v3573 = vpop.f32.mrb[0].mxu0
      %v3574 = vadd.f32 0.0, %v3573
      %v3575 = vpop.f32.mrb[0].mxu0
      %3576 = vmatprep.mubr.bf16.mxu0 0
      %3577 = vmatmul.mubr.bf16.gmra.mrb[0].mxu0 %v3457
      %v3578 = vpop.f32.mrb[0].mxu0
      %v3579 = vadd.f32 0.0, %v3578
      %v3580 = vpop.f32.mrb[0].mxu0
      %v3581 = vpop.f32.mrb[0].mxu0
      %v3582 = vadd.f32 0.0, %v3581
      %v3583 = vpop.f32.mrb[0].mxu0
      %3584 = vmatprep.mubr.bf16.mxu0 0
      %3585 = vmatmul.mubr.bf16.gmra.mrb[0].mxu0 %v3458
      %v3586 = vpop.f32.mrb[0].mxu0
      %v3587 = vadd.f32 0.0, %v3586
      %v3588 = vpop.f32.mrb[0].mxu0
      %v3589 = vpop.f32.mrb[0].mxu0
      %v3590 = vadd.f32 0.0, %v3589
      %v3591 = vpop.f32.mrb[0].mxu0
      %3592 = vmatprep.mubr.bf16.mxu0 0
      %3593 = vmatmul.mubr.bf16.gmra.mrb[0].mxu0 %v3459
      %v3594 = vpop.f32.mrb[0].mxu0
      %v3595 = vadd.f32 0.0, %v3594
      %v3596 = vpop.f32.mrb[0].mxu0
      %v3597 = vpop.f32.mrb[0].mxu0
      %v3598 = vadd.f32 0.0, %v3597
      %v3599 = vpop.f32.mrb[0].mxu0
      %3600 = vmatprep.mubr.bf16.mxu0 0
      %3601 = vmatmul.mubr.bf16.gmra.mrb[0].mxu0 %v3460
      %v3602 = vpop.f32.mrb[0].mxu0
      %v3603 = vadd.f32 0.0, %v3602
      %v3604 = vpop.f32.mrb[0].mxu0
      %v3605 = vpop.f32.mrb[0].mxu0
      %v3606 = vadd.f32 0.0, %v3605
      %v3607 = vpop.f32.mrb[0].mxu0
      %3608 = vmatprep.mubr.bf16.mxu0 0
      %3609 = vmatmul.mubr.bf16.gmra.mrb[0].mxu0 %v3461
      %v3610 = vpop.f32.mrb[0].mxu0
      %v3611 = vadd.f32 0.0, %v3610
      %v3612 = vpop.f32.mrb[0].mxu0
      %v3613 = vpop.f32.mrb[0].mxu0
      %v3614 = vadd.f32 0.0, %v3613
      %v3615 = vpop.f32.mrb[0].mxu0
      %3616 = vmatprep.mubr.bf16.mxu0 0
      %3617 = vmatmul.mubr.bf16.gmra.mrb[0].mxu0 %v3462
      %v3618 = vpop.f32.mrb[0].mxu0
      %v3619 = vadd.f32 0.0, %v3618
      %v3620 = vpop.f32.mrb[0].mxu0
      %v3621 = vpop.f32.mrb[0].mxu0
      %v3622 = vadd.f32 0.0, %v3621
      %v3623 = vpop.f32.mrb[0].mxu0
      %3624 = vmatprep.mubr.bf16.mxu0 0
      %3625 = vmatmul.mubr.bf16.gmra.mrb[0].mxu0 %v3463
      %v3626 = vpop.f32.mrb[0].mxu0
      %v3627 = vadd.f32 0.0, %v3626
      %v3628 = vpop.f32.mrb[0].mxu0
      %v3629 = vpop.f32.mrb[0].mxu0
      %v3630 = vadd.f32 0.0, %v3629
      %v3631 = vpop.f32.mrb[0].mxu0
      %3632 = vmatprep.mubr.bf16.mxu0 0
      %3633 = vmatmul.mubr.bf16.gmra.mrb[0].mxu0 %v3464
      %v3634 = vpop.f32.mrb[0].mxu0
      %v3635 = vadd.f32 0.0, %v3634
      %v3636 = vpop.f32.mrb[0].mxu0
      %v3637 = vpop.f32.mrb[0].mxu0
      %v3638 = vadd.f32 0.0, %v3637
      %v3639 = vpop.f32.mrb[0].mxu0
      %3640 = vmatprep.mubr.bf16.mxu0 0
      %3641 = vmatmul.mubr.bf16.gmra.mrb[0].mxu0 %v3465
      %v3642 = vpop.f32.mrb[0].mxu0
      %v3643 = vadd.f32 0.0, %v3642
      %v3644 = vpop.f32.mrb[0].mxu0
      %v3645 = vpop.f32.mrb[0].mxu0
      %v3646 = vadd.f32 0.0, %v3645
      %v3647 = vpop.f32.mrb[0].mxu0
      %3648 = vmatprep.mubr.bf16.mxu0 0
      %3649 = vmatmul.mubr.bf16.gmra.mrb[0].mxu0 %v3466
      %v3650 = vpop.f32.mrb[0].mxu0
      %v3651 = vadd.f32 0.0, %v3650
      %v3652 = vpop.f32.mrb[0].mxu0
      %v3653 = vpop.f32.mrb[0].mxu0
      %v3654 = vadd.f32 0.0, %v3653
      %v3655 = vpop.f32.mrb[0].mxu0
      %3656 = vmatprep.mubr.bf16.mxu0 0
      %3657 = vmatmul.mubr.bf16.gmra.mrb[0].mxu0 %v3467
      %v3658 = vpop.f32.mrb[0].mxu0
      %v3659 = vadd.f32 0.0, %v3658
      %v3660 = vpop.f32.mrb[0].mxu0
      %v3661 = vpop.f32.mrb[0].mxu0
      %v3662 = vadd.f32 0.0, %v3661
      %v3663 = vpop.f32.mrb[0].mxu0
      %3664 = vmatprep.mubr.bf16.mxu0 0
      %3665 = vmatmul.mubr.bf16.gmra.mrb[0].mxu0 %v3468
      %v3666 = vpop.f32.mrb[0].mxu0
      %v3667 = vadd.f32 0.0, %v3666
      %v3668 = vpop.f32.mrb[0].mxu0
      %v3669 = vpop.f32.mrb[0].mxu0
      %v3670 = vadd.f32 0.0, %v3669
      %v3671 = vpop.f32.mrb[0].mxu0
      %3672 = vmatprep.mubr.bf16.mxu0 0
      %3673 = vmatmul.mubr.bf16.gmra.mrb[0].mxu0 %v3469
      %v3674 = vpop.f32.mrb[0].mxu0
      %v3675 = vadd.f32 0.0, %v3674
      %v3676 = vpop.f32.mrb[0].mxu0
      %v3677 = vpop.f32.mrb[0].mxu0
      %v3678 = vadd.f32 0.0, %v3677
      %v3679 = vpop.f32.mrb[0].mxu0
      %3680 = vmatprep.mubr.bf16.mxu0 0
      %3681 = vmatmul.mubr.bf16.gmra.mrb[0].mxu0 %v3470
      %v3682 = vpop.f32.mrb[0].mxu0
      %v3683 = vadd.f32 0.0, %v3682
      %v3684 = vpop.f32.mrb[0].mxu0
      %v3685 = vpop.f32.mrb[0].mxu0
      %v3686 = vadd.f32 0.0, %v3685
      %v3687 = vpop.f32.mrb[0].mxu0
      %3688 = vmatprep.mubr.bf16.mxu0 0
      %3689 = vmatmul.mubr.bf16.gmra.mrb[0].mxu0 %v3471
      %v3690 = vpop.f32.mrb[0].mxu0
      %v3691 = vadd.f32 0.0, %v3690
      %v3692 = vpop.f32.mrb[0].mxu0
      %v3693 = vpop.f32.mrb[0].mxu0
      %v3694 = vadd.f32 0.0, %v3693
      %v3695 = vpop.f32.mrb[0].mxu0
      %3696 = vdwg.mxu0
      %v3697 = vld [vmem:[#allocation3] sm:$0xff]
      %v3698 = vld [vmem:[#allocation3 + $0x8] sm:$0xff]
      %v3699 = vld [vmem:[#allocation3 + $0x10] sm:$0xff]
      %v3700 = vld [vmem:[#allocation3 + $0x18] sm:$0xff]
      %v3701 = vld [vmem:[#allocation3 + $0x20] sm:$0xff]
      %v3702 = vld [vmem:[#allocation3 + $0x28] sm:$0xff]
      %v3703 = vld [vmem:[#allocation3 + $0x30] sm:$0xff]
      %v3704 = vld [vmem:[#allocation3 + $0x38] sm:$0xff]
      %v3705 = vld [vmem:[#allocation3 + $0x40] sm:$0xff]
      %v3706 = vld [vmem:[#allocation3 + $0x48] sm:$0xff]
      %v3707 = vld [vmem:[#allocation3 + $0x50] sm:$0xff]
      %v3708 = vld [vmem:[#allocation3 + $0x58] sm:$0xff]
      %v3709 = vld [vmem:[#allocation3 + $0x60] sm:$0xff]
      %v3710 = vld [vmem:[#allocation3 + $0x68] sm:$0xff]
      %v3711 = vld [vmem:[#allocation3 + $0x70] sm:$0xff]
      %v3712 = vld [vmem:[#allocation3 + $0x78] sm:$0xff]
      %v3713 = vld [vmem:[#allocation3 + $0x80] sm:$0xff]
      %v3714 = vld [vmem:[#allocation3 + $0x88] sm:$0xff]
      %v3715 = vld [vmem:[#allocation3 + $0x90] sm:$0xff]
      %v3716 = vld [vmem:[#allocation3 + $0x98] sm:$0xff]
      %v3717 = vld [vmem:[#allocation3 + $0xa0] sm:$0xff]
      %v3718 = vld [vmem:[#allocation3 + $0xa8] sm:$0xff]
      %v3719 = vld [vmem:[#allocation3 + $0xb0] sm:$0xff]
      %v3720 = vld [vmem:[#allocation3 + $0xb8] sm:$0xff]
      %v3721 = vld [vmem:[#allocation3 + $0xc0] sm:$0xff]
      %v3722 = vld [vmem:[#allocation3 + $0xc8] sm:$0xff]
      %v3723 = vld [vmem:[#allocation3 + $0xd0] sm:$0xff]
      %v3724 = vld [vmem:[#allocation3 + $0xd8] sm:$0xff]
      %v3725 = vld [vmem:[#allocation3 + $0xe0] sm:$0xff]
      %v3726 = vld [vmem:[#allocation3 + $0xe8] sm:$0xff]
      %v3727 = vld [vmem:[#allocation3 + $0xf0] sm:$0xff]
      %v3728 = vld [vmem:[#allocation3 + $0xf8] sm:$0xff]
      %v3729 = vadd.f32 %v3697, %v3571
      %v3730 = vadd.f32 %v3698, %v3574
      %v3731 = vadd.f32 %v3699, %v3579
      %v3732 = vadd.f32 %v3700, %v3582
      %v3733 = vadd.f32 %v3701, %v3587
      %v3734 = vadd.f32 %v3702, %v3590
      %v3735 = vadd.f32 %v3703, %v3595
      %v3736 = vadd.f32 %v3704, %v3598
      %v3737 = vadd.f32 %v3705, %v3603
      %v3738 = vadd.f32 %v3706, %v3606
      %v3739 = vadd.f32 %v3707, %v3611
      %v3740 = vadd.f32 %v3708, %v3614
      %v3741 = vadd.f32 %v3709, %v3619
      %v3742 = vadd.f32 %v3710, %v3622
      %v3743 = vadd.f32 %v3711, %v3627
      %v3744 = vadd.f32 %v3712, %v3630
      %v3745 = vadd.f32 %v3713, %v3635
      %v3746 = vadd.f32 %v3714, %v3638
      %v3747 = vadd.f32 %v3715, %v3643
      %v3748 = vadd.f32 %v3716, %v3646
      %v3749 = vadd.f32 %v3717, %v3651
      %v3750 = vadd.f32 %v3718, %v3654
      %v3751 = vadd.f32 %v3719, %v3659
      %v3752 = vadd.f32 %v3720, %v3662
      %v3753 = vadd.f32 %v3721, %v3667
      %v3754 = vadd.f32 %v3722, %v3670
      %v3755 = vadd.f32 %v3723, %v3675
      %v3756 = vadd.f32 %v3724, %v3678
      %v3757 = vadd.f32 %v3725, %v3683
      %v3758 = vadd.f32 %v3726, %v3686
      %v3759 = vadd.f32 %v3727, %v3691
      %v3760 = vadd.f32 %v3728, %v3694
      %3761 = vst [vmem:[#allocation3] sm:$0xff] %v3729
      %3762 = vst [vmem:[#allocation3 + $0x8] sm:$0xff] %v3730
      %3763 = vst [vmem:[#allocation3 + $0x10] sm:$0xff] %v3731
      %3764 = vst [vmem:[#allocation3 + $0x18] sm:$0xff] %v3732
      %3765 = vst [vmem:[#allocation3 + $0x20] sm:$0xff] %v3733
      %3766 = vst [vmem:[#allocation3 + $0x28] sm:$0xff] %v3734
      %3767 = vst [vmem:[#allocation3 + $0x30] sm:$0xff] %v3735
      %3768 = vst [vmem:[#allocation3 + $0x38] sm:$0xff] %v3736
      %3769 = vst [vmem:[#allocation3 + $0x40] sm:$0xff] %v3737
      %3770 = vst [vmem:[#allocation3 + $0x48] sm:$0xff] %v3738
      %3771 = vst [vmem:[#allocation3 + $0x50] sm:$0xff] %v3739
      %3772 = vst [vmem:[#allocation3 + $0x58] sm:$0xff] %v3740
      %3773 = vst [vmem:[#allocation3 + $0x60] sm:$0xff] %v3741
      %3774 = vst [vmem:[#allocation3 + $0x68] sm:$0xff] %v3742
      %3775 = vst [vmem:[#allocation3 + $0x70] sm:$0xff] %v3743
      %3776 = vst [vmem:[#allocation3 + $0x78] sm:$0xff] %v3744
      %3777 = vst [vmem:[#allocation3 + $0x80] sm:$0xff] %v3745
      %3778 = vst [vmem:[#allocation3 + $0x88] sm:$0xff] %v3746
      %3779 = vst [vmem:[#allocation3 + $0x90] sm:$0xff] %v3747
      %3780 = vst [vmem:[#allocation3 + $0x98] sm:$0xff] %v3748
      %3781 = vst [vmem:[#allocation3 + $0xa0] sm:$0xff] %v3749
      %3782 = vst [vmem:[#allocation3 + $0xa8] sm:$0xff] %v3750
      %3783 = vst [vmem:[#allocation3 + $0xb0] sm:$0xff] %v3751
      %3784 = vst [vmem:[#allocation3 + $0xb8] sm:$0xff] %v3752
      %3785 = vst [vmem:[#allocation3 + $0xc0] sm:$0xff] %v3753
      %3786 = vst [vmem:[#allocation3 + $0xc8] sm:$0xff] %v3754
      %3787 = vst [vmem:[#allocation3 + $0xd0] sm:$0xff] %v3755
      %3788 = vst [vmem:[#allocation3 + $0xd8] sm:$0xff] %v3756
      %3789 = vst [vmem:[#allocation3 + $0xe0] sm:$0xff] %v3757
      %3790 = vst [vmem:[#allocation3 + $0xe8] sm:$0xff] %v3758
      %3791 = vst [vmem:[#allocation3 + $0xf0] sm:$0xff] %v3759
      %3792 = vst [vmem:[#allocation3 + $0xf8] sm:$0xff] %v3760
      %v3793 = vld [vmem:[%s152] sm:$0xe]
      %v3794 = vld [vmem:[%s152 + $0x4] sm:$0xf]
      %v3795 = vld [vmem:[%s152 + $0x8] sm:$0x1]
      %v3796 = vld [vmem:[%s152 + $0xc] sm:$0xe]
      %v3797 = vld [vmem:[%s152 + $0x10] sm:$0xf]
      %v3798 = vld [vmem:[%s152 + $0x14] sm:$0x1]
      %v3799 = vld [vmem:[%s152 + $0x18] sm:$0xe]
      %v3800 = vld [vmem:[%s152 + $0x1c] sm:$0xf]
      %v3801 = vld [vmem:[%s152 + $0x20] sm:$0x1]
      %v3802 = vld [vmem:[%s152 + $0x24] sm:$0xe]
      %v3803 = vld [vmem:[%s152 + $0x28] sm:$0xf]
      %v3804 = vld [vmem:[%s152 + $0x2c] sm:$0x1]
      %v3805 = vld [vmem:[%s152 + $0x30] sm:$0xe]
      %v3806 = vld [vmem:[%s152 + $0x34] sm:$0xf]
      %v3807 = vld [vmem:[%s152 + $0x38] sm:$0x1]
      %v3808 = vld [vmem:[%s152 + $0x3c] sm:$0xe]
      %v3809 = vld [vmem:[%s152 + $0x40] sm:$0xf]
      %v3810 = vld [vmem:[%s152 + $0x44] sm:$0x1]
      %v3811 = vld [vmem:[%s152 + $0x48] sm:$0xe]
      %v3812 = vld [vmem:[%s152 + $0x4c] sm:$0xf]
      %v3813 = vld [vmem:[%s152 + $0x50] sm:$0x1]
      %v3814 = vld [vmem:[%s152 + $0x54] sm:$0xe]
      %v3815 = vld [vmem:[%s152 + $0x58] sm:$0xf]
      %v3816 = vld [vmem:[%s152 + $0x5c] sm:$0x1]
      %v3817 = vld [vmem:[%s152 + $0x60] sm:$0xe]
      %v3818 = vld [vmem:[%s152 + $0x64] sm:$0xf]
      %v3819 = vld [vmem:[%s152 + $0x68] sm:$0x1]
      %v3820 = vld [vmem:[%s152 + $0x6c] sm:$0xe]
      %v3821 = vld [vmem:[%s152 + $0x70] sm:$0xf]
      %v3822 = vld [vmem:[%s152 + $0x74] sm:$0x1]
      %v3823 = vld [vmem:[%s152 + $0x78] sm:$0xe]
      %v3824 = vld [vmem:[%s152 + $0x7c] sm:$0xf]
      %v3825 = vld [vmem:[%s152 + $0x80] sm:$0x1]
      %v3826 = vld [vmem:[%s152 + $0x84] sm:$0xe]
      %v3827 = vld [vmem:[%s152 + $0x88] sm:$0xf]
      %v3828 = vld [vmem:[%s152 + $0x8c] sm:$0x1]
      %v3829 = vld [vmem:[%s152 + $0x90] sm:$0xe]
      %v3830 = vld [vmem:[%s152 + $0x94] sm:$0xf]
      %v3831 = vld [vmem:[%s152 + $0x98] sm:$0x1]
      %v3832 = vld [vmem:[%s152 + $0x9c] sm:$0xe]
      %v3833 = vld [vmem:[%s152 + $0xa0] sm:$0xf]
      %v3834 = vld [vmem:[%s152 + $0xa4] sm:$0x1]
      %v3835 = vld [vmem:[%s152 + $0xa8] sm:$0xe]
      %v3836 = vld [vmem:[%s152 + $0xac] sm:$0xf]
      %v3837 = vld [vmem:[%s152 + $0xb0] sm:$0x1]
      %v3838 = vld [vmem:[%s152 + $0xb4] sm:$0xe]
      %v3839 = vld [vmem:[%s152 + $0xb8] sm:$0xf]
      %v3840 = vld [vmem:[%s152 + $0xbc] sm:$0x1]
      %v3889 = vrot.slane %v3793, 5
      %v3890 = vrot.slane %v3889, 4
      %v3891 = vrot.slane %v3794, 5
      %v3892 = vsel %vm2026, %v3890, %v3891
      %v3893 = vrot.slane %v3891, 4
      %v3894 = vrot.slane %v3795, 5
      %v3895 = vsel %vm2026, %v3893, %v3894
      %v3896 = vrot.slane %v3796, 5
      %v3897 = vrot.slane %v3896, 4
      %v3898 = vrot.slane %v3797, 5
      %v3899 = vsel %vm2026, %v3897, %v3898
      %v3900 = vrot.slane %v3898, 4
      %v3901 = vrot.slane %v3798, 5
      %v3902 = vsel %vm2026, %v3900, %v3901
      %v3903 = vrot.slane %v3799, 5
      %v3904 = vrot.slane %v3903, 4
      %v3905 = vrot.slane %v3800, 5
      %v3906 = vsel %vm2026, %v3904, %v3905
      %v3907 = vrot.slane %v3905, 4
      %v3908 = vrot.slane %v3801, 5
      %v3909 = vsel %vm2026, %v3907, %v3908
      %v3910 = vrot.slane %v3802, 5
      %v3911 = vrot.slane %v3910, 4
      %v3912 = vrot.slane %v3803, 5
      %v3913 = vsel %vm2026, %v3911, %v3912
      %v3914 = vrot.slane %v3912, 4
      %v3915 = vrot.slane %v3804, 5
      %v3916 = vsel %vm2026, %v3914, %v3915
      %v3917 = vrot.slane %v3805, 5
      %v3918 = vrot.slane %v3917, 4
      %v3919 = vrot.slane %v3806, 5
      %v3920 = vsel %vm2026, %v3918, %v3919
      %v3921 = vrot.slane %v3919, 4
      %v3922 = vrot.slane %v3807, 5
      %v3923 = vsel %vm2026, %v3921, %v3922
      %v3924 = vrot.slane %v3808, 5
      %v3925 = vrot.slane %v3924, 4
      %v3926 = vrot.slane %v3809, 5
      %v3927 = vsel %vm2026, %v3925, %v3926
      %v3928 = vrot.slane %v3926, 4
      %v3929 = vrot.slane %v3810, 5
      %v3930 = vsel %vm2026, %v3928, %v3929
      %v3931 = vrot.slane %v3811, 5
      %v3932 = vrot.slane %v3931, 4
      %v3933 = vrot.slane %v3812, 5
      %v3934 = vsel %vm2026, %v3932, %v3933
      %v3935 = vrot.slane %v3933, 4
      %v3936 = vrot.slane %v3813, 5
      %v3937 = vsel %vm2026, %v3935, %v3936
      %v3938 = vrot.slane %v3814, 5
      %v3939 = vrot.slane %v3938, 4
      %v3940 = vrot.slane %v3815, 5
      %v3941 = vsel %vm2026, %v3939, %v3940
      %v3942 = vrot.slane %v3940, 4
      %v3943 = vrot.slane %v3816, 5
      %v3944 = vsel %vm2026, %v3942, %v3943
      %v3945 = vrot.slane %v3817, 5
      %v3946 = vrot.slane %v3945, 4
      %v3947 = vrot.slane %v3818, 5
      %v3948 = vsel %vm2026, %v3946, %v3947
      %v3949 = vrot.slane %v3947, 4
      %v3950 = vrot.slane %v3819, 5
      %v3951 = vsel %vm2026, %v3949, %v3950
      %v3952 = vrot.slane %v3820, 5
      %v3953 = vrot.slane %v3952, 4
      %v3954 = vrot.slane %v3821, 5
      %v3955 = vsel %vm2026, %v3953, %v3954
      %v3956 = vrot.slane %v3954, 4
      %v3957 = vrot.slane %v3822, 5
      %v3958 = vsel %vm2026, %v3956, %v3957
      %v3959 = vrot.slane %v3823, 5
      %v3960 = vrot.slane %v3959, 4
      %v3961 = vrot.slane %v3824, 5
      %v3962 = vsel %vm2026, %v3960, %v3961
      %v3963 = vrot.slane %v3961, 4
      %v3964 = vrot.slane %v3825, 5
      %v3965 = vsel %vm2026, %v3963, %v3964
      %v3966 = vrot.slane %v3826, 5
      %v3967 = vrot.slane %v3966, 4
      %v3968 = vrot.slane %v3827, 5
      %v3969 = vsel %vm2026, %v3967, %v3968
      %v3970 = vrot.slane %v3968, 4
      %v3971 = vrot.slane %v3828, 5
      %v3972 = vsel %vm2026, %v3970, %v3971
      %v3973 = vrot.slane %v3829, 5
      %v3974 = vrot.slane %v3973, 4
      %v3975 = vrot.slane %v3830, 5
      %v3976 = vsel %vm2026, %v3974, %v3975
      %v3977 = vrot.slane %v3975, 4
      %v3978 = vrot.slane %v3831, 5
      %v3979 = vsel %vm2026, %v3977, %v3978
      %v3980 = vrot.slane %v3832, 5
      %v3981 = vrot.slane %v3980, 4
      %v3982 = vrot.slane %v3833, 5
      %v3983 = vsel %vm2026, %v3981, %v3982
      %v3984 = vrot.slane %v3982, 4
      %v3985 = vrot.slane %v3834, 5
      %v3986 = vsel %vm2026, %v3984, %v3985
      %v3987 = vrot.slane %v3835, 5
      %v3988 = vrot.slane %v3987, 4
      %v3989 = vrot.slane %v3836, 5
      %v3990 = vsel %vm2026, %v3988, %v3989
      %v3991 = vrot.slane %v3989, 4
      %v3992 = vrot.slane %v3837, 5
      %v3993 = vsel %vm2026, %v3991, %v3992
      %v3994 = vrot.slane %v3838, 5
      %v3995 = vrot.slane %v3994, 4
      %v3996 = vrot.slane %v3839, 5
      %v3997 = vsel %vm2026, %v3995, %v3996
      %v3998 = vrot.slane %v3996, 4
      %v3999 = vrot.slane %v3840, 5
      %v4000 = vsel %vm2026, %v3998, %v3999
      %s4001 = scalar_lea.vmem %s1, 320
      %v4002 = vld [vmem:[%s4001] sm:$0xf]
      %v4003 = vld [vmem:[%s4001 + $0x4] sm:$0xf]
      %v4004 = vld [vmem:[%s4001 + $0x8] sm:$0xf]
      %v4005 = vld [vmem:[%s4001 + $0xc] sm:$0xf]
      %v4006 = vld [vmem:[%s4001 + $0x10] sm:$0xf]
      %v4007 = vld [vmem:[%s4001 + $0x14] sm:$0xf]
      %v4008 = vld [vmem:[%s4001 + $0x18] sm:$0xf]
      %v4009 = vld [vmem:[%s4001 + $0x1c] sm:$0xf]
      %v4010 = vld [vmem:[%s4001 + $0x20] sm:$0xf]
      %v4011 = vld [vmem:[%s4001 + $0x24] sm:$0xf]
      %v4012 = vld [vmem:[%s4001 + $0x28] sm:$0xf]
      %v4013 = vld [vmem:[%s4001 + $0x2c] sm:$0xf]
      %v4014 = vld [vmem:[%s4001 + $0x30] sm:$0xf]
      %v4015 = vld [vmem:[%s4001 + $0x34] sm:$0xf]
      %v4016 = vld [vmem:[%s4001 + $0x38] sm:$0xf]
      %v4017 = vld [vmem:[%s4001 + $0x3c] sm:$0xf]
      %v4018 = vunpack.c.l.b16 %v3892
      %v4019 = vunpack.c.l.b16 %v3895
      %v4020 = vunpack.c.l.b16 %v3899
      %v4021 = vunpack.c.l.b16 %v3902
      %v4022 = vunpack.c.l.b16 %v3906
      %v4023 = vunpack.c.l.b16 %v3909
      %v4024 = vunpack.c.l.b16 %v3913
      %v4025 = vunpack.c.l.b16 %v3916
      %v4026 = vunpack.c.l.b16 %v3920
      %v4027 = vunpack.c.l.b16 %v3923
      %v4028 = vunpack.c.l.b16 %v3927
      %v4029 = vunpack.c.l.b16 %v3930
      %v4030 = vunpack.c.l.b16 %v3934
      %v4031 = vunpack.c.l.b16 %v3937
      %v4032 = vunpack.c.l.b16 %v3941
      %v4033 = vunpack.c.l.b16 %v3944
      %v4034 = vunpack.c.l.b16 %v3948
      %v4035 = vunpack.c.l.b16 %v3951
      %v4036 = vunpack.c.l.b16 %v3955
      %v4037 = vunpack.c.l.b16 %v3958
      %v4038 = vunpack.c.l.b16 %v3962
      %v4039 = vunpack.c.l.b16 %v3965
      %v4040 = vunpack.c.l.b16 %v3969
      %v4041 = vunpack.c.l.b16 %v3972
      %v4042 = vunpack.c.l.b16 %v3976
      %v4043 = vunpack.c.l.b16 %v3979
      %v4044 = vunpack.c.l.b16 %v3983
      %v4045 = vunpack.c.l.b16 %v3986
      %v4046 = vunpack.c.l.b16 %v3990
      %v4047 = vunpack.c.l.b16 %v3993
      %v4048 = vunpack.c.l.b16 %v3997
      %v4049 = vunpack.c.l.b16 %v4000
      %v4050 = vpack.c.b16 %v4019, %v4018
      %v4051 = vpack.c.b16 %v4021, %v4020
      %v4052 = vpack.c.b16 %v4023, %v4022
      %v4053 = vpack.c.b16 %v4025, %v4024
      %v4054 = vpack.c.b16 %v4027, %v4026
      %v4055 = vpack.c.b16 %v4029, %v4028
      %v4056 = vpack.c.b16 %v4031, %v4030
      %v4057 = vpack.c.b16 %v4033, %v4032
      %v4058 = vpack.c.b16 %v4035, %v4034
      %v4059 = vpack.c.b16 %v4037, %v4036
      %v4060 = vpack.c.b16 %v4039, %v4038
      %v4061 = vpack.c.b16 %v4041, %v4040
      %v4062 = vpack.c.b16 %v4043, %v4042
      %v4063 = vpack.c.b16 %v4045, %v4044
      %v4064 = vpack.c.b16 %v4047, %v4046
      %v4065 = vpack.c.b16 %v4049, %v4048
      %v4098 = vunpack.c.l.b16 %v4002
      %v4099 = vunpack.c.l.b16 %v4003
      %v4100 = vunpack.c.l.b16 %v4004
      %v4101 = vunpack.c.l.b16 %v4005
      %v4102 = vunpack.c.l.b16 %v4006
      %v4103 = vunpack.c.l.b16 %v4007
      %v4104 = vunpack.c.l.b16 %v4008
      %v4105 = vunpack.c.l.b16 %v4009
      %v4106 = vunpack.c.l.b16 %v4010
      %v4107 = vunpack.c.l.b16 %v4011
      %v4108 = vunpack.c.l.b16 %v4012
      %v4109 = vunpack.c.l.b16 %v4013
      %v4110 = vunpack.c.l.b16 %v4014
      %v4111 = vunpack.c.l.b16 %v4015
      %v4112 = vunpack.c.l.b16 %v4016
      %v4113 = vunpack.c.l.b16 %v4017
      %v4114 = vpack.c.b16 %v4099, %v4098
      %v4115 = vpack.c.b16 %v4101, %v4100
      %v4116 = vpack.c.b16 %v4103, %v4102
      %v4117 = vpack.c.b16 %v4105, %v4104
      %v4118 = vpack.c.b16 %v4107, %v4106
      %v4119 = vpack.c.b16 %v4109, %v4108
      %v4120 = vpack.c.b16 %v4111, %v4110
      %v4121 = vpack.c.b16 %v4113, %v4112
      %4130 = vmatprep.subr.bf16.mxu0 0
      %4131 = vmatpush1.bf16.msra.mxu0 %v4114
      %4132 = vmatprep.subr.bf16.mxu0 0
      %4133 = vmatpush1.bf16.msra.mxu0 %v4115
      %4134 = vmatprep.subr.bf16.mxu0 0
      %4135 = vmatpush1.bf16.msra.mxu0 %v4116
      %4136 = vmatprep.subr.bf16.mxu0 0
      %4137 = vmatpush1.bf16.msra.mxu0 %v4117
      %4138 = vmatprep.subr.bf16.mxu0 0
      %4139 = vmatpush1.bf16.msra.mxu0 %v4118
      %4140 = vmatprep.subr.bf16.mxu0 0
      %4141 = vmatpush1.bf16.msra.mxu0 %v4119
      %4142 = vmatprep.subr.bf16.mxu0 0
      %4143 = vmatpush1.bf16.msra.mxu0 %v4120
      %4144 = vmatprep.subr.bf16.mxu0 0
      %4145 = vmatpush1.bf16.msra.mxu0 %v4121
      %4146 = vmatprep.subr.bf16.mxu0 0
      %4147 = vmatpush1.bf16.msra.mxu0 0
      %4148 = vmatprep.subr.bf16.mxu0 0
      %4149 = vmatpush1.bf16.msra.mxu0 0
      %4150 = vmatprep.subr.bf16.mxu0 0
      %4151 = vmatpush1.bf16.msra.mxu0 0
      %4152 = vmatprep.subr.bf16.mxu0 0
      %4153 = vmatpush1.bf16.msra.mxu0 0
      %4154 = vmatprep.subr.bf16.mxu0 0
      %4155 = vmatpush1.bf16.msra.mxu0 0
      %4156 = vmatprep.subr.bf16.mxu0 0
      %4157 = vmatpush1.bf16.msra.mxu0 0
      %4158 = vmatprep.subr.bf16.mxu0 0
      %4159 = vmatpush1.bf16.msra.mxu0 0
      %4160 = vmatprep.subr.bf16.mxu0 0
      %4161 = vmatpush1.bf16.msra.mxu0 0
      %4162 = vmatprep.mubr.bf16.mxu0 0
      %4163 = vmatmul.mubr.bf16.gmra.mrb[0].mxu0 %v4050
      %v4164 = vpop.f32.mrb[0].mxu0
      %v4165 = vadd.f32 0.0, %v4164
      %v4166 = vpop.f32.mrb[0].mxu0
      %v4167 = vpop.f32.mrb[0].mxu0
      %v4168 = vadd.f32 0.0, %v4167
      %v4169 = vpop.f32.mrb[0].mxu0
      %4170 = vmatprep.mubr.bf16.mxu0 0
      %4171 = vmatmul.mubr.bf16.gmra.mrb[0].mxu0 %v4051
      %v4172 = vpop.f32.mrb[0].mxu0
      %v4173 = vadd.f32 0.0, %v4172
      %v4174 = vpop.f32.mrb[0].mxu0
      %v4175 = vpop.f32.mrb[0].mxu0
      %v4176 = vadd.f32 0.0, %v4175
      %v4177 = vpop.f32.mrb[0].mxu0
      %4178 = vmatprep.mubr.bf16.mxu0 0
      %4179 = vmatmul.mubr.bf16.gmra.mrb[0].mxu0 %v4052
      %v4180 = vpop.f32.mrb[0].mxu0
      %v4181 = vadd.f32 0.0, %v4180
      %v4182 = vpop.f32.mrb[0].mxu0
      %v4183 = vpop.f32.mrb[0].mxu0
      %v4184 = vadd.f32 0.0, %v4183
      %v4185 = vpop.f32.mrb[0].mxu0
      %4186 = vmatprep.mubr.bf16.mxu0 0
      %4187 = vmatmul.mubr.bf16.gmra.mrb[0].mxu0 %v4053
      %v4188 = vpop.f32.mrb[0].mxu0
      %v4189 = vadd.f32 0.0, %v4188
      %v4190 = vpop.f32.mrb[0].mxu0
      %v4191 = vpop.f32.mrb[0].mxu0
      %v4192 = vadd.f32 0.0, %v4191
      %v4193 = vpop.f32.mrb[0].mxu0
      %4194 = vmatprep.mubr.bf16.mxu0 0
      %4195 = vmatmul.mubr.bf16.gmra.mrb[0].mxu0 %v4054
      %v4196 = vpop.f32.mrb[0].mxu0
      %v4197 = vadd.f32 0.0, %v4196
      %v4198 = vpop.f32.mrb[0].mxu0
      %v4199 = vpop.f32.mrb[0].mxu0
      %v4200 = vadd.f32 0.0, %v4199
      %v4201 = vpop.f32.mrb[0].mxu0
      %4202 = vmatprep.mubr.bf16.mxu0 0
      %4203 = vmatmul.mubr.bf16.gmra.mrb[0].mxu0 %v4055
      %v4204 = vpop.f32.mrb[0].mxu0
      %v4205 = vadd.f32 0.0, %v4204
      %v4206 = vpop.f32.mrb[0].mxu0
      %v4207 = vpop.f32.mrb[0].mxu0
      %v4208 = vadd.f32 0.0, %v4207
      %v4209 = vpop.f32.mrb[0].mxu0
      %4210 = vmatprep.mubr.bf16.mxu0 0
      %4211 = vmatmul.mubr.bf16.gmra.mrb[0].mxu0 %v4056
      %v4212 = vpop.f32.mrb[0].mxu0
      %v4213 = vadd.f32 0.0, %v4212
      %v4214 = vpop.f32.mrb[0].mxu0
      %v4215 = vpop.f32.mrb[0].mxu0
      %v4216 = vadd.f32 0.0, %v4215
      %v4217 = vpop.f32.mrb[0].mxu0
      %4218 = vmatprep.mubr.bf16.mxu0 0
      %4219 = vmatmul.mubr.bf16.gmra.mrb[0].mxu0 %v4057
      %v4220 = vpop.f32.mrb[0].mxu0
      %v4221 = vadd.f32 0.0, %v4220
      %v4222 = vpop.f32.mrb[0].mxu0
      %v4223 = vpop.f32.mrb[0].mxu0
      %v4224 = vadd.f32 0.0, %v4223
      %v4225 = vpop.f32.mrb[0].mxu0
      %4226 = vmatprep.mubr.bf16.mxu0 0
      %4227 = vmatmul.mubr.bf16.gmra.mrb[0].mxu0 %v4058
      %v4228 = vpop.f32.mrb[0].mxu0
      %v4229 = vadd.f32 0.0, %v4228
      %v4230 = vpop.f32.mrb[0].mxu0
      %v4231 = vpop.f32.mrb[0].mxu0
      %v4232 = vadd.f32 0.0, %v4231
      %v4233 = vpop.f32.mrb[0].mxu0
      %4234 = vmatprep.mubr.bf16.mxu0 0
      %4235 = vmatmul.mubr.bf16.gmra.mrb[0].mxu0 %v4059
      %v4236 = vpop.f32.mrb[0].mxu0
      %v4237 = vadd.f32 0.0, %v4236
      %v4238 = vpop.f32.mrb[0].mxu0
      %v4239 = vpop.f32.mrb[0].mxu0
      %v4240 = vadd.f32 0.0, %v4239
      %v4241 = vpop.f32.mrb[0].mxu0
      %4242 = vmatprep.mubr.bf16.mxu0 0
      %4243 = vmatmul.mubr.bf16.gmra.mrb[0].mxu0 %v4060
      %v4244 = vpop.f32.mrb[0].mxu0
      %v4245 = vadd.f32 0.0, %v4244
      %v4246 = vpop.f32.mrb[0].mxu0
      %v4247 = vpop.f32.mrb[0].mxu0
      %v4248 = vadd.f32 0.0, %v4247
      %v4249 = vpop.f32.mrb[0].mxu0
      %4250 = vmatprep.mubr.bf16.mxu0 0
      %4251 = vmatmul.mubr.bf16.gmra.mrb[0].mxu0 %v4061
      %v4252 = vpop.f32.mrb[0].mxu0
      %v4253 = vadd.f32 0.0, %v4252
      %v4254 = vpop.f32.mrb[0].mxu0
      %v4255 = vpop.f32.mrb[0].mxu0
      %v4256 = vadd.f32 0.0, %v4255
      %v4257 = vpop.f32.mrb[0].mxu0
      %4258 = vmatprep.mubr.bf16.mxu0 0
      %4259 = vmatmul.mubr.bf16.gmra.mrb[0].mxu0 %v4062
      %v4260 = vpop.f32.mrb[0].mxu0
      %v4261 = vadd.f32 0.0, %v4260
      %v4262 = vpop.f32.mrb[0].mxu0
      %v4263 = vpop.f32.mrb[0].mxu0
      %v4264 = vadd.f32 0.0, %v4263
      %v4265 = vpop.f32.mrb[0].mxu0
      %4266 = vmatprep.mubr.bf16.mxu0 0
      %4267 = vmatmul.mubr.bf16.gmra.mrb[0].mxu0 %v4063
      %v4268 = vpop.f32.mrb[0].mxu0
      %v4269 = vadd.f32 0.0, %v4268
      %v4270 = vpop.f32.mrb[0].mxu0
      %v4271 = vpop.f32.mrb[0].mxu0
      %v4272 = vadd.f32 0.0, %v4271
      %v4273 = vpop.f32.mrb[0].mxu0
      %4274 = vmatprep.mubr.bf16.mxu0 0
      %4275 = vmatmul.mubr.bf16.gmra.mrb[0].mxu0 %v4064
      %v4276 = vpop.f32.mrb[0].mxu0
      %v4277 = vadd.f32 0.0, %v4276
      %v4278 = vpop.f32.mrb[0].mxu0
      %v4279 = vpop.f32.mrb[0].mxu0
      %v4280 = vadd.f32 0.0, %v4279
      %v4281 = vpop.f32.mrb[0].mxu0
      %4282 = vmatprep.mubr.bf16.mxu0 0
      %4283 = vmatmul.mubr.bf16.gmra.mrb[0].mxu0 %v4065
      %v4284 = vpop.f32.mrb[0].mxu0
      %v4285 = vadd.f32 0.0, %v4284
      %v4286 = vpop.f32.mrb[0].mxu0
      %v4287 = vpop.f32.mrb[0].mxu0
      %v4288 = vadd.f32 0.0, %v4287
      %v4289 = vpop.f32.mrb[0].mxu0
      %4290 = vdwg.mxu0
      %v4291 = vld [vmem:[#allocation3] sm:$0xff]
      %v4292 = vld [vmem:[#allocation3 + $0x8] sm:$0xff]
      %v4293 = vld [vmem:[#allocation3 + $0x10] sm:$0xff]
      %v4294 = vld [vmem:[#allocation3 + $0x18] sm:$0xff]
      %v4295 = vld [vmem:[#allocation3 + $0x20] sm:$0xff]
      %v4296 = vld [vmem:[#allocation3 + $0x28] sm:$0xff]
      %v4297 = vld [vmem:[#allocation3 + $0x30] sm:$0xff]
      %v4298 = vld [vmem:[#allocation3 + $0x38] sm:$0xff]
      %v4299 = vld [vmem:[#allocation3 + $0x40] sm:$0xff]
      %v4300 = vld [vmem:[#allocation3 + $0x48] sm:$0xff]
      %v4301 = vld [vmem:[#allocation3 + $0x50] sm:$0xff]
      %v4302 = vld [vmem:[#allocation3 + $0x58] sm:$0xff]
      %v4303 = vld [vmem:[#allocation3 + $0x60] sm:$0xff]
      %v4304 = vld [vmem:[#allocation3 + $0x68] sm:$0xff]
      %v4305 = vld [vmem:[#allocation3 + $0x70] sm:$0xff]
      %v4306 = vld [vmem:[#allocation3 + $0x78] sm:$0xff]
      %v4307 = vld [vmem:[#allocation3 + $0x80] sm:$0xff]
      %v4308 = vld [vmem:[#allocation3 + $0x88] sm:$0xff]
      %v4309 = vld [vmem:[#allocation3 + $0x90] sm:$0xff]
      %v4310 = vld [vmem:[#allocation3 + $0x98] sm:$0xff]
      %v4311 = vld [vmem:[#allocation3 + $0xa0] sm:$0xff]
      %v4312 = vld [vmem:[#allocation3 + $0xa8] sm:$0xff]
      %v4313 = vld [vmem:[#allocation3 + $0xb0] sm:$0xff]
      %v4314 = vld [vmem:[#allocation3 + $0xb8] sm:$0xff]
      %v4315 = vld [vmem:[#allocation3 + $0xc0] sm:$0xff]
      %v4316 = vld [vmem:[#allocation3 + $0xc8] sm:$0xff]
      %v4317 = vld [vmem:[#allocation3 + $0xd0] sm:$0xff]
      %v4318 = vld [vmem:[#allocation3 + $0xd8] sm:$0xff]
      %v4319 = vld [vmem:[#allocation3 + $0xe0] sm:$0xff]
      %v4320 = vld [vmem:[#allocation3 + $0xe8] sm:$0xff]
      %v4321 = vld [vmem:[#allocation3 + $0xf0] sm:$0xff]
      %v4322 = vld [vmem:[#allocation3 + $0xf8] sm:$0xff]
      %v4323 = vadd.f32 %v4291, %v4165
      %v4324 = vadd.f32 %v4292, %v4168
      %v4325 = vadd.f32 %v4293, %v4173
      %v4326 = vadd.f32 %v4294, %v4176
      %v4327 = vadd.f32 %v4295, %v4181
      %v4328 = vadd.f32 %v4296, %v4184
      %v4329 = vadd.f32 %v4297, %v4189
      %v4330 = vadd.f32 %v4298, %v4192
      %v4331 = vadd.f32 %v4299, %v4197
      %v4332 = vadd.f32 %v4300, %v4200
      %v4333 = vadd.f32 %v4301, %v4205
      %v4334 = vadd.f32 %v4302, %v4208
      %v4335 = vadd.f32 %v4303, %v4213
      %v4336 = vadd.f32 %v4304, %v4216
      %v4337 = vadd.f32 %v4305, %v4221
      %v4338 = vadd.f32 %v4306, %v4224
      %v4339 = vadd.f32 %v4307, %v4229
      %v4340 = vadd.f32 %v4308, %v4232
      %v4341 = vadd.f32 %v4309, %v4237
      %v4342 = vadd.f32 %v4310, %v4240
      %v4343 = vadd.f32 %v4311, %v4245
      %v4344 = vadd.f32 %v4312, %v4248
      %v4345 = vadd.f32 %v4313, %v4253
      %v4346 = vadd.f32 %v4314, %v4256
      %v4347 = vadd.f32 %v4315, %v4261
      %v4348 = vadd.f32 %v4316, %v4264
      %v4349 = vadd.f32 %v4317, %v4269
      %v4350 = vadd.f32 %v4318, %v4272
      %v4351 = vadd.f32 %v4319, %v4277
      %v4352 = vadd.f32 %v4320, %v4280
      %v4353 = vadd.f32 %v4321, %v4285
      %v4354 = vadd.f32 %v4322, %v4288
      %4355 = vst [vmem:[#allocation3] sm:$0xff] %v4323
      %4356 = vst [vmem:[#allocation3 + $0x8] sm:$0xff] %v4324
      %4357 = vst [vmem:[#allocation3 + $0x10] sm:$0xff] %v4325
      %4358 = vst [vmem:[#allocation3 + $0x18] sm:$0xff] %v4326
      %4359 = vst [vmem:[#allocation3 + $0x20] sm:$0xff] %v4327
      %4360 = vst [vmem:[#allocation3 + $0x28] sm:$0xff] %v4328
      %4361 = vst [vmem:[#allocation3 + $0x30] sm:$0xff] %v4329
      %4362 = vst [vmem:[#allocation3 + $0x38] sm:$0xff] %v4330
      %4363 = vst [vmem:[#allocation3 + $0x40] sm:$0xff] %v4331
      %4364 = vst [vmem:[#allocation3 + $0x48] sm:$0xff] %v4332
      %4365 = vst [vmem:[#allocation3 + $0x50] sm:$0xff] %v4333
      %4366 = vst [vmem:[#allocation3 + $0x58] sm:$0xff] %v4334
      %4367 = vst [vmem:[#allocation3 + $0x60] sm:$0xff] %v4335
      %4368 = vst [vmem:[#allocation3 + $0x68] sm:$0xff] %v4336
      %4369 = vst [vmem:[#allocation3 + $0x70] sm:$0xff] %v4337
      %4370 = vst [vmem:[#allocation3 + $0x78] sm:$0xff] %v4338
      %4371 = vst [vmem:[#allocation3 + $0x80] sm:$0xff] %v4339
      %4372 = vst [vmem:[#allocation3 + $0x88] sm:$0xff] %v4340
      %4373 = vst [vmem:[#allocation3 + $0x90] sm:$0xff] %v4341
      %4374 = vst [vmem:[#allocation3 + $0x98] sm:$0xff] %v4342
      %4375 = vst [vmem:[#allocation3 + $0xa0] sm:$0xff] %v4343
      %4376 = vst [vmem:[#allocation3 + $0xa8] sm:$0xff] %v4344
      %4377 = vst [vmem:[#allocation3 + $0xb0] sm:$0xff] %v4345
      %4378 = vst [vmem:[#allocation3 + $0xb8] sm:$0xff] %v4346
      %4379 = vst [vmem:[#allocation3 + $0xc0] sm:$0xff] %v4347
      %4380 = vst [vmem:[#allocation3 + $0xc8] sm:$0xff] %v4348
      %4381 = vst [vmem:[#allocation3 + $0xd0] sm:$0xff] %v4349
      %4382 = vst [vmem:[#allocation3 + $0xd8] sm:$0xff] %v4350
      %4383 = vst [vmem:[#allocation3 + $0xe0] sm:$0xff] %v4351
      %4384 = vst [vmem:[#allocation3 + $0xe8] sm:$0xff] %v4352
      %4385 = vst [vmem:[#allocation3 + $0xf0] sm:$0xff] %v4353
      %4386 = vst [vmem:[#allocation3 + $0xf8] sm:$0xff] %v4354
      %s4387 = scalar_lea.vmem [#allocation2], 24
      %v4388 = vld [vmem:[%s4387] sm:$0xf]
      %v4389 = vld [vmem:[%s4387 + $0x4] sm:$0xf]
      %v4390 = vld [vmem:[%s4387 + $0xc] sm:$0xf]
      %v4391 = vld [vmem:[%s4387 + $0x10] sm:$0xf]
      %v4392 = vld [vmem:[%s4387 + $0x18] sm:$0xf]
      %v4393 = vld [vmem:[%s4387 + $0x1c] sm:$0xf]
      %v4394 = vld [vmem:[%s4387 + $0x24] sm:$0xf]
      %v4395 = vld [vmem:[%s4387 + $0x28] sm:$0xf]
      %v4396 = vld [vmem:[%s4387 + $0x30] sm:$0xf]
      %v4397 = vld [vmem:[%s4387 + $0x34] sm:$0xf]
      %v4398 = vld [vmem:[%s4387 + $0x3c] sm:$0xf]
      %v4399 = vld [vmem:[%s4387 + $0x40] sm:$0xf]
      %v4400 = vld [vmem:[%s4387 + $0x48] sm:$0xf]
      %v4401 = vld [vmem:[%s4387 + $0x4c] sm:$0xf]
      %v4402 = vld [vmem:[%s4387 + $0x54] sm:$0xf]
      %v4403 = vld [vmem:[%s4387 + $0x58] sm:$0xf]
      %v4404 = vld [vmem:[%s4387 + $0x60] sm:$0xf]
      %v4405 = vld [vmem:[%s4387 + $0x64] sm:$0xf]
      %v4406 = vld [vmem:[%s4387 + $0x6c] sm:$0xf]
      %v4407 = vld [vmem:[%s4387 + $0x70] sm:$0xf]
      %v4408 = vld [vmem:[%s4387 + $0x78] sm:$0xf]
      %v4409 = vld [vmem:[%s4387 + $0x7c] sm:$0xf]
      %v4410 = vld [vmem:[%s4387 + $0x84] sm:$0xf]
      %v4411 = vld [vmem:[%s4387 + $0x88] sm:$0xf]
      %v4412 = vld [vmem:[%s4387 + $0x90] sm:$0xf]
      %v4413 = vld [vmem:[%s4387 + $0x94] sm:$0xf]
      %v4414 = vld [vmem:[%s4387 + $0x9c] sm:$0xf]
      %v4415 = vld [vmem:[%s4387 + $0xa0] sm:$0xf]
      %v4416 = vld [vmem:[%s4387 + $0xa8] sm:$0xf]
      %v4417 = vld [vmem:[%s4387 + $0xac] sm:$0xf]
      %v4418 = vld [vmem:[%s4387 + $0xb4] sm:$0xf]
      %v4419 = vld [vmem:[%s4387 + $0xb8] sm:$0xf]
      %s4420 = scalar_lea.vmem %s1, 384
      %v4421 = vld [vmem:[%s4420] sm:$0xf]
      %v4422 = vld [vmem:[%s4420 + $0x4] sm:$0xf]
      %v4423 = vld [vmem:[%s4420 + $0x8] sm:$0xf]
      %v4424 = vld [vmem:[%s4420 + $0xc] sm:$0xf]
      %v4425 = vld [vmem:[%s4420 + $0x10] sm:$0xf]
      %v4426 = vld [vmem:[%s4420 + $0x14] sm:$0xf]
      %v4427 = vld [vmem:[%s4420 + $0x18] sm:$0xf]
      %v4428 = vld [vmem:[%s4420 + $0x1c] sm:$0xf]
      %v4429 = vld [vmem:[%s4420 + $0x20] sm:$0xf]
      %v4430 = vld [vmem:[%s4420 + $0x24] sm:$0xf]
      %v4431 = vld [vmem:[%s4420 + $0x28] sm:$0xf]
      %v4432 = vld [vmem:[%s4420 + $0x2c] sm:$0xf]
      %v4433 = vld [vmem:[%s4420 + $0x30] sm:$0xf]
      %v4434 = vld [vmem:[%s4420 + $0x34] sm:$0xf]
      %v4435 = vld [vmem:[%s4420 + $0x38] sm:$0xf]
      %v4436 = vld [vmem:[%s4420 + $0x3c] sm:$0xf]
      %v4469 = vunpack.c.l.b16 %v4388
      %v4470 = vunpack.c.l.b16 %v4389
      %v4471 = vunpack.c.l.b16 %v4390
      %v4472 = vunpack.c.l.b16 %v4391
      %v4473 = vunpack.c.l.b16 %v4392
      %v4474 = vunpack.c.l.b16 %v4393
      %v4475 = vunpack.c.l.b16 %v4394
      %v4476 = vunpack.c.l.b16 %v4395
      %v4477 = vunpack.c.l.b16 %v4396
      %v4478 = vunpack.c.l.b16 %v4397
      %v4479 = vunpack.c.l.b16 %v4398
      %v4480 = vunpack.c.l.b16 %v4399
      %v4481 = vunpack.c.l.b16 %v4400
      %v4482 = vunpack.c.l.b16 %v4401
      %v4483 = vunpack.c.l.b16 %v4402
      %v4484 = vunpack.c.l.b16 %v4403
      %v4485 = vunpack.c.l.b16 %v4404
      %v4486 = vunpack.c.l.b16 %v4405
      %v4487 = vunpack.c.l.b16 %v4406
      %v4488 = vunpack.c.l.b16 %v4407
      %v4489 = vunpack.c.l.b16 %v4408
      %v4490 = vunpack.c.l.b16 %v4409
      %v4491 = vunpack.c.l.b16 %v4410
      %v4492 = vunpack.c.l.b16 %v4411
      %v4493 = vunpack.c.l.b16 %v4412
      %v4494 = vunpack.c.l.b16 %v4413
      %v4495 = vunpack.c.l.b16 %v4414
      %v4496 = vunpack.c.l.b16 %v4415
      %v4497 = vunpack.c.l.b16 %v4416
      %v4498 = vunpack.c.l.b16 %v4417
      %v4499 = vunpack.c.l.b16 %v4418
      %v4500 = vunpack.c.l.b16 %v4419
      %v4501 = vpack.c.b16 %v4470, %v4469
      %v4502 = vpack.c.b16 %v4472, %v4471
      %v4503 = vpack.c.b16 %v4474, %v4473
      %v4504 = vpack.c.b16 %v4476, %v4475
      %v4505 = vpack.c.b16 %v4478, %v4477
      %v4506 = vpack.c.b16 %v4480, %v4479
      %v4507 = vpack.c.b16 %v4482, %v4481
      %v4508 = vpack.c.b16 %v4484, %v4483
      %v4509 = vpack.c.b16 %v4486, %v4485
      %v4510 = vpack.c.b16 %v4488, %v4487
      %v4511 = vpack.c.b16 %v4490, %v4489
      %v4512 = vpack.c.b16 %v4492, %v4491
      %v4513 = vpack.c.b16 %v4494, %v4493
      %v4514 = vpack.c.b16 %v4496, %v4495
      %v4515 = vpack.c.b16 %v4498, %v4497
      %v4516 = vpack.c.b16 %v4500, %v4499
      %v4549 = vunpack.c.l.b16 %v4421
      %v4550 = vunpack.c.l.b16 %v4422
      %v4551 = vunpack.c.l.b16 %v4423
      %v4552 = vunpack.c.l.b16 %v4424
      %v4553 = vunpack.c.l.b16 %v4425
      %v4554 = vunpack.c.l.b16 %v4426
      %v4555 = vunpack.c.l.b16 %v4427
      %v4556 = vunpack.c.l.b16 %v4428
      %v4557 = vunpack.c.l.b16 %v4429
      %v4558 = vunpack.c.l.b16 %v4430
      %v4559 = vunpack.c.l.b16 %v4431
      %v4560 = vunpack.c.l.b16 %v4432
      %v4561 = vunpack.c.l.b16 %v4433
      %v4562 = vunpack.c.l.b16 %v4434
      %v4563 = vunpack.c.l.b16 %v4435
      %v4564 = vunpack.c.l.b16 %v4436
      %v4565 = vpack.c.b16 %v4550, %v4549
      %v4566 = vpack.c.b16 %v4552, %v4551
      %v4567 = vpack.c.b16 %v4554, %v4553
      %v4568 = vpack.c.b16 %v4556, %v4555
      %v4569 = vpack.c.b16 %v4558, %v4557
      %v4570 = vpack.c.b16 %v4560, %v4559
      %v4571 = vpack.c.b16 %v4562, %v4561
      %v4572 = vpack.c.b16 %v4564, %v4563
      %4581 = vmatprep.subr.bf16.mxu0 0
      %4582 = vmatpush1.bf16.msra.mxu0 %v4565
      %4583 = vmatprep.subr.bf16.mxu0 0
      %4584 = vmatpush1.bf16.msra.mxu0 %v4566
      %4585 = vmatprep.subr.bf16.mxu0 0
      %4586 = vmatpush1.bf16.msra.mxu0 %v4567
      %4587 = vmatprep.subr.bf16.mxu0 0
      %4588 = vmatpush1.bf16.msra.mxu0 %v4568
      %4589 = vmatprep.subr.bf16.mxu0 0
      %4590 = vmatpush1.bf16.msra.mxu0 %v4569
      %4591 = vmatprep.subr.bf16.mxu0 0
      %4592 = vmatpush1.bf16.msra.mxu0 %v4570
      %4593 = vmatprep.subr.bf16.mxu0 0
      %4594 = vmatpush1.bf16.msra.mxu0 %v4571
      %4595 = vmatprep.subr.bf16.mxu0 0
      %4596 = vmatpush1.bf16.msra.mxu0 %v4572
      %4597 = vmatprep.subr.bf16.mxu0 0
      %4598 = vmatpush1.bf16.msra.mxu0 0
      %4599 = vmatprep.subr.bf16.mxu0 0
      %4600 = vmatpush1.bf16.msra.mxu0 0
      %4601 = vmatprep.subr.bf16.mxu0 0
      %4602 = vmatpush1.bf16.msra.mxu0 0
      %4603 = vmatprep.subr.bf16.mxu0 0
      %4604 = vmatpush1.bf16.msra.mxu0 0
      %4605 = vmatprep.subr.bf16.mxu0 0
      %4606 = vmatpush1.bf16.msra.mxu0 0
      %4607 = vmatprep.subr.bf16.mxu0 0
      %4608 = vmatpush1.bf16.msra.mxu0 0
      %4609 = vmatprep.subr.bf16.mxu0 0
      %4610 = vmatpush1.bf16.msra.mxu0 0
      %4611 = vmatprep.subr.bf16.mxu0 0
      %4612 = vmatpush1.bf16.msra.mxu0 0
      %4613 = vmatprep.mubr.bf16.mxu0 0
      %4614 = vmatmul.mubr.bf16.gmra.mrb[0].mxu0 %v4501
      %v4615 = vpop.f32.mrb[0].mxu0
      %v4616 = vadd.f32 0.0, %v4615
      %v4617 = vpop.f32.mrb[0].mxu0
      %v4618 = vpop.f32.mrb[0].mxu0
      %v4619 = vadd.f32 0.0, %v4618
      %v4620 = vpop.f32.mrb[0].mxu0
      %4621 = vmatprep.mubr.bf16.mxu0 0
      %4622 = vmatmul.mubr.bf16.gmra.mrb[0].mxu0 %v4502
      %v4623 = vpop.f32.mrb[0].mxu0
      %v4624 = vadd.f32 0.0, %v4623
      %v4625 = vpop.f32.mrb[0].mxu0
      %v4626 = vpop.f32.mrb[0].mxu0
      %v4627 = vadd.f32 0.0, %v4626
      %v4628 = vpop.f32.mrb[0].mxu0
      %4629 = vmatprep.mubr.bf16.mxu0 0
      %4630 = vmatmul.mubr.bf16.gmra.mrb[0].mxu0 %v4503
      %v4631 = vpop.f32.mrb[0].mxu0
      %v4632 = vadd.f32 0.0, %v4631
      %v4633 = vpop.f32.mrb[0].mxu0
      %v4634 = vpop.f32.mrb[0].mxu0
      %v4635 = vadd.f32 0.0, %v4634
      %v4636 = vpop.f32.mrb[0].mxu0
      %4637 = vmatprep.mubr.bf16.mxu0 0
      %4638 = vmatmul.mubr.bf16.gmra.mrb[0].mxu0 %v4504
      %v4639 = vpop.f32.mrb[0].mxu0
      %v4640 = vadd.f32 0.0, %v4639
      %v4641 = vpop.f32.mrb[0].mxu0
      %v4642 = vpop.f32.mrb[0].mxu0
      %v4643 = vadd.f32 0.0, %v4642
      %v4644 = vpop.f32.mrb[0].mxu0
      %4645 = vmatprep.mubr.bf16.mxu0 0
      %4646 = vmatmul.mubr.bf16.gmra.mrb[0].mxu0 %v4505
      %v4647 = vpop.f32.mrb[0].mxu0
      %v4648 = vadd.f32 0.0, %v4647
      %v4649 = vpop.f32.mrb[0].mxu0
      %v4650 = vpop.f32.mrb[0].mxu0
      %v4651 = vadd.f32 0.0, %v4650
      %v4652 = vpop.f32.mrb[0].mxu0
      %4653 = vmatprep.mubr.bf16.mxu0 0
      %4654 = vmatmul.mubr.bf16.gmra.mrb[0].mxu0 %v4506
      %v4655 = vpop.f32.mrb[0].mxu0
      %v4656 = vadd.f32 0.0, %v4655
      %v4657 = vpop.f32.mrb[0].mxu0
      %v4658 = vpop.f32.mrb[0].mxu0
      %v4659 = vadd.f32 0.0, %v4658
      %v4660 = vpop.f32.mrb[0].mxu0
      %4661 = vmatprep.mubr.bf16.mxu0 0
      %4662 = vmatmul.mubr.bf16.gmra.mrb[0].mxu0 %v4507
      %v4663 = vpop.f32.mrb[0].mxu0
      %v4664 = vadd.f32 0.0, %v4663
      %v4665 = vpop.f32.mrb[0].mxu0
      %v4666 = vpop.f32.mrb[0].mxu0
      %v4667 = vadd.f32 0.0, %v4666
      %v4668 = vpop.f32.mrb[0].mxu0
      %4669 = vmatprep.mubr.bf16.mxu0 0
      %4670 = vmatmul.mubr.bf16.gmra.mrb[0].mxu0 %v4508
      %v4671 = vpop.f32.mrb[0].mxu0
      %v4672 = vadd.f32 0.0, %v4671
      %v4673 = vpop.f32.mrb[0].mxu0
      %v4674 = vpop.f32.mrb[0].mxu0
      %v4675 = vadd.f32 0.0, %v4674
      %v4676 = vpop.f32.mrb[0].mxu0
      %4677 = vmatprep.mubr.bf16.mxu0 0
      %4678 = vmatmul.mubr.bf16.gmra.mrb[0].mxu0 %v4509
      %v4679 = vpop.f32.mrb[0].mxu0
      %v4680 = vadd.f32 0.0, %v4679
      %v4681 = vpop.f32.mrb[0].mxu0
      %v4682 = vpop.f32.mrb[0].mxu0
      %v4683 = vadd.f32 0.0, %v4682
      %v4684 = vpop.f32.mrb[0].mxu0
      %4685 = vmatprep.mubr.bf16.mxu0 0
      %4686 = vmatmul.mubr.bf16.gmra.mrb[0].mxu0 %v4510
      %v4687 = vpop.f32.mrb[0].mxu0
      %v4688 = vadd.f32 0.0, %v4687
      %v4689 = vpop.f32.mrb[0].mxu0
      %v4690 = vpop.f32.mrb[0].mxu0
      %v4691 = vadd.f32 0.0, %v4690
      %v4692 = vpop.f32.mrb[0].mxu0
      %4693 = vmatprep.mubr.bf16.mxu0 0
      %4694 = vmatmul.mubr.bf16.gmra.mrb[0].mxu0 %v4511
      %v4695 = vpop.f32.mrb[0].mxu0
      %v4696 = vadd.f32 0.0, %v4695
      %v4697 = vpop.f32.mrb[0].mxu0
      %v4698 = vpop.f32.mrb[0].mxu0
      %v4699 = vadd.f32 0.0, %v4698
      %v4700 = vpop.f32.mrb[0].mxu0
      %4701 = vmatprep.mubr.bf16.mxu0 0
      %4702 = vmatmul.mubr.bf16.gmra.mrb[0].mxu0 %v4512
      %v4703 = vpop.f32.mrb[0].mxu0
      %v4704 = vadd.f32 0.0, %v4703
      %v4705 = vpop.f32.mrb[0].mxu0
      %v4706 = vpop.f32.mrb[0].mxu0
      %v4707 = vadd.f32 0.0, %v4706
      %v4708 = vpop.f32.mrb[0].mxu0
      %4709 = vmatprep.mubr.bf16.mxu0 0
      %4710 = vmatmul.mubr.bf16.gmra.mrb[0].mxu0 %v4513
      %v4711 = vpop.f32.mrb[0].mxu0
      %v4712 = vadd.f32 0.0, %v4711
      %v4713 = vpop.f32.mrb[0].mxu0
      %v4714 = vpop.f32.mrb[0].mxu0
      %v4715 = vadd.f32 0.0, %v4714
      %v4716 = vpop.f32.mrb[0].mxu0
      %4717 = vmatprep.mubr.bf16.mxu0 0
      %4718 = vmatmul.mubr.bf16.gmra.mrb[0].mxu0 %v4514
      %v4719 = vpop.f32.mrb[0].mxu0
      %v4720 = vadd.f32 0.0, %v4719
      %v4721 = vpop.f32.mrb[0].mxu0
      %v4722 = vpop.f32.mrb[0].mxu0
      %v4723 = vadd.f32 0.0, %v4722
      %v4724 = vpop.f32.mrb[0].mxu0
      %4725 = vmatprep.mubr.bf16.mxu0 0
      %4726 = vmatmul.mubr.bf16.gmra.mrb[0].mxu0 %v4515
      %v4727 = vpop.f32.mrb[0].mxu0
      %v4728 = vadd.f32 0.0, %v4727
      %v4729 = vpop.f32.mrb[0].mxu0
      %v4730 = vpop.f32.mrb[0].mxu0
      %v4731 = vadd.f32 0.0, %v4730
      %v4732 = vpop.f32.mrb[0].mxu0
      %4733 = vmatprep.mubr.bf16.mxu0 0
      %4734 = vmatmul.mubr.bf16.gmra.mrb[0].mxu0 %v4516
      %v4735 = vpop.f32.mrb[0].mxu0
      %v4736 = vadd.f32 0.0, %v4735
      %v4737 = vpop.f32.mrb[0].mxu0
      %v4738 = vpop.f32.mrb[0].mxu0
      %v4739 = vadd.f32 0.0, %v4738
      %v4740 = vpop.f32.mrb[0].mxu0
      %4741 = vdwg.mxu0
      %v4742 = vld [vmem:[#allocation3] sm:$0xff]
      %v4743 = vld [vmem:[#allocation3 + $0x8] sm:$0xff]
      %v4744 = vld [vmem:[#allocation3 + $0x10] sm:$0xff]
      %v4745 = vld [vmem:[#allocation3 + $0x18] sm:$0xff]
      %v4746 = vld [vmem:[#allocation3 + $0x20] sm:$0xff]
      %v4747 = vld [vmem:[#allocation3 + $0x28] sm:$0xff]
      %v4748 = vld [vmem:[#allocation3 + $0x30] sm:$0xff]
      %v4749 = vld [vmem:[#allocation3 + $0x38] sm:$0xff]
      %v4750 = vld [vmem:[#allocation3 + $0x40] sm:$0xff]
      %v4751 = vld [vmem:[#allocation3 + $0x48] sm:$0xff]
      %v4752 = vld [vmem:[#allocation3 + $0x50] sm:$0xff]
      %v4753 = vld [vmem:[#allocation3 + $0x58] sm:$0xff]
      %v4754 = vld [vmem:[#allocation3 + $0x60] sm:$0xff]
      %v4755 = vld [vmem:[#allocation3 + $0x68] sm:$0xff]
      %v4756 = vld [vmem:[#allocation3 + $0x70] sm:$0xff]
      %v4757 = vld [vmem:[#allocation3 + $0x78] sm:$0xff]
      %v4758 = vld [vmem:[#allocation3 + $0x80] sm:$0xff]
      %v4759 = vld [vmem:[#allocation3 + $0x88] sm:$0xff]
      %v4760 = vld [vmem:[#allocation3 + $0x90] sm:$0xff]
      %v4761 = vld [vmem:[#allocation3 + $0x98] sm:$0xff]
      %v4762 = vld [vmem:[#allocation3 + $0xa0] sm:$0xff]
      %v4763 = vld [vmem:[#allocation3 + $0xa8] sm:$0xff]
      %v4764 = vld [vmem:[#allocation3 + $0xb0] sm:$0xff]
      %v4765 = vld [vmem:[#allocation3 + $0xb8] sm:$0xff]
      %v4766 = vld [vmem:[#allocation3 + $0xc0] sm:$0xff]
      %v4767 = vld [vmem:[#allocation3 + $0xc8] sm:$0xff]
      %v4768 = vld [vmem:[#allocation3 + $0xd0] sm:$0xff]
      %v4769 = vld [vmem:[#allocation3 + $0xd8] sm:$0xff]
      %v4770 = vld [vmem:[#allocation3 + $0xe0] sm:$0xff]
      %v4771 = vld [vmem:[#allocation3 + $0xe8] sm:$0xff]
      %v4772 = vld [vmem:[#allocation3 + $0xf0] sm:$0xff]
      %v4773 = vld [vmem:[#allocation3 + $0xf8] sm:$0xff]
      %v4774 = vadd.f32 %v4742, %v4616
      %v4775 = vadd.f32 %v4743, %v4619
      %v4776 = vadd.f32 %v4744, %v4624
      %v4777 = vadd.f32 %v4745, %v4627
      %v4778 = vadd.f32 %v4746, %v4632
      %v4779 = vadd.f32 %v4747, %v4635
      %v4780 = vadd.f32 %v4748, %v4640
      %v4781 = vadd.f32 %v4749, %v4643
      %v4782 = vadd.f32 %v4750, %v4648
      %v4783 = vadd.f32 %v4751, %v4651
      %v4784 = vadd.f32 %v4752, %v4656
      %v4785 = vadd.f32 %v4753, %v4659
      %v4786 = vadd.f32 %v4754, %v4664
      %v4787 = vadd.f32 %v4755, %v4667
      %v4788 = vadd.f32 %v4756, %v4672
      %v4789 = vadd.f32 %v4757, %v4675
      %v4790 = vadd.f32 %v4758, %v4680
      %v4791 = vadd.f32 %v4759, %v4683
      %v4792 = vadd.f32 %v4760, %v4688
      %v4793 = vadd.f32 %v4761, %v4691
      %v4794 = vadd.f32 %v4762, %v4696
      %v4795 = vadd.f32 %v4763, %v4699
      %v4796 = vadd.f32 %v4764, %v4704
      %v4797 = vadd.f32 %v4765, %v4707
      %v4798 = vadd.f32 %v4766, %v4712
      %v4799 = vadd.f32 %v4767, %v4715
      %v4800 = vadd.f32 %v4768, %v4720
      %v4801 = vadd.f32 %v4769, %v4723
      %v4802 = vadd.f32 %v4770, %v4728
      %v4803 = vadd.f32 %v4771, %v4731
      %v4804 = vadd.f32 %v4772, %v4736
      %v4805 = vadd.f32 %v4773, %v4739
      %4806 = vst [vmem:[#allocation3] sm:$0xff] %v4774
      %4807 = vst [vmem:[#allocation3 + $0x8] sm:$0xff] %v4775
      %4808 = vst [vmem:[#allocation3 + $0x10] sm:$0xff] %v4776
      %4809 = vst [vmem:[#allocation3 + $0x18] sm:$0xff] %v4777
      %4810 = vst [vmem:[#allocation3 + $0x20] sm:$0xff] %v4778
      %4811 = vst [vmem:[#allocation3 + $0x28] sm:$0xff] %v4779
      %4812 = vst [vmem:[#allocation3 + $0x30] sm:$0xff] %v4780
      %4813 = vst [vmem:[#allocation3 + $0x38] sm:$0xff] %v4781
      %4814 = vst [vmem:[#allocation3 + $0x40] sm:$0xff] %v4782
      %4815 = vst [vmem:[#allocation3 + $0x48] sm:$0xff] %v4783
      %4816 = vst [vmem:[#allocation3 + $0x50] sm:$0xff] %v4784
      %4817 = vst [vmem:[#allocation3 + $0x58] sm:$0xff] %v4785
      %4818 = vst [vmem:[#allocation3 + $0x60] sm:$0xff] %v4786
      %4819 = vst [vmem:[#allocation3 + $0x68] sm:$0xff] %v4787
      %4820 = vst [vmem:[#allocation3 + $0x70] sm:$0xff] %v4788
      %4821 = vst [vmem:[#allocation3 + $0x78] sm:$0xff] %v4789
      %4822 = vst [vmem:[#allocation3 + $0x80] sm:$0xff] %v4790
      %4823 = vst [vmem:[#allocation3 + $0x88] sm:$0xff] %v4791
      %4824 = vst [vmem:[#allocation3 + $0x90] sm:$0xff] %v4792
      %4825 = vst [vmem:[#allocation3 + $0x98] sm:$0xff] %v4793
      %4826 = vst [vmem:[#allocation3 + $0xa0] sm:$0xff] %v4794
      %4827 = vst [vmem:[#allocation3 + $0xa8] sm:$0xff] %v4795
      %4828 = vst [vmem:[#allocation3 + $0xb0] sm:$0xff] %v4796
      %4829 = vst [vmem:[#allocation3 + $0xb8] sm:$0xff] %v4797
      %4830 = vst [vmem:[#allocation3 + $0xc0] sm:$0xff] %v4798
      %4831 = vst [vmem:[#allocation3 + $0xc8] sm:$0xff] %v4799
      %4832 = vst [vmem:[#allocation3 + $0xd0] sm:$0xff] %v4800
      %4833 = vst [vmem:[#allocation3 + $0xd8] sm:$0xff] %v4801
      %4834 = vst [vmem:[#allocation3 + $0xe0] sm:$0xff] %v4802
      %4835 = vst [vmem:[#allocation3 + $0xe8] sm:$0xff] %v4803
      %4836 = vst [vmem:[#allocation3 + $0xf0] sm:$0xff] %v4804
      %4837 = vst [vmem:[#allocation3 + $0xf8] sm:$0xff] %v4805
      %v4838 = vld [vmem:[%s4387] sm:$0xf]
      %v4839 = vld [vmem:[%s4387 + $0x4] sm:$0xf]
      %v4840 = vld [vmem:[%s4387 + $0x8] sm:$0x1]
      %v4841 = vld [vmem:[%s4387 + $0xc] sm:$0xf]
      %v4842 = vld [vmem:[%s4387 + $0x10] sm:$0xf]
      %v4843 = vld [vmem:[%s4387 + $0x14] sm:$0x1]
      %v4844 = vld [vmem:[%s4387 + $0x18] sm:$0xf]
      %v4845 = vld [vmem:[%s4387 + $0x1c] sm:$0xf]
      %v4846 = vld [vmem:[%s4387 + $0x20] sm:$0x1]
      %v4847 = vld [vmem:[%s4387 + $0x24] sm:$0xf]
      %v4848 = vld [vmem:[%s4387 + $0x28] sm:$0xf]
      %v4849 = vld [vmem:[%s4387 + $0x2c] sm:$0x1]
      %v4850 = vld [vmem:[%s4387 + $0x30] sm:$0xf]
      %v4851 = vld [vmem:[%s4387 + $0x34] sm:$0xf]
      %v4852 = vld [vmem:[%s4387 + $0x38] sm:$0x1]
      %v4853 = vld [vmem:[%s4387 + $0x3c] sm:$0xf]
      %v4854 = vld [vmem:[%s4387 + $0x40] sm:$0xf]
      %v4855 = vld [vmem:[%s4387 + $0x44] sm:$0x1]
      %v4856 = vld [vmem:[%s4387 + $0x48] sm:$0xf]
      %v4857 = vld [vmem:[%s4387 + $0x4c] sm:$0xf]
      %v4858 = vld [vmem:[%s4387 + $0x50] sm:$0x1]
      %v4859 = vld [vmem:[%s4387 + $0x54] sm:$0xf]
      %v4860 = vld [vmem:[%s4387 + $0x58] sm:$0xf]
      %v4861 = vld [vmem:[%s4387 + $0x5c] sm:$0x1]
      %v4862 = vld [vmem:[%s4387 + $0x60] sm:$0xf]
      %v4863 = vld [vmem:[%s4387 + $0x64] sm:$0xf]
      %v4864 = vld [vmem:[%s4387 + $0x68] sm:$0x1]
      %v4865 = vld [vmem:[%s4387 + $0x6c] sm:$0xf]
      %v4866 = vld [vmem:[%s4387 + $0x70] sm:$0xf]
      %v4867 = vld [vmem:[%s4387 + $0x74] sm:$0x1]
      %v4868 = vld [vmem:[%s4387 + $0x78] sm:$0xf]
      %v4869 = vld [vmem:[%s4387 + $0x7c] sm:$0xf]
      %v4870 = vld [vmem:[%s4387 + $0x80] sm:$0x1]
      %v4871 = vld [vmem:[%s4387 + $0x84] sm:$0xf]
      %v4872 = vld [vmem:[%s4387 + $0x88] sm:$0xf]
      %v4873 = vld [vmem:[%s4387 + $0x8c] sm:$0x1]
      %v4874 = vld [vmem:[%s4387 + $0x90] sm:$0xf]
      %v4875 = vld [vmem:[%s4387 + $0x94] sm:$0xf]
      %v4876 = vld [vmem:[%s4387 + $0x98] sm:$0x1]
      %v4877 = vld [vmem:[%s4387 + $0x9c] sm:$0xf]
      %v4878 = vld [vmem:[%s4387 + $0xa0] sm:$0xf]
      %v4879 = vld [vmem:[%s4387 + $0xa4] sm:$0x1]
      %v4880 = vld [vmem:[%s4387 + $0xa8] sm:$0xf]
      %v4881 = vld [vmem:[%s4387 + $0xac] sm:$0xf]
      %v4882 = vld [vmem:[%s4387 + $0xb0] sm:$0x1]
      %v4883 = vld [vmem:[%s4387 + $0xb4] sm:$0xf]
      %v4884 = vld [vmem:[%s4387 + $0xb8] sm:$0xf]
      %v4885 = vld [vmem:[%s4387 + $0xbc] sm:$0x1]
      %v4887 = vshrl.u32 %v4838, 16
      %v4889 = vrot.slane %v4887, 4
      %v4890 = vshll.u32 %v4838, 16
      %v4892 = vrot.slane %v4890, 5
      %v4893 = vor.u32 %v4889, %v4892
      %v4894 = vrot.slane %v4893, 4
      %v4896 = vshll.u32 %v4839, 16
      %v4898 = vrot.slane %v4896, 5
      %v4899 = vsel %vm1157, %v4894, %v4898
      %v4900 = vshrl.u32 %v4839, 16
      %v4902 = vrot.slane %v4900, 4
      %v4903 = vor.u32 %v4902, %v4898
      %v4904 = vrot.slane %v4903, 4
      %v4906 = vshll.u32 %v4840, 16
      %v4908 = vrot.slane %v4906, 5
      %v4909 = vsel %vm1157, %v4904, %v4908
      %v4911 = vshrl.u32 %v4841, 16
      %v4913 = vrot.slane %v4911, 4
      %v4914 = vshll.u32 %v4841, 16
      %v4916 = vrot.slane %v4914, 5
      %v4917 = vor.u32 %v4913, %v4916
      %v4918 = vrot.slane %v4917, 4
      %v4920 = vshll.u32 %v4842, 16
      %v4922 = vrot.slane %v4920, 5
      %v4923 = vsel %vm1157, %v4918, %v4922
      %v4924 = vshrl.u32 %v4842, 16
      %v4926 = vrot.slane %v4924, 4
      %v4927 = vor.u32 %v4926, %v4922
      %v4928 = vrot.slane %v4927, 4
      %v4930 = vshll.u32 %v4843, 16
      %v4932 = vrot.slane %v4930, 5
      %v4933 = vsel %vm1157, %v4928, %v4932
      %v4935 = vshrl.u32 %v4844, 16
      %v4937 = vrot.slane %v4935, 4
      %v4938 = vshll.u32 %v4844, 16
      %v4940 = vrot.slane %v4938, 5
      %v4941 = vor.u32 %v4937, %v4940
      %v4942 = vrot.slane %v4941, 4
      %v4944 = vshll.u32 %v4845, 16
      %v4946 = vrot.slane %v4944, 5
      %v4947 = vsel %vm1157, %v4942, %v4946
      %v4948 = vshrl.u32 %v4845, 16
      %v4950 = vrot.slane %v4948, 4
      %v4951 = vor.u32 %v4950, %v4946
      %v4952 = vrot.slane %v4951, 4
      %v4954 = vshll.u32 %v4846, 16
      %v4956 = vrot.slane %v4954, 5
      %v4957 = vsel %vm1157, %v4952, %v4956
      %v4959 = vshrl.u32 %v4847, 16
      %v4961 = vrot.slane %v4959, 4
      %v4962 = vshll.u32 %v4847, 16
      %v4964 = vrot.slane %v4962, 5
      %v4965 = vor.u32 %v4961, %v4964
      %v4966 = vrot.slane %v4965, 4
      %v4968 = vshll.u32 %v4848, 16
      %v4970 = vrot.slane %v4968, 5
      %v4971 = vsel %vm1157, %v4966, %v4970
      %v4972 = vshrl.u32 %v4848, 16
      %v4974 = vrot.slane %v4972, 4
      %v4975 = vor.u32 %v4974, %v4970
      %v4976 = vrot.slane %v4975, 4
      %v4978 = vshll.u32 %v4849, 16
      %v4980 = vrot.slane %v4978, 5
      %v4981 = vsel %vm1157, %v4976, %v4980
      %v4983 = vshrl.u32 %v4850, 16
      %v4985 = vrot.slane %v4983, 4
      %v4986 = vshll.u32 %v4850, 16
      %v4988 = vrot.slane %v4986, 5
      %v4989 = vor.u32 %v4985, %v4988
      %v4990 = vrot.slane %v4989, 4
      %v4992 = vshll.u32 %v4851, 16
      %v4994 = vrot.slane %v4992, 5
      %v4995 = vsel %vm1157, %v4990, %v4994
      %v4996 = vshrl.u32 %v4851, 16
      %v4998 = vrot.slane %v4996, 4
      %v4999 = vor.u32 %v4998, %v4994
      %v5000 = vrot.slane %v4999, 4
      %v5002 = vshll.u32 %v4852, 16
      %v5004 = vrot.slane %v5002, 5
      %v5005 = vsel %vm1157, %v5000, %v5004
      %v5007 = vshrl.u32 %v4853, 16
      %v5009 = vrot.slane %v5007, 4
      %v5010 = vshll.u32 %v4853, 16
      %v5012 = vrot.slane %v5010, 5
      %v5013 = vor.u32 %v5009, %v5012
      %v5014 = vrot.slane %v5013, 4
      %v5016 = vshll.u32 %v4854, 16
      %v5018 = vrot.slane %v5016, 5
      %v5019 = vsel %vm1157, %v5014, %v5018
      %v5020 = vshrl.u32 %v4854, 16
      %v5022 = vrot.slane %v5020, 4
      %v5023 = vor.u32 %v5022, %v5018
      %v5024 = vrot.slane %v5023, 4
      %v5026 = vshll.u32 %v4855, 16
      %v5028 = vrot.slane %v5026, 5
      %v5029 = vsel %vm1157, %v5024, %v5028
      %v5031 = vshrl.u32 %v4856, 16
      %v5033 = vrot.slane %v5031, 4
      %v5034 = vshll.u32 %v4856, 16
      %v5036 = vrot.slane %v5034, 5
      %v5037 = vor.u32 %v5033, %v5036
      %v5038 = vrot.slane %v5037, 4
      %v5040 = vshll.u32 %v4857, 16
      %v5042 = vrot.slane %v5040, 5
      %v5043 = vsel %vm1157, %v5038, %v5042
      %v5044 = vshrl.u32 %v4857, 16
      %v5046 = vrot.slane %v5044, 4
      %v5047 = vor.u32 %v5046, %v5042
      %v5048 = vrot.slane %v5047, 4
      %v5050 = vshll.u32 %v4858, 16
      %v5052 = vrot.slane %v5050, 5
      %v5053 = vsel %vm1157, %v5048, %v5052
      %v5055 = vshrl.u32 %v4859, 16
      %v5057 = vrot.slane %v5055, 4
      %v5058 = vshll.u32 %v4859, 16
      %v5060 = vrot.slane %v5058, 5
      %v5061 = vor.u32 %v5057, %v5060
      %v5062 = vrot.slane %v5061, 4
      %v5064 = vshll.u32 %v4860, 16
      %v5066 = vrot.slane %v5064, 5
      %v5067 = vsel %vm1157, %v5062, %v5066
      %v5068 = vshrl.u32 %v4860, 16
      %v5070 = vrot.slane %v5068, 4
      %v5071 = vor.u32 %v5070, %v5066
      %v5072 = vrot.slane %v5071, 4
      %v5074 = vshll.u32 %v4861, 16
      %v5076 = vrot.slane %v5074, 5
      %v5077 = vsel %vm1157, %v5072, %v5076
      %v5079 = vshrl.u32 %v4862, 16
      %v5081 = vrot.slane %v5079, 4
      %v5082 = vshll.u32 %v4862, 16
      %v5084 = vrot.slane %v5082, 5
      %v5085 = vor.u32 %v5081, %v5084
      %v5086 = vrot.slane %v5085, 4
      %v5088 = vshll.u32 %v4863, 16
      %v5090 = vrot.slane %v5088, 5
      %v5091 = vsel %vm1157, %v5086, %v5090
      %v5092 = vshrl.u32 %v4863, 16
      %v5094 = vrot.slane %v5092, 4
      %v5095 = vor.u32 %v5094, %v5090
      %v5096 = vrot.slane %v5095, 4
      %v5098 = vshll.u32 %v4864, 16
      %v5100 = vrot.slane %v5098, 5
      %v5101 = vsel %vm1157, %v5096, %v5100
      %v5103 = vshrl.u32 %v4865, 16
      %v5105 = vrot.slane %v5103, 4
      %v5106 = vshll.u32 %v4865, 16
      %v5108 = vrot.slane %v5106, 5
      %v5109 = vor.u32 %v5105, %v5108
      %v5110 = vrot.slane %v5109, 4
      %v5112 = vshll.u32 %v4866, 16
      %v5114 = vrot.slane %v5112, 5
      %v5115 = vsel %vm1157, %v5110, %v5114
      %v5116 = vshrl.u32 %v4866, 16
      %v5118 = vrot.slane %v5116, 4
      %v5119 = vor.u32 %v5118, %v5114
      %v5120 = vrot.slane %v5119, 4
      %v5122 = vshll.u32 %v4867, 16
      %v5124 = vrot.slane %v5122, 5
      %v5125 = vsel %vm1157, %v5120, %v5124
      %v5127 = vshrl.u32 %v4868, 16
      %v5129 = vrot.slane %v5127, 4
      %v5130 = vshll.u32 %v4868, 16
      %v5132 = vrot.slane %v5130, 5
      %v5133 = vor.u32 %v5129, %v5132
      %v5134 = vrot.slane %v5133, 4
      %v5136 = vshll.u32 %v4869, 16
      %v5138 = vrot.slane %v5136, 5
      %v5139 = vsel %vm1157, %v5134, %v5138
      %v5140 = vshrl.u32 %v4869, 16
      %v5142 = vrot.slane %v5140, 4
      %v5143 = vor.u32 %v5142, %v5138
      %v5144 = vrot.slane %v5143, 4
      %v5146 = vshll.u32 %v4870, 16
      %v5148 = vrot.slane %v5146, 5
      %v5149 = vsel %vm1157, %v5144, %v5148
      %v5151 = vshrl.u32 %v4871, 16
      %v5153 = vrot.slane %v5151, 4
      %v5154 = vshll.u32 %v4871, 16
      %v5156 = vrot.slane %v5154, 5
      %v5157 = vor.u32 %v5153, %v5156
      %v5158 = vrot.slane %v5157, 4
      %v5160 = vshll.u32 %v4872, 16
      %v5162 = vrot.slane %v5160, 5
      %v5163 = vsel %vm1157, %v5158, %v5162
      %v5164 = vshrl.u32 %v4872, 16
      %v5166 = vrot.slane %v5164, 4
      %v5167 = vor.u32 %v5166, %v5162
      %v5168 = vrot.slane %v5167, 4
      %v5170 = vshll.u32 %v4873, 16
      %v5172 = vrot.slane %v5170, 5
      %v5173 = vsel %vm1157, %v5168, %v5172
      %v5175 = vshrl.u32 %v4874, 16
      %v5177 = vrot.slane %v5175, 4
      %v5178 = vshll.u32 %v4874, 16
      %v5180 = vrot.slane %v5178, 5
      %v5181 = vor.u32 %v5177, %v5180
      %v5182 = vrot.slane %v5181, 4
      %v5184 = vshll.u32 %v4875, 16
      %v5186 = vrot.slane %v5184, 5
      %v5187 = vsel %vm1157, %v5182, %v5186
      %v5188 = vshrl.u32 %v4875, 16
      %v5190 = vrot.slane %v5188, 4
      %v5191 = vor.u32 %v5190, %v5186
      %v5192 = vrot.slane %v5191, 4
      %v5194 = vshll.u32 %v4876, 16
      %v5196 = vrot.slane %v5194, 5
      %v5197 = vsel %vm1157, %v5192, %v5196
      %v5199 = vshrl.u32 %v4877, 16
      %v5201 = vrot.slane %v5199, 4
      %v5202 = vshll.u32 %v4877, 16
      %v5204 = vrot.slane %v5202, 5
      %v5205 = vor.u32 %v5201, %v5204
      %v5206 = vrot.slane %v5205, 4
      %v5208 = vshll.u32 %v4878, 16
      %v5210 = vrot.slane %v5208, 5
      %v5211 = vsel %vm1157, %v5206, %v5210
      %v5212 = vshrl.u32 %v4878, 16
      %v5214 = vrot.slane %v5212, 4
      %v5215 = vor.u32 %v5214, %v5210
      %v5216 = vrot.slane %v5215, 4
      %v5218 = vshll.u32 %v4879, 16
      %v5220 = vrot.slane %v5218, 5
      %v5221 = vsel %vm1157, %v5216, %v5220
      %v5223 = vshrl.u32 %v4880, 16
      %v5225 = vrot.slane %v5223, 4
      %v5226 = vshll.u32 %v4880, 16
      %v5228 = vrot.slane %v5226, 5
      %v5229 = vor.u32 %v5225, %v5228
      %v5230 = vrot.slane %v5229, 4
      %v5232 = vshll.u32 %v4881, 16
      %v5234 = vrot.slane %v5232, 5
      %v5235 = vsel %vm1157, %v5230, %v5234
      %v5236 = vshrl.u32 %v4881, 16
      %v5238 = vrot.slane %v5236, 4
      %v5239 = vor.u32 %v5238, %v5234
      %v5240 = vrot.slane %v5239, 4
      %v5242 = vshll.u32 %v4882, 16
      %v5244 = vrot.slane %v5242, 5
      %v5245 = vsel %vm1157, %v5240, %v5244
      %v5247 = vshrl.u32 %v4883, 16
      %v5249 = vrot.slane %v5247, 4
      %v5250 = vshll.u32 %v4883, 16
      %v5252 = vrot.slane %v5250, 5
      %v5253 = vor.u32 %v5249, %v5252
      %v5254 = vrot.slane %v5253, 4
      %v5256 = vshll.u32 %v4884, 16
      %v5258 = vrot.slane %v5256, 5
      %v5259 = vsel %vm1157, %v5254, %v5258
      %v5260 = vshrl.u32 %v4884, 16
      %v5262 = vrot.slane %v5260, 4
      %v5263 = vor.u32 %v5262, %v5258
      %v5264 = vrot.slane %v5263, 4
      %v5266 = vshll.u32 %v4885, 16
      %v5268 = vrot.slane %v5266, 5
      %v5269 = vsel %vm1157, %v5264, %v5268
      %s5270 = scalar_lea.vmem %s1, 448
      %v5271 = vld [vmem:[%s5270] sm:$0xf]
      %v5272 = vld [vmem:[%s5270 + $0x4] sm:$0xf]
      %v5273 = vld [vmem:[%s5270 + $0x8] sm:$0xf]
      %v5274 = vld [vmem:[%s5270 + $0xc] sm:$0xf]
      %v5275 = vld [vmem:[%s5270 + $0x10] sm:$0xf]
      %v5276 = vld [vmem:[%s5270 + $0x14] sm:$0xf]
      %v5277 = vld [vmem:[%s5270 + $0x18] sm:$0xf]
      %v5278 = vld [vmem:[%s5270 + $0x1c] sm:$0xf]
      %v5279 = vld [vmem:[%s5270 + $0x20] sm:$0xf]
      %v5280 = vld [vmem:[%s5270 + $0x24] sm:$0xf]
      %v5281 = vld [vmem:[%s5270 + $0x28] sm:$0xf]
      %v5282 = vld [vmem:[%s5270 + $0x2c] sm:$0xf]
      %v5283 = vld [vmem:[%s5270 + $0x30] sm:$0xf]
      %v5284 = vld [vmem:[%s5270 + $0x34] sm:$0xf]
      %v5285 = vld [vmem:[%s5270 + $0x38] sm:$0xf]
      %v5286 = vld [vmem:[%s5270 + $0x3c] sm:$0xf]
      %v5287 = vunpack.c.l.b16 %v4899
      %v5288 = vunpack.c.l.b16 %v4909
      %v5289 = vunpack.c.l.b16 %v4923
      %v5290 = vunpack.c.l.b16 %v4933
      %v5291 = vunpack.c.l.b16 %v4947
      %v5292 = vunpack.c.l.b16 %v4957
      %v5293 = vunpack.c.l.b16 %v4971
      %v5294 = vunpack.c.l.b16 %v4981
      %v5295 = vunpack.c.l.b16 %v4995
      %v5296 = vunpack.c.l.b16 %v5005
      %v5297 = vunpack.c.l.b16 %v5019
      %v5298 = vunpack.c.l.b16 %v5029
      %v5299 = vunpack.c.l.b16 %v5043
      %v5300 = vunpack.c.l.b16 %v5053
      %v5301 = vunpack.c.l.b16 %v5067
      %v5302 = vunpack.c.l.b16 %v5077
      %v5303 = vunpack.c.l.b16 %v5091
      %v5304 = vunpack.c.l.b16 %v5101
      %v5305 = vunpack.c.l.b16 %v5115
      %v5306 = vunpack.c.l.b16 %v5125
      %v5307 = vunpack.c.l.b16 %v5139
      %v5308 = vunpack.c.l.b16 %v5149
      %v5309 = vunpack.c.l.b16 %v5163
      %v5310 = vunpack.c.l.b16 %v5173
      %v5311 = vunpack.c.l.b16 %v5187
      %v5312 = vunpack.c.l.b16 %v5197
      %v5313 = vunpack.c.l.b16 %v5211
      %v5314 = vunpack.c.l.b16 %v5221
      %v5315 = vunpack.c.l.b16 %v5235
      %v5316 = vunpack.c.l.b16 %v5245
      %v5317 = vunpack.c.l.b16 %v5259
      %v5318 = vunpack.c.l.b16 %v5269
      %v5319 = vpack.c.b16 %v5288, %v5287
      %v5320 = vpack.c.b16 %v5290, %v5289
      %v5321 = vpack.c.b16 %v5292, %v5291
      %v5322 = vpack.c.b16 %v5294, %v5293
      %v5323 = vpack.c.b16 %v5296, %v5295
      %v5324 = vpack.c.b16 %v5298, %v5297
      %v5325 = vpack.c.b16 %v5300, %v5299
      %v5326 = vpack.c.b16 %v5302, %v5301
      %v5327 = vpack.c.b16 %v5304, %v5303
      %v5328 = vpack.c.b16 %v5306, %v5305
      %v5329 = vpack.c.b16 %v5308, %v5307
      %v5330 = vpack.c.b16 %v5310, %v5309
      %v5331 = vpack.c.b16 %v5312, %v5311
      %v5332 = vpack.c.b16 %v5314, %v5313
      %v5333 = vpack.c.b16 %v5316, %v5315
      %v5334 = vpack.c.b16 %v5318, %v5317
      %v5367 = vunpack.c.l.b16 %v5271
      %v5368 = vunpack.c.l.b16 %v5272
      %v5369 = vunpack.c.l.b16 %v5273
      %v5370 = vunpack.c.l.b16 %v5274
      %v5371 = vunpack.c.l.b16 %v5275
      %v5372 = vunpack.c.l.b16 %v5276
      %v5373 = vunpack.c.l.b16 %v5277
      %v5374 = vunpack.c.l.b16 %v5278
      %v5375 = vunpack.c.l.b16 %v5279
      %v5376 = vunpack.c.l.b16 %v5280
      %v5377 = vunpack.c.l.b16 %v5281
      %v5378 = vunpack.c.l.b16 %v5282
      %v5379 = vunpack.c.l.b16 %v5283
      %v5380 = vunpack.c.l.b16 %v5284
      %v5381 = vunpack.c.l.b16 %v5285
      %v5382 = vunpack.c.l.b16 %v5286
      %v5383 = vpack.c.b16 %v5368, %v5367
      %v5384 = vpack.c.b16 %v5370, %v5369
      %v5385 = vpack.c.b16 %v5372, %v5371
      %v5386 = vpack.c.b16 %v5374, %v5373
      %v5387 = vpack.c.b16 %v5376, %v5375
      %v5388 = vpack.c.b16 %v5378, %v5377
      %v5389 = vpack.c.b16 %v5380, %v5379
      %v5390 = vpack.c.b16 %v5382, %v5381
      %5399 = vmatprep.subr.bf16.mxu0 0
      %5400 = vmatpush1.bf16.msra.mxu0 %v5383
      %5401 = vmatprep.subr.bf16.mxu0 0
      %5402 = vmatpush1.bf16.msra.mxu0 %v5384
      %5403 = vmatprep.subr.bf16.mxu0 0
      %5404 = vmatpush1.bf16.msra.mxu0 %v5385
      %5405 = vmatprep.subr.bf16.mxu0 0
      %5406 = vmatpush1.bf16.msra.mxu0 %v5386
      %5407 = vmatprep.subr.bf16.mxu0 0
      %5408 = vmatpush1.bf16.msra.mxu0 %v5387
      %5409 = vmatprep.subr.bf16.mxu0 0
      %5410 = vmatpush1.bf16.msra.mxu0 %v5388
      %5411 = vmatprep.subr.bf16.mxu0 0
      %5412 = vmatpush1.bf16.msra.mxu0 %v5389
      %5413 = vmatprep.subr.bf16.mxu0 0
      %5414 = vmatpush1.bf16.msra.mxu0 %v5390
      %5415 = vmatprep.subr.bf16.mxu0 0
      %5416 = vmatpush1.bf16.msra.mxu0 0
      %5417 = vmatprep.subr.bf16.mxu0 0
      %5418 = vmatpush1.bf16.msra.mxu0 0
      %5419 = vmatprep.subr.bf16.mxu0 0
      %5420 = vmatpush1.bf16.msra.mxu0 0
      %5421 = vmatprep.subr.bf16.mxu0 0
      %5422 = vmatpush1.bf16.msra.mxu0 0
      %5423 = vmatprep.subr.bf16.mxu0 0
      %5424 = vmatpush1.bf16.msra.mxu0 0
      %5425 = vmatprep.subr.bf16.mxu0 0
      %5426 = vmatpush1.bf16.msra.mxu0 0
      %5427 = vmatprep.subr.bf16.mxu0 0
      %5428 = vmatpush1.bf16.msra.mxu0 0
      %5429 = vmatprep.subr.bf16.mxu0 0
      %5430 = vmatpush1.bf16.msra.mxu0 0
      %5431 = vmatprep.mubr.bf16.mxu0 0
      %5432 = vmatmul.mubr.bf16.gmra.mrb[0].mxu0 %v5319
      %v5433 = vpop.f32.mrb[0].mxu0
      %v5434 = vadd.f32 0.0, %v5433
      %v5435 = vpop.f32.mrb[0].mxu0
      %v5436 = vpop.f32.mrb[0].mxu0
      %v5437 = vadd.f32 0.0, %v5436
      %v5438 = vpop.f32.mrb[0].mxu0
      %5439 = vmatprep.mubr.bf16.mxu0 0
      %5440 = vmatmul.mubr.bf16.gmra.mrb[0].mxu0 %v5320
      %v5441 = vpop.f32.mrb[0].mxu0
      %v5442 = vadd.f32 0.0, %v5441
      %v5443 = vpop.f32.mrb[0].mxu0
      %v5444 = vpop.f32.mrb[0].mxu0
      %v5445 = vadd.f32 0.0, %v5444
      %v5446 = vpop.f32.mrb[0].mxu0
      %5447 = vmatprep.mubr.bf16.mxu0 0
      %5448 = vmatmul.mubr.bf16.gmra.mrb[0].mxu0 %v5321
      %v5449 = vpop.f32.mrb[0].mxu0
      %v5450 = vadd.f32 0.0, %v5449
      %v5451 = vpop.f32.mrb[0].mxu0
      %v5452 = vpop.f32.mrb[0].mxu0
      %v5453 = vadd.f32 0.0, %v5452
      %v5454 = vpop.f32.mrb[0].mxu0
      %5455 = vmatprep.mubr.bf16.mxu0 0
      %5456 = vmatmul.mubr.bf16.gmra.mrb[0].mxu0 %v5322
      %v5457 = vpop.f32.mrb[0].mxu0
      %v5458 = vadd.f32 0.0, %v5457
      %v5459 = vpop.f32.mrb[0].mxu0
      %v5460 = vpop.f32.mrb[0].mxu0
      %v5461 = vadd.f32 0.0, %v5460
      %v5462 = vpop.f32.mrb[0].mxu0
      %5463 = vmatprep.mubr.bf16.mxu0 0
      %5464 = vmatmul.mubr.bf16.gmra.mrb[0].mxu0 %v5323
      %v5465 = vpop.f32.mrb[0].mxu0
      %v5466 = vadd.f32 0.0, %v5465
      %v5467 = vpop.f32.mrb[0].mxu0
      %v5468 = vpop.f32.mrb[0].mxu0
      %v5469 = vadd.f32 0.0, %v5468
      %v5470 = vpop.f32.mrb[0].mxu0
      %5471 = vmatprep.mubr.bf16.mxu0 0
      %5472 = vmatmul.mubr.bf16.gmra.mrb[0].mxu0 %v5324
      %v5473 = vpop.f32.mrb[0].mxu0
      %v5474 = vadd.f32 0.0, %v5473
      %v5475 = vpop.f32.mrb[0].mxu0
      %v5476 = vpop.f32.mrb[0].mxu0
      %v5477 = vadd.f32 0.0, %v5476
      %v5478 = vpop.f32.mrb[0].mxu0
      %5479 = vmatprep.mubr.bf16.mxu0 0
      %5480 = vmatmul.mubr.bf16.gmra.mrb[0].mxu0 %v5325
      %v5481 = vpop.f32.mrb[0].mxu0
      %v5482 = vadd.f32 0.0, %v5481
      %v5483 = vpop.f32.mrb[0].mxu0
      %v5484 = vpop.f32.mrb[0].mxu0
      %v5485 = vadd.f32 0.0, %v5484
      %v5486 = vpop.f32.mrb[0].mxu0
      %5487 = vmatprep.mubr.bf16.mxu0 0
      %5488 = vmatmul.mubr.bf16.gmra.mrb[0].mxu0 %v5326
      %v5489 = vpop.f32.mrb[0].mxu0
      %v5490 = vadd.f32 0.0, %v5489
      %v5491 = vpop.f32.mrb[0].mxu0
      %v5492 = vpop.f32.mrb[0].mxu0
      %v5493 = vadd.f32 0.0, %v5492
      %v5494 = vpop.f32.mrb[0].mxu0
      %5495 = vmatprep.mubr.bf16.mxu0 0
      %5496 = vmatmul.mubr.bf16.gmra.mrb[0].mxu0 %v5327
      %v5497 = vpop.f32.mrb[0].mxu0
      %v5498 = vadd.f32 0.0, %v5497
      %v5499 = vpop.f32.mrb[0].mxu0
      %v5500 = vpop.f32.mrb[0].mxu0
      %v5501 = vadd.f32 0.0, %v5500
      %v5502 = vpop.f32.mrb[0].mxu0
      %5503 = vmatprep.mubr.bf16.mxu0 0
      %5504 = vmatmul.mubr.bf16.gmra.mrb[0].mxu0 %v5328
      %v5505 = vpop.f32.mrb[0].mxu0
      %v5506 = vadd.f32 0.0, %v5505
      %v5507 = vpop.f32.mrb[0].mxu0
      %v5508 = vpop.f32.mrb[0].mxu0
      %v5509 = vadd.f32 0.0, %v5508
      %v5510 = vpop.f32.mrb[0].mxu0
      %5511 = vmatprep.mubr.bf16.mxu0 0
      %5512 = vmatmul.mubr.bf16.gmra.mrb[0].mxu0 %v5329
      %v5513 = vpop.f32.mrb[0].mxu0
      %v5514 = vadd.f32 0.0, %v5513
      %v5515 = vpop.f32.mrb[0].mxu0
      %v5516 = vpop.f32.mrb[0].mxu0
      %v5517 = vadd.f32 0.0, %v5516
      %v5518 = vpop.f32.mrb[0].mxu0
      %5519 = vmatprep.mubr.bf16.mxu0 0
      %5520 = vmatmul.mubr.bf16.gmra.mrb[0].mxu0 %v5330
      %v5521 = vpop.f32.mrb[0].mxu0
      %v5522 = vadd.f32 0.0, %v5521
      %v5523 = vpop.f32.mrb[0].mxu0
      %v5524 = vpop.f32.mrb[0].mxu0
      %v5525 = vadd.f32 0.0, %v5524
      %v5526 = vpop.f32.mrb[0].mxu0
      %5527 = vmatprep.mubr.bf16.mxu0 0
      %5528 = vmatmul.mubr.bf16.gmra.mrb[0].mxu0 %v5331
      %v5529 = vpop.f32.mrb[0].mxu0
      %v5530 = vadd.f32 0.0, %v5529
      %v5531 = vpop.f32.mrb[0].mxu0
      %v5532 = vpop.f32.mrb[0].mxu0
      %v5533 = vadd.f32 0.0, %v5532
      %v5534 = vpop.f32.mrb[0].mxu0
      %5535 = vmatprep.mubr.bf16.mxu0 0
      %5536 = vmatmul.mubr.bf16.gmra.mrb[0].mxu0 %v5332
      %v5537 = vpop.f32.mrb[0].mxu0
      %v5538 = vadd.f32 0.0, %v5537
      %v5539 = vpop.f32.mrb[0].mxu0
      %v5540 = vpop.f32.mrb[0].mxu0
      %v5541 = vadd.f32 0.0, %v5540
      %v5542 = vpop.f32.mrb[0].mxu0
      %5543 = vmatprep.mubr.bf16.mxu0 0
      %5544 = vmatmul.mubr.bf16.gmra.mrb[0].mxu0 %v5333
      %v5545 = vpop.f32.mrb[0].mxu0
      %v5546 = vadd.f32 0.0, %v5545
      %v5547 = vpop.f32.mrb[0].mxu0
      %v5548 = vpop.f32.mrb[0].mxu0
      %v5549 = vadd.f32 0.0, %v5548
      %v5550 = vpop.f32.mrb[0].mxu0
      %5551 = vmatprep.mubr.bf16.mxu0 0
      %5552 = vmatmul.mubr.bf16.gmra.mrb[0].mxu0 %v5334
      %v5553 = vpop.f32.mrb[0].mxu0
      %v5554 = vadd.f32 0.0, %v5553
      %v5555 = vpop.f32.mrb[0].mxu0
      %v5556 = vpop.f32.mrb[0].mxu0
      %v5557 = vadd.f32 0.0, %v5556
      %v5558 = vpop.f32.mrb[0].mxu0
      %5559 = vdwg.mxu0
      %v5560 = vld [vmem:[#allocation3] sm:$0xff]
      %v5561 = vld [vmem:[#allocation3 + $0x8] sm:$0xff]
      %v5562 = vld [vmem:[#allocation3 + $0x10] sm:$0xff]
      %v5563 = vld [vmem:[#allocation3 + $0x18] sm:$0xff]
      %v5564 = vld [vmem:[#allocation3 + $0x20] sm:$0xff]
      %v5565 = vld [vmem:[#allocation3 + $0x28] sm:$0xff]
      %v5566 = vld [vmem:[#allocation3 + $0x30] sm:$0xff]
      %v5567 = vld [vmem:[#allocation3 + $0x38] sm:$0xff]
      %v5568 = vld [vmem:[#allocation3 + $0x40] sm:$0xff]
      %v5569 = vld [vmem:[#allocation3 + $0x48] sm:$0xff]
      %v5570 = vld [vmem:[#allocation3 + $0x50] sm:$0xff]
      %v5571 = vld [vmem:[#allocation3 + $0x58] sm:$0xff]
      %v5572 = vld [vmem:[#allocation3 + $0x60] sm:$0xff]
      %v5573 = vld [vmem:[#allocation3 + $0x68] sm:$0xff]
      %v5574 = vld [vmem:[#allocation3 + $0x70] sm:$0xff]
      %v5575 = vld [vmem:[#allocation3 + $0x78] sm:$0xff]
      %v5576 = vld [vmem:[#allocation3 + $0x80] sm:$0xff]
      %v5577 = vld [vmem:[#allocation3 + $0x88] sm:$0xff]
      %v5578 = vld [vmem:[#allocation3 + $0x90] sm:$0xff]
      %v5579 = vld [vmem:[#allocation3 + $0x98] sm:$0xff]
      %v5580 = vld [vmem:[#allocation3 + $0xa0] sm:$0xff]
      %v5581 = vld [vmem:[#allocation3 + $0xa8] sm:$0xff]
      %v5582 = vld [vmem:[#allocation3 + $0xb0] sm:$0xff]
      %v5583 = vld [vmem:[#allocation3 + $0xb8] sm:$0xff]
      %v5584 = vld [vmem:[#allocation3 + $0xc0] sm:$0xff]
      %v5585 = vld [vmem:[#allocation3 + $0xc8] sm:$0xff]
      %v5586 = vld [vmem:[#allocation3 + $0xd0] sm:$0xff]
      %v5587 = vld [vmem:[#allocation3 + $0xd8] sm:$0xff]
      %v5588 = vld [vmem:[#allocation3 + $0xe0] sm:$0xff]
      %v5589 = vld [vmem:[#allocation3 + $0xe8] sm:$0xff]
      %v5590 = vld [vmem:[#allocation3 + $0xf0] sm:$0xff]
      %v5591 = vld [vmem:[#allocation3 + $0xf8] sm:$0xff]
      %v5592 = vadd.f32 %v5560, %v5434
      %v5593 = vadd.f32 %v5561, %v5437
      %v5594 = vadd.f32 %v5562, %v5442
      %v5595 = vadd.f32 %v5563, %v5445
      %v5596 = vadd.f32 %v5564, %v5450
      %v5597 = vadd.f32 %v5565, %v5453
      %v5598 = vadd.f32 %v5566, %v5458
      %v5599 = vadd.f32 %v5567, %v5461
      %v5600 = vadd.f32 %v5568, %v5466
      %v5601 = vadd.f32 %v5569, %v5469
      %v5602 = vadd.f32 %v5570, %v5474
      %v5603 = vadd.f32 %v5571, %v5477
      %v5604 = vadd.f32 %v5572, %v5482
      %v5605 = vadd.f32 %v5573, %v5485
      %v5606 = vadd.f32 %v5574, %v5490
      %v5607 = vadd.f32 %v5575, %v5493
      %v5608 = vadd.f32 %v5576, %v5498
      %v5609 = vadd.f32 %v5577, %v5501
      %v5610 = vadd.f32 %v5578, %v5506
      %v5611 = vadd.f32 %v5579, %v5509
      %v5612 = vadd.f32 %v5580, %v5514
      %v5613 = vadd.f32 %v5581, %v5517
      %v5614 = vadd.f32 %v5582, %v5522
      %v5615 = vadd.f32 %v5583, %v5525
      %v5616 = vadd.f32 %v5584, %v5530
      %v5617 = vadd.f32 %v5585, %v5533
      %v5618 = vadd.f32 %v5586, %v5538
      %v5619 = vadd.f32 %v5587, %v5541
      %v5620 = vadd.f32 %v5588, %v5546
      %v5621 = vadd.f32 %v5589, %v5549
      %v5622 = vadd.f32 %v5590, %v5554
      %v5623 = vadd.f32 %v5591, %v5557
      %5624 = vst [vmem:[#allocation3] sm:$0xff] %v5592
      %5625 = vst [vmem:[#allocation3 + $0x8] sm:$0xff] %v5593
      %5626 = vst [vmem:[#allocation3 + $0x10] sm:$0xff] %v5594
      %5627 = vst [vmem:[#allocation3 + $0x18] sm:$0xff] %v5595
      %5628 = vst [vmem:[#allocation3 + $0x20] sm:$0xff] %v5596
      %5629 = vst [vmem:[#allocation3 + $0x28] sm:$0xff] %v5597
      %5630 = vst [vmem:[#allocation3 + $0x30] sm:$0xff] %v5598
      %5631 = vst [vmem:[#allocation3 + $0x38] sm:$0xff] %v5599
      %5632 = vst [vmem:[#allocation3 + $0x40] sm:$0xff] %v5600
      %5633 = vst [vmem:[#allocation3 + $0x48] sm:$0xff] %v5601
      %5634 = vst [vmem:[#allocation3 + $0x50] sm:$0xff] %v5602
      %5635 = vst [vmem:[#allocation3 + $0x58] sm:$0xff] %v5603
      %5636 = vst [vmem:[#allocation3 + $0x60] sm:$0xff] %v5604
      %5637 = vst [vmem:[#allocation3 + $0x68] sm:$0xff] %v5605
      %5638 = vst [vmem:[#allocation3 + $0x70] sm:$0xff] %v5606
      %5639 = vst [vmem:[#allocation3 + $0x78] sm:$0xff] %v5607
      %5640 = vst [vmem:[#allocation3 + $0x80] sm:$0xff] %v5608
      %5641 = vst [vmem:[#allocation3 + $0x88] sm:$0xff] %v5609
      %5642 = vst [vmem:[#allocation3 + $0x90] sm:$0xff] %v5610
      %5643 = vst [vmem:[#allocation3 + $0x98] sm:$0xff] %v5611
      %5644 = vst [vmem:[#allocation3 + $0xa0] sm:$0xff] %v5612
      %5645 = vst [vmem:[#allocation3 + $0xa8] sm:$0xff] %v5613
      %5646 = vst [vmem:[#allocation3 + $0xb0] sm:$0xff] %v5614
      %5647 = vst [vmem:[#allocation3 + $0xb8] sm:$0xff] %v5615
      %5648 = vst [vmem:[#allocation3 + $0xc0] sm:$0xff] %v5616
      %5649 = vst [vmem:[#allocation3 + $0xc8] sm:$0xff] %v5617
      %5650 = vst [vmem:[#allocation3 + $0xd0] sm:$0xff] %v5618
      %5651 = vst [vmem:[#allocation3 + $0xd8] sm:$0xff] %v5619
      %5652 = vst [vmem:[#allocation3 + $0xe0] sm:$0xff] %v5620
      %5653 = vst [vmem:[#allocation3 + $0xe8] sm:$0xff] %v5621
      %5654 = vst [vmem:[#allocation3 + $0xf0] sm:$0xff] %v5622
      %5655 = vst [vmem:[#allocation3 + $0xf8] sm:$0xff] %v5623
      %v5656 = vld [vmem:[%s4387] sm:$0xe]
      %v5657 = vld [vmem:[%s4387 + $0x4] sm:$0xf]
      %v5658 = vld [vmem:[%s4387 + $0x8] sm:$0x1]
      %v5659 = vld [vmem:[%s4387 + $0xc] sm:$0xe]
      %v5660 = vld [vmem:[%s4387 + $0x10] sm:$0xf]
      %v5661 = vld [vmem:[%s4387 + $0x14] sm:$0x1]
      %v5662 = vld [vmem:[%s4387 + $0x18] sm:$0xe]
      %v5663 = vld [vmem:[%s4387 + $0x1c] sm:$0xf]
      %v5664 = vld [vmem:[%s4387 + $0x20] sm:$0x1]
      %v5665 = vld [vmem:[%s4387 + $0x24] sm:$0xe]
      %v5666 = vld [vmem:[%s4387 + $0x28] sm:$0xf]
      %v5667 = vld [vmem:[%s4387 + $0x2c] sm:$0x1]
      %v5668 = vld [vmem:[%s4387 + $0x30] sm:$0xe]
      %v5669 = vld [vmem:[%s4387 + $0x34] sm:$0xf]
      %v5670 = vld [vmem:[%s4387 + $0x38] sm:$0x1]
      %v5671 = vld [vmem:[%s4387 + $0x3c] sm:$0xe]
      %v5672 = vld [vmem:[%s4387 + $0x40] sm:$0xf]
      %v5673 = vld [vmem:[%s4387 + $0x44] sm:$0x1]
      %v5674 = vld [vmem:[%s4387 + $0x48] sm:$0xe]
      %v5675 = vld [vmem:[%s4387 + $0x4c] sm:$0xf]
      %v5676 = vld [vmem:[%s4387 + $0x50] sm:$0x1]
      %v5677 = vld [vmem:[%s4387 + $0x54] sm:$0xe]
      %v5678 = vld [vmem:[%s4387 + $0x58] sm:$0xf]
      %v5679 = vld [vmem:[%s4387 + $0x5c] sm:$0x1]
      %v5680 = vld [vmem:[%s4387 + $0x60] sm:$0xe]
      %v5681 = vld [vmem:[%s4387 + $0x64] sm:$0xf]
      %v5682 = vld [vmem:[%s4387 + $0x68] sm:$0x1]
      %v5683 = vld [vmem:[%s4387 + $0x6c] sm:$0xe]
      %v5684 = vld [vmem:[%s4387 + $0x70] sm:$0xf]
      %v5685 = vld [vmem:[%s4387 + $0x74] sm:$0x1]
      %v5686 = vld [vmem:[%s4387 + $0x78] sm:$0xe]
      %v5687 = vld [vmem:[%s4387 + $0x7c] sm:$0xf]
      %v5688 = vld [vmem:[%s4387 + $0x80] sm:$0x1]
      %v5689 = vld [vmem:[%s4387 + $0x84] sm:$0xe]
      %v5690 = vld [vmem:[%s4387 + $0x88] sm:$0xf]
      %v5691 = vld [vmem:[%s4387 + $0x8c] sm:$0x1]
      %v5692 = vld [vmem:[%s4387 + $0x90] sm:$0xe]
      %v5693 = vld [vmem:[%s4387 + $0x94] sm:$0xf]
      %v5694 = vld [vmem:[%s4387 + $0x98] sm:$0x1]
      %v5695 = vld [vmem:[%s4387 + $0x9c] sm:$0xe]
      %v5696 = vld [vmem:[%s4387 + $0xa0] sm:$0xf]
      %v5697 = vld [vmem:[%s4387 + $0xa4] sm:$0x1]
      %v5698 = vld [vmem:[%s4387 + $0xa8] sm:$0xe]
      %v5699 = vld [vmem:[%s4387 + $0xac] sm:$0xf]
      %v5700 = vld [vmem:[%s4387 + $0xb0] sm:$0x1]
      %v5701 = vld [vmem:[%s4387 + $0xb4] sm:$0xe]
      %v5702 = vld [vmem:[%s4387 + $0xb8] sm:$0xf]
      %v5703 = vld [vmem:[%s4387 + $0xbc] sm:$0x1]
      %v5752 = vrot.slane %v5656, 5
      %v5753 = vrot.slane %v5752, 4
      %v5754 = vrot.slane %v5657, 5
      %v5755 = vsel %vm2026, %v5753, %v5754
      %v5756 = vrot.slane %v5754, 4
      %v5757 = vrot.slane %v5658, 5
      %v5758 = vsel %vm2026, %v5756, %v5757
      %v5759 = vrot.slane %v5659, 5
      %v5760 = vrot.slane %v5759, 4
      %v5761 = vrot.slane %v5660, 5
      %v5762 = vsel %vm2026, %v5760, %v5761
      %v5763 = vrot.slane %v5761, 4
      %v5764 = vrot.slane %v5661, 5
      %v5765 = vsel %vm2026, %v5763, %v5764
      %v5766 = vrot.slane %v5662, 5
      %v5767 = vrot.slane %v5766, 4
      %v5768 = vrot.slane %v5663, 5
      %v5769 = vsel %vm2026, %v5767, %v5768
      %v5770 = vrot.slane %v5768, 4
      %v5771 = vrot.slane %v5664, 5
      %v5772 = vsel %vm2026, %v5770, %v5771
      %v5773 = vrot.slane %v5665, 5
      %v5774 = vrot.slane %v5773, 4
      %v5775 = vrot.slane %v5666, 5
      %v5776 = vsel %vm2026, %v5774, %v5775
      %v5777 = vrot.slane %v5775, 4
      %v5778 = vrot.slane %v5667, 5
      %v5779 = vsel %vm2026, %v5777, %v5778
      %v5780 = vrot.slane %v5668, 5
      %v5781 = vrot.slane %v5780, 4
      %v5782 = vrot.slane %v5669, 5
      %v5783 = vsel %vm2026, %v5781, %v5782
      %v5784 = vrot.slane %v5782, 4
      %v5785 = vrot.slane %v5670, 5
      %v5786 = vsel %vm2026, %v5784, %v5785
      %v5787 = vrot.slane %v5671, 5
      %v5788 = vrot.slane %v5787, 4
      %v5789 = vrot.slane %v5672, 5
      %v5790 = vsel %vm2026, %v5788, %v5789
      %v5791 = vrot.slane %v5789, 4
      %v5792 = vrot.slane %v5673, 5
      %v5793 = vsel %vm2026, %v5791, %v5792
      %v5794 = vrot.slane %v5674, 5
      %v5795 = vrot.slane %v5794, 4
      %v5796 = vrot.slane %v5675, 5
      %v5797 = vsel %vm2026, %v5795, %v5796
      %v5798 = vrot.slane %v5796, 4
      %v5799 = vrot.slane %v5676, 5
      %v5800 = vsel %vm2026, %v5798, %v5799
      %v5801 = vrot.slane %v5677, 5
      %v5802 = vrot.slane %v5801, 4
      %v5803 = vrot.slane %v5678, 5
      %v5804 = vsel %vm2026, %v5802, %v5803
      %v5805 = vrot.slane %v5803, 4
      %v5806 = vrot.slane %v5679, 5
      %v5807 = vsel %vm2026, %v5805, %v5806
      %v5808 = vrot.slane %v5680, 5
      %v5809 = vrot.slane %v5808, 4
      %v5810 = vrot.slane %v5681, 5
      %v5811 = vsel %vm2026, %v5809, %v5810
      %v5812 = vrot.slane %v5810, 4
      %v5813 = vrot.slane %v5682, 5
      %v5814 = vsel %vm2026, %v5812, %v5813
      %v5815 = vrot.slane %v5683, 5
      %v5816 = vrot.slane %v5815, 4
      %v5817 = vrot.slane %v5684, 5
      %v5818 = vsel %vm2026, %v5816, %v5817
      %v5819 = vrot.slane %v5817, 4
      %v5820 = vrot.slane %v5685, 5
      %v5821 = vsel %vm2026, %v5819, %v5820
      %v5822 = vrot.slane %v5686, 5
      %v5823 = vrot.slane %v5822, 4
      %v5824 = vrot.slane %v5687, 5
      %v5825 = vsel %vm2026, %v5823, %v5824
      %v5826 = vrot.slane %v5824, 4
      %v5827 = vrot.slane %v5688, 5
      %v5828 = vsel %vm2026, %v5826, %v5827
      %v5829 = vrot.slane %v5689, 5
      %v5830 = vrot.slane %v5829, 4
      %v5831 = vrot.slane %v5690, 5
      %v5832 = vsel %vm2026, %v5830, %v5831
      %v5833 = vrot.slane %v5831, 4
      %v5834 = vrot.slane %v5691, 5
      %v5835 = vsel %vm2026, %v5833, %v5834
      %v5836 = vrot.slane %v5692, 5
      %v5837 = vrot.slane %v5836, 4
      %v5838 = vrot.slane %v5693, 5
      %v5839 = vsel %vm2026, %v5837, %v5838
      %v5840 = vrot.slane %v5838, 4
      %v5841 = vrot.slane %v5694, 5
      %v5842 = vsel %vm2026, %v5840, %v5841
      %v5843 = vrot.slane %v5695, 5
      %v5844 = vrot.slane %v5843, 4
      %v5845 = vrot.slane %v5696, 5
      %v5846 = vsel %vm2026, %v5844, %v5845
      %v5847 = vrot.slane %v5845, 4
      %v5848 = vrot.slane %v5697, 5
      %v5849 = vsel %vm2026, %v5847, %v5848
      %v5850 = vrot.slane %v5698, 5
      %v5851 = vrot.slane %v5850, 4
      %v5852 = vrot.slane %v5699, 5
      %v5853 = vsel %vm2026, %v5851, %v5852
      %v5854 = vrot.slane %v5852, 4
      %v5855 = vrot.slane %v5700, 5
      %v5856 = vsel %vm2026, %v5854, %v5855
      %v5857 = vrot.slane %v5701, 5
      %v5858 = vrot.slane %v5857, 4
      %v5859 = vrot.slane %v5702, 5
      %v5860 = vsel %vm2026, %v5858, %v5859
      %v5861 = vrot.slane %v5859, 4
      %v5862 = vrot.slane %v5703, 5
      %v5863 = vsel %vm2026, %v5861, %v5862
      %s5864 = scalar_lea.vmem %s1, 512
      %v5865 = vld [vmem:[%s5864] sm:$0xf]
      %v5866 = vld [vmem:[%s5864 + $0x4] sm:$0xf]
      %v5867 = vld [vmem:[%s5864 + $0x8] sm:$0xf]
      %v5868 = vld [vmem:[%s5864 + $0xc] sm:$0xf]
      %v5869 = vld [vmem:[%s5864 + $0x10] sm:$0xf]
      %v5870 = vld [vmem:[%s5864 + $0x14] sm:$0xf]
      %v5871 = vld [vmem:[%s5864 + $0x18] sm:$0xf]
      %v5872 = vld [vmem:[%s5864 + $0x1c] sm:$0xf]
      %v5873 = vld [vmem:[%s5864 + $0x20] sm:$0xf]
      %v5874 = vld [vmem:[%s5864 + $0x24] sm:$0xf]
      %v5875 = vld [vmem:[%s5864 + $0x28] sm:$0xf]
      %v5876 = vld [vmem:[%s5864 + $0x2c] sm:$0xf]
      %v5877 = vld [vmem:[%s5864 + $0x30] sm:$0xf]
      %v5878 = vld [vmem:[%s5864 + $0x34] sm:$0xf]
      %v5879 = vld [vmem:[%s5864 + $0x38] sm:$0xf]
      %v5880 = vld [vmem:[%s5864 + $0x3c] sm:$0xf]
      %v5881 = vunpack.c.l.b16 %v5755
      %v5882 = vunpack.c.l.b16 %v5758
      %v5883 = vunpack.c.l.b16 %v5762
      %v5884 = vunpack.c.l.b16 %v5765
      %v5885 = vunpack.c.l.b16 %v5769
      %v5886 = vunpack.c.l.b16 %v5772
      %v5887 = vunpack.c.l.b16 %v5776
      %v5888 = vunpack.c.l.b16 %v5779
      %v5889 = vunpack.c.l.b16 %v5783
      %v5890 = vunpack.c.l.b16 %v5786
      %v5891 = vunpack.c.l.b16 %v5790
      %v5892 = vunpack.c.l.b16 %v5793
      %v5893 = vunpack.c.l.b16 %v5797
      %v5894 = vunpack.c.l.b16 %v5800
      %v5895 = vunpack.c.l.b16 %v5804
      %v5896 = vunpack.c.l.b16 %v5807
      %v5897 = vunpack.c.l.b16 %v5811
      %v5898 = vunpack.c.l.b16 %v5814
      %v5899 = vunpack.c.l.b16 %v5818
      %v5900 = vunpack.c.l.b16 %v5821
      %v5901 = vunpack.c.l.b16 %v5825
      %v5902 = vunpack.c.l.b16 %v5828
      %v5903 = vunpack.c.l.b16 %v5832
      %v5904 = vunpack.c.l.b16 %v5835
      %v5905 = vunpack.c.l.b16 %v5839
      %v5906 = vunpack.c.l.b16 %v5842
      %v5907 = vunpack.c.l.b16 %v5846
      %v5908 = vunpack.c.l.b16 %v5849
      %v5909 = vunpack.c.l.b16 %v5853
      %v5910 = vunpack.c.l.b16 %v5856
      %v5911 = vunpack.c.l.b16 %v5860
      %v5912 = vunpack.c.l.b16 %v5863
      %v5913 = vpack.c.b16 %v5882, %v5881
      %v5914 = vpack.c.b16 %v5884, %v5883
      %v5915 = vpack.c.b16 %v5886, %v5885
      %v5916 = vpack.c.b16 %v5888, %v5887
      %v5917 = vpack.c.b16 %v5890, %v5889
      %v5918 = vpack.c.b16 %v5892, %v5891
      %v5919 = vpack.c.b16 %v5894, %v5893
      %v5920 = vpack.c.b16 %v5896, %v5895
      %v5921 = vpack.c.b16 %v5898, %v5897
      %v5922 = vpack.c.b16 %v5900, %v5899
      %v5923 = vpack.c.b16 %v5902, %v5901
      %v5924 = vpack.c.b16 %v5904, %v5903
      %v5925 = vpack.c.b16 %v5906, %v5905
      %v5926 = vpack.c.b16 %v5908, %v5907
      %v5927 = vpack.c.b16 %v5910, %v5909
      %v5928 = vpack.c.b16 %v5912, %v5911
      %v5961 = vunpack.c.l.b16 %v5865
      %v5962 = vunpack.c.l.b16 %v5866
      %v5963 = vunpack.c.l.b16 %v5867
      %v5964 = vunpack.c.l.b16 %v5868
      %v5965 = vunpack.c.l.b16 %v5869
      %v5966 = vunpack.c.l.b16 %v5870
      %v5967 = vunpack.c.l.b16 %v5871
      %v5968 = vunpack.c.l.b16 %v5872
      %v5969 = vunpack.c.l.b16 %v5873
      %v5970 = vunpack.c.l.b16 %v5874
      %v5971 = vunpack.c.l.b16 %v5875
      %v5972 = vunpack.c.l.b16 %v5876
      %v5973 = vunpack.c.l.b16 %v5877
      %v5974 = vunpack.c.l.b16 %v5878
      %v5975 = vunpack.c.l.b16 %v5879
      %v5976 = vunpack.c.l.b16 %v5880
      %v5977 = vpack.c.b16 %v5962, %v5961
      %v5978 = vpack.c.b16 %v5964, %v5963
      %v5979 = vpack.c.b16 %v5966, %v5965
      %v5980 = vpack.c.b16 %v5968, %v5967
      %v5981 = vpack.c.b16 %v5970, %v5969
      %v5982 = vpack.c.b16 %v5972, %v5971
      %v5983 = vpack.c.b16 %v5974, %v5973
      %v5984 = vpack.c.b16 %v5976, %v5975
      %5993 = vmatprep.subr.bf16.mxu0 0
      %5994 = vmatpush1.bf16.msra.mxu0 %v5977
      %5995 = vmatprep.subr.bf16.mxu0 0
      %5996 = vmatpush1.bf16.msra.mxu0 %v5978
      %5997 = vmatprep.subr.bf16.mxu0 0
      %5998 = vmatpush1.bf16.msra.mxu0 %v5979
      %5999 = vmatprep.subr.bf16.mxu0 0
      %6000 = vmatpush1.bf16.msra.mxu0 %v5980
      %6001 = vmatprep.subr.bf16.mxu0 0
      %6002 = vmatpush1.bf16.msra.mxu0 %v5981
      %6003 = vmatprep.subr.bf16.mxu0 0
      %6004 = vmatpush1.bf16.msra.mxu0 %v5982
      %6005 = vmatprep.subr.bf16.mxu0 0
      %6006 = vmatpush1.bf16.msra.mxu0 %v5983
      %6007 = vmatprep.subr.bf16.mxu0 0
      %6008 = vmatpush1.bf16.msra.mxu0 %v5984
      %6009 = vmatprep.subr.bf16.mxu0 0
      %6010 = vmatpush1.bf16.msra.mxu0 0
      %6011 = vmatprep.subr.bf16.mxu0 0
      %6012 = vmatpush1.bf16.msra.mxu0 0
      %6013 = vmatprep.subr.bf16.mxu0 0
      %6014 = vmatpush1.bf16.msra.mxu0 0
      %6015 = vmatprep.subr.bf16.mxu0 0
      %6016 = vmatpush1.bf16.msra.mxu0 0
      %6017 = vmatprep.subr.bf16.mxu0 0
      %6018 = vmatpush1.bf16.msra.mxu0 0
      %6019 = vmatprep.subr.bf16.mxu0 0
      %6020 = vmatpush1.bf16.msra.mxu0 0
      %6021 = vmatprep.subr.bf16.mxu0 0
      %6022 = vmatpush1.bf16.msra.mxu0 0
      %6023 = vmatprep.subr.bf16.mxu0 0
      %6024 = vmatpush1.bf16.msra.mxu0 0
      %6025 = vmatprep.mubr.bf16.mxu0 0
      %6026 = vmatmul.mubr.bf16.gmra.mrb[0].mxu0 %v5913
      %v6027 = vpop.f32.mrb[0].mxu0
      %v6028 = vadd.f32 0.0, %v6027
      %v6029 = vpop.f32.mrb[0].mxu0
      %v6030 = vpop.f32.mrb[0].mxu0
      %v6031 = vadd.f32 0.0, %v6030
      %v6032 = vpop.f32.mrb[0].mxu0
      %6033 = vmatprep.mubr.bf16.mxu0 0
      %6034 = vmatmul.mubr.bf16.gmra.mrb[0].mxu0 %v5914
      %v6035 = vpop.f32.mrb[0].mxu0
      %v6036 = vadd.f32 0.0, %v6035
      %v6037 = vpop.f32.mrb[0].mxu0
      %v6038 = vpop.f32.mrb[0].mxu0
      %v6039 = vadd.f32 0.0, %v6038
      %v6040 = vpop.f32.mrb[0].mxu0
      %6041 = vmatprep.mubr.bf16.mxu0 0
      %6042 = vmatmul.mubr.bf16.gmra.mrb[0].mxu0 %v5915
      %v6043 = vpop.f32.mrb[0].mxu0
      %v6044 = vadd.f32 0.0, %v6043
      %v6045 = vpop.f32.mrb[0].mxu0
      %v6046 = vpop.f32.mrb[0].mxu0
      %v6047 = vadd.f32 0.0, %v6046
      %v6048 = vpop.f32.mrb[0].mxu0
      %6049 = vmatprep.mubr.bf16.mxu0 0
      %6050 = vmatmul.mubr.bf16.gmra.mrb[0].mxu0 %v5916
      %v6051 = vpop.f32.mrb[0].mxu0
      %v6052 = vadd.f32 0.0, %v6051
      %v6053 = vpop.f32.mrb[0].mxu0
      %v6054 = vpop.f32.mrb[0].mxu0
      %v6055 = vadd.f32 0.0, %v6054
      %v6056 = vpop.f32.mrb[0].mxu0
      %6057 = vmatprep.mubr.bf16.mxu0 0
      %6058 = vmatmul.mubr.bf16.gmra.mrb[0].mxu0 %v5917
      %v6059 = vpop.f32.mrb[0].mxu0
      %v6060 = vadd.f32 0.0, %v6059
      %v6061 = vpop.f32.mrb[0].mxu0
      %v6062 = vpop.f32.mrb[0].mxu0
      %v6063 = vadd.f32 0.0, %v6062
      %v6064 = vpop.f32.mrb[0].mxu0
      %6065 = vmatprep.mubr.bf16.mxu0 0
      %6066 = vmatmul.mubr.bf16.gmra.mrb[0].mxu0 %v5918
      %v6067 = vpop.f32.mrb[0].mxu0
      %v6068 = vadd.f32 0.0, %v6067
      %v6069 = vpop.f32.mrb[0].mxu0
      %v6070 = vpop.f32.mrb[0].mxu0
      %v6071 = vadd.f32 0.0, %v6070
      %v6072 = vpop.f32.mrb[0].mxu0
      %6073 = vmatprep.mubr.bf16.mxu0 0
      %6074 = vmatmul.mubr.bf16.gmra.mrb[0].mxu0 %v5919
      %v6075 = vpop.f32.mrb[0].mxu0
      %v6076 = vadd.f32 0.0, %v6075
      %v6077 = vpop.f32.mrb[0].mxu0
      %v6078 = vpop.f32.mrb[0].mxu0
      %v6079 = vadd.f32 0.0, %v6078
      %v6080 = vpop.f32.mrb[0].mxu0
      %6081 = vmatprep.mubr.bf16.mxu0 0
      %6082 = vmatmul.mubr.bf16.gmra.mrb[0].mxu0 %v5920
      %v6083 = vpop.f32.mrb[0].mxu0
      %v6084 = vadd.f32 0.0, %v6083
      %v6085 = vpop.f32.mrb[0].mxu0
      %v6086 = vpop.f32.mrb[0].mxu0
      %v6087 = vadd.f32 0.0, %v6086
      %v6088 = vpop.f32.mrb[0].mxu0
      %6089 = vmatprep.mubr.bf16.mxu0 0
      %6090 = vmatmul.mubr.bf16.gmra.mrb[0].mxu0 %v5921
      %v6091 = vpop.f32.mrb[0].mxu0
      %v6092 = vadd.f32 0.0, %v6091
      %v6093 = vpop.f32.mrb[0].mxu0
      %v6094 = vpop.f32.mrb[0].mxu0
      %v6095 = vadd.f32 0.0, %v6094
      %v6096 = vpop.f32.mrb[0].mxu0
      %6097 = vmatprep.mubr.bf16.mxu0 0
      %6098 = vmatmul.mubr.bf16.gmra.mrb[0].mxu0 %v5922
      %v6099 = vpop.f32.mrb[0].mxu0
      %v6100 = vadd.f32 0.0, %v6099
      %v6101 = vpop.f32.mrb[0].mxu0
      %v6102 = vpop.f32.mrb[0].mxu0
      %v6103 = vadd.f32 0.0, %v6102
      %v6104 = vpop.f32.mrb[0].mxu0
      %6105 = vmatprep.mubr.bf16.mxu0 0
      %6106 = vmatmul.mubr.bf16.gmra.mrb[0].mxu0 %v5923
      %v6107 = vpop.f32.mrb[0].mxu0
      %v6108 = vadd.f32 0.0, %v6107
      %v6109 = vpop.f32.mrb[0].mxu0
      %v6110 = vpop.f32.mrb[0].mxu0
      %v6111 = vadd.f32 0.0, %v6110
      %v6112 = vpop.f32.mrb[0].mxu0
      %6113 = vmatprep.mubr.bf16.mxu0 0
      %6114 = vmatmul.mubr.bf16.gmra.mrb[0].mxu0 %v5924
      %v6115 = vpop.f32.mrb[0].mxu0
      %v6116 = vadd.f32 0.0, %v6115
      %v6117 = vpop.f32.mrb[0].mxu0
      %v6118 = vpop.f32.mrb[0].mxu0
      %v6119 = vadd.f32 0.0, %v6118
      %v6120 = vpop.f32.mrb[0].mxu0
      %6121 = vmatprep.mubr.bf16.mxu0 0
      %6122 = vmatmul.mubr.bf16.gmra.mrb[0].mxu0 %v5925
      %v6123 = vpop.f32.mrb[0].mxu0
      %v6124 = vadd.f32 0.0, %v6123
      %v6125 = vpop.f32.mrb[0].mxu0
      %v6126 = vpop.f32.mrb[0].mxu0
      %v6127 = vadd.f32 0.0, %v6126
      %v6128 = vpop.f32.mrb[0].mxu0
      %6129 = vmatprep.mubr.bf16.mxu0 0
      %6130 = vmatmul.mubr.bf16.gmra.mrb[0].mxu0 %v5926
      %v6131 = vpop.f32.mrb[0].mxu0
      %v6132 = vadd.f32 0.0, %v6131
      %v6133 = vpop.f32.mrb[0].mxu0
      %v6134 = vpop.f32.mrb[0].mxu0
      %v6135 = vadd.f32 0.0, %v6134
      %v6136 = vpop.f32.mrb[0].mxu0
      %6137 = vmatprep.mubr.bf16.mxu0 0
      %6138 = vmatmul.mubr.bf16.gmra.mrb[0].mxu0 %v5927
      %v6139 = vpop.f32.mrb[0].mxu0
      %v6140 = vadd.f32 0.0, %v6139
      %v6141 = vpop.f32.mrb[0].mxu0
      %v6142 = vpop.f32.mrb[0].mxu0
      %v6143 = vadd.f32 0.0, %v6142
      %v6144 = vpop.f32.mrb[0].mxu0
      %6145 = vmatprep.mubr.bf16.mxu0 0
      %6146 = vmatmul.mubr.bf16.gmra.mrb[0].mxu0 %v5928
      %v6147 = vpop.f32.mrb[0].mxu0
      %v6148 = vadd.f32 0.0, %v6147
      %v6149 = vpop.f32.mrb[0].mxu0
      %v6150 = vpop.f32.mrb[0].mxu0
      %v6151 = vadd.f32 0.0, %v6150
      %v6152 = vpop.f32.mrb[0].mxu0
      %6153 = vdwg.mxu0
      %v6154 = vld [vmem:[#allocation3] sm:$0xff]
      %v6155 = vld [vmem:[#allocation3 + $0x8] sm:$0xff]
      %v6156 = vld [vmem:[#allocation3 + $0x10] sm:$0xff]
      %v6157 = vld [vmem:[#allocation3 + $0x18] sm:$0xff]
      %v6158 = vld [vmem:[#allocation3 + $0x20] sm:$0xff]
      %v6159 = vld [vmem:[#allocation3 + $0x28] sm:$0xff]
      %v6160 = vld [vmem:[#allocation3 + $0x30] sm:$0xff]
      %v6161 = vld [vmem:[#allocation3 + $0x38] sm:$0xff]
      %v6162 = vld [vmem:[#allocation3 + $0x40] sm:$0xff]
      %v6163 = vld [vmem:[#allocation3 + $0x48] sm:$0xff]
      %v6164 = vld [vmem:[#allocation3 + $0x50] sm:$0xff]
      %v6165 = vld [vmem:[#allocation3 + $0x58] sm:$0xff]
      %v6166 = vld [vmem:[#allocation3 + $0x60] sm:$0xff]
      %v6167 = vld [vmem:[#allocation3 + $0x68] sm:$0xff]
      %v6168 = vld [vmem:[#allocation3 + $0x70] sm:$0xff]
      %v6169 = vld [vmem:[#allocation3 + $0x78] sm:$0xff]
      %v6170 = vld [vmem:[#allocation3 + $0x80] sm:$0xff]
      %v6171 = vld [vmem:[#allocation3 + $0x88] sm:$0xff]
      %v6172 = vld [vmem:[#allocation3 + $0x90] sm:$0xff]
      %v6173 = vld [vmem:[#allocation3 + $0x98] sm:$0xff]
      %v6174 = vld [vmem:[#allocation3 + $0xa0] sm:$0xff]
      %v6175 = vld [vmem:[#allocation3 + $0xa8] sm:$0xff]
      %v6176 = vld [vmem:[#allocation3 + $0xb0] sm:$0xff]
      %v6177 = vld [vmem:[#allocation3 + $0xb8] sm:$0xff]
      %v6178 = vld [vmem:[#allocation3 + $0xc0] sm:$0xff]
      %v6179 = vld [vmem:[#allocation3 + $0xc8] sm:$0xff]
      %v6180 = vld [vmem:[#allocation3 + $0xd0] sm:$0xff]
      %v6181 = vld [vmem:[#allocation3 + $0xd8] sm:$0xff]
      %v6182 = vld [vmem:[#allocation3 + $0xe0] sm:$0xff]
      %v6183 = vld [vmem:[#allocation3 + $0xe8] sm:$0xff]
      %v6184 = vld [vmem:[#allocation3 + $0xf0] sm:$0xff]
      %v6185 = vld [vmem:[#allocation3 + $0xf8] sm:$0xff]
      %v6186 = vadd.f32 %v6154, %v6028
      %v6187 = vadd.f32 %v6155, %v6031
      %v6188 = vadd.f32 %v6156, %v6036
      %v6189 = vadd.f32 %v6157, %v6039
      %v6190 = vadd.f32 %v6158, %v6044
      %v6191 = vadd.f32 %v6159, %v6047
      %v6192 = vadd.f32 %v6160, %v6052
      %v6193 = vadd.f32 %v6161, %v6055
      %v6194 = vadd.f32 %v6162, %v6060
      %v6195 = vadd.f32 %v6163, %v6063
      %v6196 = vadd.f32 %v6164, %v6068
      %v6197 = vadd.f32 %v6165, %v6071
      %v6198 = vadd.f32 %v6166, %v6076
      %v6199 = vadd.f32 %v6167, %v6079
      %v6200 = vadd.f32 %v6168, %v6084
      %v6201 = vadd.f32 %v6169, %v6087
      %v6202 = vadd.f32 %v6170, %v6092
      %v6203 = vadd.f32 %v6171, %v6095
      %v6204 = vadd.f32 %v6172, %v6100
      %v6205 = vadd.f32 %v6173, %v6103
      %v6206 = vadd.f32 %v6174, %v6108
      %v6207 = vadd.f32 %v6175, %v6111
      %v6208 = vadd.f32 %v6176, %v6116
      %v6209 = vadd.f32 %v6177, %v6119
      %v6210 = vadd.f32 %v6178, %v6124
      %v6211 = vadd.f32 %v6179, %v6127
      %v6212 = vadd.f32 %v6180, %v6132
      %v6213 = vadd.f32 %v6181, %v6135
      %v6214 = vadd.f32 %v6182, %v6140
      %v6215 = vadd.f32 %v6183, %v6143
      %v6216 = vadd.f32 %v6184, %v6148
      %v6217 = vadd.f32 %v6185, %v6151
      %6218 = vst [vmem:[#allocation3] sm:$0xff] %v6186
      %6219 = vst [vmem:[#allocation3 + $0x8] sm:$0xff] %v6187
      %6220 = vst [vmem:[#allocation3 + $0x10] sm:$0xff] %v6188
      %6221 = vst [vmem:[#allocation3 + $0x18] sm:$0xff] %v6189
      %6222 = vst [vmem:[#allocation3 + $0x20] sm:$0xff] %v6190
      %6223 = vst [vmem:[#allocation3 + $0x28] sm:$0xff] %v6191
      %6224 = vst [vmem:[#allocation3 + $0x30] sm:$0xff] %v6192
      %6225 = vst [vmem:[#allocation3 + $0x38] sm:$0xff] %v6193
      %6226 = vst [vmem:[#allocation3 + $0x40] sm:$0xff] %v6194
      %6227 = vst [vmem:[#allocation3 + $0x48] sm:$0xff] %v6195
      %6228 = vst [vmem:[#allocation3 + $0x50] sm:$0xff] %v6196
      %6229 = vst [vmem:[#allocation3 + $0x58] sm:$0xff] %v6197
      %6230 = vst [vmem:[#allocation3 + $0x60] sm:$0xff] %v6198
      %6231 = vst [vmem:[#allocation3 + $0x68] sm:$0xff] %v6199
      %6232 = vst [vmem:[#allocation3 + $0x70] sm:$0xff] %v6200
      %6233 = vst [vmem:[#allocation3 + $0x78] sm:$0xff] %v6201
      %6234 = vst [vmem:[#allocation3 + $0x80] sm:$0xff] %v6202
      %6235 = vst [vmem:[#allocation3 + $0x88] sm:$0xff] %v6203
      %6236 = vst [vmem:[#allocation3 + $0x90] sm:$0xff] %v6204
      %6237 = vst [vmem:[#allocation3 + $0x98] sm:$0xff] %v6205
      %6238 = vst [vmem:[#allocation3 + $0xa0] sm:$0xff] %v6206
      %6239 = vst [vmem:[#allocation3 + $0xa8] sm:$0xff] %v6207
      %6240 = vst [vmem:[#allocation3 + $0xb0] sm:$0xff] %v6208
      %6241 = vst [vmem:[#allocation3 + $0xb8] sm:$0xff] %v6209
      %6242 = vst [vmem:[#allocation3 + $0xc0] sm:$0xff] %v6210
      %6243 = vst [vmem:[#allocation3 + $0xc8] sm:$0xff] %v6211
      %6244 = vst [vmem:[#allocation3 + $0xd0] sm:$0xff] %v6212
      %6245 = vst [vmem:[#allocation3 + $0xd8] sm:$0xff] %v6213
      %6246 = vst [vmem:[#allocation3 + $0xe0] sm:$0xff] %v6214
      %6247 = vst [vmem:[#allocation3 + $0xe8] sm:$0xff] %v6215
      %6248 = vst [vmem:[#allocation3 + $0xf0] sm:$0xff] %v6216
      %6249 = vst [vmem:[#allocation3 + $0xf8] sm:$0xff] %v6217
      %v6250 = vld [vmem:[#allocation3] sm:$0xff]
      %v6251 = vld [vmem:[#allocation3 + $0x8] sm:$0xff]
      %v6252 = vld [vmem:[#allocation3 + $0x10] sm:$0xff]
      %v6253 = vld [vmem:[#allocation3 + $0x18] sm:$0xff]
      %v6254 = vld [vmem:[#allocation3 + $0x20] sm:$0xff]
      %v6255 = vld [vmem:[#allocation3 + $0x28] sm:$0xff]
      %v6256 = vld [vmem:[#allocation3 + $0x30] sm:$0xff]
      %v6257 = vld [vmem:[#allocation3 + $0x38] sm:$0xff]
      %v6258 = vld [vmem:[#allocation3 + $0x40] sm:$0xff]
      %v6259 = vld [vmem:[#allocation3 + $0x48] sm:$0xff]
      %v6260 = vld [vmem:[#allocation3 + $0x50] sm:$0xff]
      %v6261 = vld [vmem:[#allocation3 + $0x58] sm:$0xff]
      %v6262 = vld [vmem:[#allocation3 + $0x60] sm:$0xff]
      %v6263 = vld [vmem:[#allocation3 + $0x68] sm:$0xff]
      %v6264 = vld [vmem:[#allocation3 + $0x70] sm:$0xff]
      %v6265 = vld [vmem:[#allocation3 + $0x78] sm:$0xff]
      %v6266 = vld [vmem:[#allocation3 + $0x80] sm:$0xff]
      %v6267 = vld [vmem:[#allocation3 + $0x88] sm:$0xff]
      %v6268 = vld [vmem:[#allocation3 + $0x90] sm:$0xff]
      %v6269 = vld [vmem:[#allocation3 + $0x98] sm:$0xff]
      %v6270 = vld [vmem:[#allocation3 + $0xa0] sm:$0xff]
      %v6271 = vld [vmem:[#allocation3 + $0xa8] sm:$0xff]
      %v6272 = vld [vmem:[#allocation3 + $0xb0] sm:$0xff]
      %v6273 = vld [vmem:[#allocation3 + $0xb8] sm:$0xff]
      %v6274 = vld [vmem:[#allocation3 + $0xc0] sm:$0xff]
      %v6275 = vld [vmem:[#allocation3 + $0xc8] sm:$0xff]
      %v6276 = vld [vmem:[#allocation3 + $0xd0] sm:$0xff]
      %v6277 = vld [vmem:[#allocation3 + $0xd8] sm:$0xff]
      %v6278 = vld [vmem:[#allocation3 + $0xe0] sm:$0xff]
      %v6279 = vld [vmem:[#allocation3 + $0xe8] sm:$0xff]
      %v6280 = vld [vmem:[#allocation3 + $0xf0] sm:$0xff]
      %v6281 = vld [vmem:[#allocation3 + $0xf8] sm:$0xff]
      %v6282 = vadd.f32 %v6250, %v6251
      %v6283 = vadd.f32 %v6282, %v6252
      %v6284 = vadd.f32 %v6283, %v6253
      %v6285 = vadd.f32 %v6284, %v6254
      %v6286 = vadd.f32 %v6285, %v6255
      %v6287 = vadd.f32 %v6286, %v6256
      %v6288 = vadd.f32 %v6287, %v6257
      %v6289 = vadd.f32 %v6288, %v6258
      %v6290 = vadd.f32 %v6289, %v6259
      %v6291 = vadd.f32 %v6290, %v6260
      %v6292 = vadd.f32 %v6291, %v6261
      %v6293 = vadd.f32 %v6292, %v6262
      %v6294 = vadd.f32 %v6293, %v6263
      %v6295 = vadd.f32 %v6294, %v6264
      %v6296 = vadd.f32 %v6295, %v6265
      %v6297 = vadd.f32 %v6296, %v6266
      %v6298 = vadd.f32 %v6297, %v6267
      %v6299 = vadd.f32 %v6298, %v6268
      %v6300 = vadd.f32 %v6299, %v6269
      %v6301 = vadd.f32 %v6300, %v6270
      %v6302 = vadd.f32 %v6301, %v6271
      %v6303 = vadd.f32 %v6302, %v6272
      %v6304 = vadd.f32 %v6303, %v6273
      %v6305 = vadd.f32 %v6304, %v6274
      %v6306 = vadd.f32 %v6305, %v6275
      %v6307 = vadd.f32 %v6306, %v6276
      %v6308 = vadd.f32 %v6307, %v6277
      %v6309 = vadd.f32 %v6308, %v6278
      %v6310 = vadd.f32 %v6309, %v6279
      %v6311 = vadd.f32 %v6310, %v6280
      %v6312 = vadd.f32 %v6311, %v6281
      %v6313 = vrot.slane %v6312, 4
      %v6314 = vadd.f32 %v6312, %v6313
      %v6315 = vrot.slane %v6314, 2
      %v6316 = vadd.f32 %v6314, %v6315
      %v6317 = vrot.slane %v6316, 1
      %v6318 = vadd.f32 %v6316, %v6317
      %v6319 = vmul.f32 %v6318, 0.00390625
      %v6320 = vmul.f32 %v6250, %v6250
      %v6321 = vmul.f32 %v6251, %v6251
      %v6322 = vmul.f32 %v6252, %v6252
      %v6323 = vmul.f32 %v6253, %v6253
      %v6324 = vmul.f32 %v6254, %v6254
      %v6325 = vmul.f32 %v6255, %v6255
      %v6326 = vmul.f32 %v6256, %v6256
      %v6327 = vmul.f32 %v6257, %v6257
      %v6328 = vmul.f32 %v6258, %v6258
      %v6329 = vmul.f32 %v6259, %v6259
      %v6330 = vmul.f32 %v6260, %v6260
      %v6331 = vmul.f32 %v6261, %v6261
      %v6332 = vmul.f32 %v6262, %v6262
      %v6333 = vmul.f32 %v6263, %v6263
      %v6334 = vmul.f32 %v6264, %v6264
      %v6335 = vmul.f32 %v6265, %v6265
      %v6336 = vmul.f32 %v6266, %v6266
      %v6337 = vmul.f32 %v6267, %v6267
      %v6338 = vmul.f32 %v6268, %v6268
      %v6339 = vmul.f32 %v6269, %v6269
      %v6340 = vmul.f32 %v6270, %v6270
      %v6341 = vmul.f32 %v6271, %v6271
      %v6342 = vmul.f32 %v6272, %v6272
      %v6343 = vmul.f32 %v6273, %v6273
      %v6344 = vmul.f32 %v6274, %v6274
      %v6345 = vmul.f32 %v6275, %v6275
      %v6346 = vmul.f32 %v6276, %v6276
      %v6347 = vmul.f32 %v6277, %v6277
      %v6348 = vmul.f32 %v6278, %v6278
      %v6349 = vmul.f32 %v6279, %v6279
      %v6350 = vmul.f32 %v6280, %v6280
      %v6351 = vmul.f32 %v6281, %v6281
      %v6352 = vadd.f32 %v6320, %v6321
      %v6353 = vadd.f32 %v6352, %v6322
      %v6354 = vadd.f32 %v6353, %v6323
      %v6355 = vadd.f32 %v6354, %v6324
      %v6356 = vadd.f32 %v6355, %v6325
      %v6357 = vadd.f32 %v6356, %v6326
      %v6358 = vadd.f32 %v6357, %v6327
      %v6359 = vadd.f32 %v6358, %v6328
      %v6360 = vadd.f32 %v6359, %v6329
      %v6361 = vadd.f32 %v6360, %v6330
      %v6362 = vadd.f32 %v6361, %v6331
      %v6363 = vadd.f32 %v6362, %v6332
      %v6364 = vadd.f32 %v6363, %v6333
      %v6365 = vadd.f32 %v6364, %v6334
      %v6366 = vadd.f32 %v6365, %v6335
      %v6367 = vadd.f32 %v6366, %v6336
      %v6368 = vadd.f32 %v6367, %v6337
      %v6369 = vadd.f32 %v6368, %v6338
      %v6370 = vadd.f32 %v6369, %v6339
      %v6371 = vadd.f32 %v6370, %v6340
      %v6372 = vadd.f32 %v6371, %v6341
      %v6373 = vadd.f32 %v6372, %v6342
      %v6374 = vadd.f32 %v6373, %v6343
      %v6375 = vadd.f32 %v6374, %v6344
      %v6376 = vadd.f32 %v6375, %v6345
      %v6377 = vadd.f32 %v6376, %v6346
      %v6378 = vadd.f32 %v6377, %v6347
      %v6379 = vadd.f32 %v6378, %v6348
      %v6380 = vadd.f32 %v6379, %v6349
      %v6381 = vadd.f32 %v6380, %v6350
      %v6382 = vadd.f32 %v6381, %v6351
      %v6383 = vrot.slane %v6382, 4
      %v6384 = vadd.f32 %v6382, %v6383
      %v6385 = vrot.slane %v6384, 2
      %v6386 = vadd.f32 %v6384, %v6385
      %v6387 = vrot.slane %v6386, 1
      %v6388 = vadd.f32 %v6386, %v6387
      %v6389 = vmul.f32 %v6388, 0.00390625
      %v6390 = vmul.f32 %v6319, %v6319
      %v6391 = vsub.f32 %v6389, %v6390
      %v6392 = vmax.f32 %v6391, 0.0
      %v6393 = vsub.f32 %v6250, %v6319
      %v6394 = vsub.f32 %v6251, %v6319
      %v6395 = vsub.f32 %v6252, %v6319
      %v6396 = vsub.f32 %v6253, %v6319
      %v6397 = vsub.f32 %v6254, %v6319
      %v6398 = vsub.f32 %v6255, %v6319
      %v6399 = vsub.f32 %v6256, %v6319
      %v6400 = vsub.f32 %v6257, %v6319
      %v6401 = vsub.f32 %v6258, %v6319
      %v6402 = vsub.f32 %v6259, %v6319
      %v6403 = vsub.f32 %v6260, %v6319
      %v6404 = vsub.f32 %v6261, %v6319
      %v6405 = vsub.f32 %v6262, %v6319
      %v6406 = vsub.f32 %v6263, %v6319
      %v6407 = vsub.f32 %v6264, %v6319
      %v6408 = vsub.f32 %v6265, %v6319
      %v6409 = vsub.f32 %v6266, %v6319
      %v6410 = vsub.f32 %v6267, %v6319
      %v6411 = vsub.f32 %v6268, %v6319
      %v6412 = vsub.f32 %v6269, %v6319
      %v6413 = vsub.f32 %v6270, %v6319
      %v6414 = vsub.f32 %v6271, %v6319
      %v6415 = vsub.f32 %v6272, %v6319
      %v6416 = vsub.f32 %v6273, %v6319
      %v6417 = vsub.f32 %v6274, %v6319
      %v6418 = vsub.f32 %v6275, %v6319
      %v6419 = vsub.f32 %v6276, %v6319
      %v6420 = vsub.f32 %v6277, %v6319
      %v6421 = vsub.f32 %v6278, %v6319
      %v6422 = vsub.f32 %v6279, %v6319
      %v6423 = vsub.f32 %v6280, %v6319
      %v6424 = vsub.f32 %v6281, %v6319
      %v6425 = vadd.f32 %v6392, 1e-05
      %v6426 = vrsqrt.pop %v6425
      %v6427 = vmul.f32 %v6393, %v6426
      %v6428 = vmul.f32 %v6394, %v6426
      %v6429 = vmul.f32 %v6395, %v6426
      %v6430 = vmul.f32 %v6396, %v6426
      %v6431 = vmul.f32 %v6397, %v6426
      %v6432 = vmul.f32 %v6398, %v6426
      %v6433 = vmul.f32 %v6399, %v6426
      %v6434 = vmul.f32 %v6400, %v6426
      %v6435 = vmul.f32 %v6401, %v6426
      %v6436 = vmul.f32 %v6402, %v6426
      %v6437 = vmul.f32 %v6403, %v6426
      %v6438 = vmul.f32 %v6404, %v6426
      %v6439 = vmul.f32 %v6405, %v6426
      %v6440 = vmul.f32 %v6406, %v6426
      %v6441 = vmul.f32 %v6407, %v6426
      %v6442 = vmul.f32 %v6408, %v6426
      %v6443 = vmul.f32 %v6409, %v6426
      %v6444 = vmul.f32 %v6410, %v6426
      %v6445 = vmul.f32 %v6411, %v6426
      %v6446 = vmul.f32 %v6412, %v6426
      %v6447 = vmul.f32 %v6413, %v6426
      %v6448 = vmul.f32 %v6414, %v6426
      %v6449 = vmul.f32 %v6415, %v6426
      %v6450 = vmul.f32 %v6416, %v6426
      %v6451 = vmul.f32 %v6417, %v6426
      %v6452 = vmul.f32 %v6418, %v6426
      %v6453 = vmul.f32 %v6419, %v6426
      %v6454 = vmul.f32 %v6420, %v6426
      %v6455 = vmul.f32 %v6421, %v6426
      %v6456 = vmul.f32 %v6422, %v6426
      %v6457 = vmul.f32 %v6423, %v6426
      %v6458 = vmul.f32 %v6424, %v6426
      %vm6459 = vcmp.gt.f32.partialorder %v6427, 0.0
      %vm6460 = vcmp.gt.f32.partialorder %v6428, 0.0
      %vm6461 = vcmp.gt.f32.partialorder %v6429, 0.0
      %vm6462 = vcmp.gt.f32.partialorder %v6430, 0.0
      %vm6463 = vcmp.gt.f32.partialorder %v6431, 0.0
      %vm6464 = vcmp.gt.f32.partialorder %v6432, 0.0
      %vm6465 = vcmp.gt.f32.partialorder %v6433, 0.0
      %vm6466 = vcmp.gt.f32.partialorder %v6434, 0.0
      %vm6467 = vcmp.gt.f32.partialorder %v6435, 0.0
      %vm6468 = vcmp.gt.f32.partialorder %v6436, 0.0
      %vm6469 = vcmp.gt.f32.partialorder %v6437, 0.0
      %vm6470 = vcmp.gt.f32.partialorder %v6438, 0.0
      %vm6471 = vcmp.gt.f32.partialorder %v6439, 0.0
      %vm6472 = vcmp.gt.f32.partialorder %v6440, 0.0
      %vm6473 = vcmp.gt.f32.partialorder %v6441, 0.0
      %vm6474 = vcmp.gt.f32.partialorder %v6442, 0.0
      %vm6475 = vcmp.gt.f32.partialorder %v6443, 0.0
      %vm6476 = vcmp.gt.f32.partialorder %v6444, 0.0
      %vm6477 = vcmp.gt.f32.partialorder %v6445, 0.0
      %vm6478 = vcmp.gt.f32.partialorder %v6446, 0.0
      %vm6479 = vcmp.gt.f32.partialorder %v6447, 0.0
      %vm6480 = vcmp.gt.f32.partialorder %v6448, 0.0
      %vm6481 = vcmp.gt.f32.partialorder %v6449, 0.0
      %vm6482 = vcmp.gt.f32.partialorder %v6450, 0.0
      %vm6483 = vcmp.gt.f32.partialorder %v6451, 0.0
      %vm6484 = vcmp.gt.f32.partialorder %v6452, 0.0
      %vm6485 = vcmp.gt.f32.partialorder %v6453, 0.0
      %vm6486 = vcmp.gt.f32.partialorder %v6454, 0.0
      %vm6487 = vcmp.gt.f32.partialorder %v6455, 0.0
      %vm6488 = vcmp.gt.f32.partialorder %v6456, 0.0
      %vm6489 = vcmp.gt.f32.partialorder %v6457, 0.0
      %vm6490 = vcmp.gt.f32.partialorder %v6458, 0.0
      %v6491 = vmul.f32 %v6427, 0.2
      %v6492 = vmul.f32 %v6428, 0.2
      %v6493 = vmul.f32 %v6429, 0.2
      %v6494 = vmul.f32 %v6430, 0.2
      %v6495 = vmul.f32 %v6431, 0.2
      %v6496 = vmul.f32 %v6432, 0.2
      %v6497 = vmul.f32 %v6433, 0.2
      %v6498 = vmul.f32 %v6434, 0.2
      %v6499 = vmul.f32 %v6435, 0.2
      %v6500 = vmul.f32 %v6436, 0.2
      %v6501 = vmul.f32 %v6437, 0.2
      %v6502 = vmul.f32 %v6438, 0.2
      %v6503 = vmul.f32 %v6439, 0.2
      %v6504 = vmul.f32 %v6440, 0.2
      %v6505 = vmul.f32 %v6441, 0.2
      %v6506 = vmul.f32 %v6442, 0.2
      %v6507 = vmul.f32 %v6443, 0.2
      %v6508 = vmul.f32 %v6444, 0.2
      %v6509 = vmul.f32 %v6445, 0.2
      %v6510 = vmul.f32 %v6446, 0.2
      %v6511 = vmul.f32 %v6447, 0.2
      %v6512 = vmul.f32 %v6448, 0.2
      %v6513 = vmul.f32 %v6449, 0.2
      %v6514 = vmul.f32 %v6450, 0.2
      %v6515 = vmul.f32 %v6451, 0.2
      %v6516 = vmul.f32 %v6452, 0.2
      %v6517 = vmul.f32 %v6453, 0.2
      %v6518 = vmul.f32 %v6454, 0.2
      %v6519 = vmul.f32 %v6455, 0.2
      %v6520 = vmul.f32 %v6456, 0.2
      %v6521 = vmul.f32 %v6457, 0.2
      %v6522 = vmul.f32 %v6458, 0.2
      %v6523 = vsel %vm6459, %v6427, %v6491
      %v6524 = vsel %vm6460, %v6428, %v6492
      %v6525 = vsel %vm6461, %v6429, %v6493
      %v6526 = vsel %vm6462, %v6430, %v6494
      %v6527 = vsel %vm6463, %v6431, %v6495
      %v6528 = vsel %vm6464, %v6432, %v6496
      %v6529 = vsel %vm6465, %v6433, %v6497
      %v6530 = vsel %vm6466, %v6434, %v6498
      %v6531 = vsel %vm6467, %v6435, %v6499
      %v6532 = vsel %vm6468, %v6436, %v6500
      %v6533 = vsel %vm6469, %v6437, %v6501
      %v6534 = vsel %vm6470, %v6438, %v6502
      %v6535 = vsel %vm6471, %v6439, %v6503
      %v6536 = vsel %vm6472, %v6440, %v6504
      %v6537 = vsel %vm6473, %v6441, %v6505
      %v6538 = vsel %vm6474, %v6442, %v6506
      %v6539 = vsel %vm6475, %v6443, %v6507
      %v6540 = vsel %vm6476, %v6444, %v6508
      %v6541 = vsel %vm6477, %v6445, %v6509
      %v6542 = vsel %vm6478, %v6446, %v6510
      %v6543 = vsel %vm6479, %v6447, %v6511
      %v6544 = vsel %vm6480, %v6448, %v6512
      %v6545 = vsel %vm6481, %v6449, %v6513
      %v6546 = vsel %vm6482, %v6450, %v6514
      %v6547 = vsel %vm6483, %v6451, %v6515
      %v6548 = vsel %vm6484, %v6452, %v6516
      %v6549 = vsel %vm6485, %v6453, %v6517
      %v6550 = vsel %vm6486, %v6454, %v6518
      %v6551 = vsel %vm6487, %v6455, %v6519
      %v6552 = vsel %vm6488, %v6456, %v6520
      %v6553 = vsel %vm6489, %v6457, %v6521
      %v6554 = vsel %vm6490, %v6458, %v6522
      %v6555 = vpack.c.bf16 %v6524, %v6523
      %v6556 = vpack.c.bf16 %v6526, %v6525
      %v6557 = vpack.c.bf16 %v6528, %v6527
      %v6558 = vpack.c.bf16 %v6530, %v6529
      %v6559 = vpack.c.bf16 %v6532, %v6531
      %v6560 = vpack.c.bf16 %v6534, %v6533
      %v6561 = vpack.c.bf16 %v6536, %v6535
      %v6562 = vpack.c.bf16 %v6538, %v6537
      %v6563 = vpack.c.bf16 %v6540, %v6539
      %v6564 = vpack.c.bf16 %v6542, %v6541
      %v6565 = vpack.c.bf16 %v6544, %v6543
      %v6566 = vpack.c.bf16 %v6546, %v6545
      %v6567 = vpack.c.bf16 %v6548, %v6547
      %v6568 = vpack.c.bf16 %v6550, %v6549
      %v6569 = vpack.c.bf16 %v6552, %v6551
      %v6570 = vpack.c.bf16 %v6554, %v6553
      %v6587 = vunpack.c.l.b16 %v6555
      %v6588 = vunpack.c.h.b16 %v6555
      %v6589 = vunpack.c.l.b16 %v6556
      %v6590 = vunpack.c.h.b16 %v6556
      %v6591 = vunpack.c.l.b16 %v6557
      %v6592 = vunpack.c.h.b16 %v6557
      %v6593 = vunpack.c.l.b16 %v6558
      %v6594 = vunpack.c.h.b16 %v6558
      %v6595 = vunpack.c.l.b16 %v6559
      %v6596 = vunpack.c.h.b16 %v6559
      %v6597 = vunpack.c.l.b16 %v6560
      %v6598 = vunpack.c.h.b16 %v6560
      %v6599 = vunpack.c.l.b16 %v6561
      %v6600 = vunpack.c.h.b16 %v6561
      %v6601 = vunpack.c.l.b16 %v6562
      %v6602 = vunpack.c.h.b16 %v6562
      %v6603 = vunpack.c.l.b16 %v6563
      %v6604 = vunpack.c.h.b16 %v6563
      %v6605 = vunpack.c.l.b16 %v6564
      %v6606 = vunpack.c.h.b16 %v6564
      %v6607 = vunpack.c.l.b16 %v6565
      %v6608 = vunpack.c.h.b16 %v6565
      %v6609 = vunpack.c.l.b16 %v6566
      %v6610 = vunpack.c.h.b16 %v6566
      %v6611 = vunpack.c.l.b16 %v6567
      %v6612 = vunpack.c.h.b16 %v6567
      %v6613 = vunpack.c.l.b16 %v6568
      %v6614 = vunpack.c.h.b16 %v6568
      %v6615 = vunpack.c.l.b16 %v6569
      %v6616 = vunpack.c.h.b16 %v6569
      %v6617 = vunpack.c.l.b16 %v6570
      %v6618 = vunpack.c.h.b16 %v6570
      %v6619 = vpack.c.b16 %v6587, %v6587
      %v6620 = vpack.c.b16 %v6588, %v6588
      %v6621 = vpack.c.b16 %v6589, %v6589
      %v6622 = vpack.c.b16 %v6590, %v6590
      %v6623 = vpack.c.b16 %v6591, %v6591
      %v6624 = vpack.c.b16 %v6592, %v6592
      %v6625 = vpack.c.b16 %v6593, %v6593
      %v6626 = vpack.c.b16 %v6594, %v6594
      %v6627 = vpack.c.b16 %v6595, %v6595
      %v6628 = vpack.c.b16 %v6596, %v6596
      %v6629 = vpack.c.b16 %v6597, %v6597
      %v6630 = vpack.c.b16 %v6598, %v6598
      %v6631 = vpack.c.b16 %v6599, %v6599
      %v6632 = vpack.c.b16 %v6600, %v6600
      %v6633 = vpack.c.b16 %v6601, %v6601
      %v6634 = vpack.c.b16 %v6602, %v6602
      %v6635 = vpack.c.b16 %v6603, %v6603
      %v6636 = vpack.c.b16 %v6604, %v6604
      %v6637 = vpack.c.b16 %v6605, %v6605
      %v6638 = vpack.c.b16 %v6606, %v6606
      %v6639 = vpack.c.b16 %v6607, %v6607
      %v6640 = vpack.c.b16 %v6608, %v6608
      %v6641 = vpack.c.b16 %v6609, %v6609
      %v6642 = vpack.c.b16 %v6610, %v6610
      %v6643 = vpack.c.b16 %v6611, %v6611
      %v6644 = vpack.c.b16 %v6612, %v6612
      %v6645 = vpack.c.b16 %v6613, %v6613
      %v6646 = vpack.c.b16 %v6614, %v6614
      %v6647 = vpack.c.b16 %v6615, %v6615
      %v6648 = vpack.c.b16 %v6616, %v6616
      %v6649 = vpack.c.b16 %v6617, %v6617
      %v6650 = vpack.c.b16 %v6618, %v6618
      %6683 = vst [vmem:[%s143] sm:$0xf] %v6619
      %6684 = vst [vmem:[%s143 + $0x4] sm:$0xf] %v6620
      %6685 = vst [vmem:[%s143 + $0x8] sm:$0xf] %v6621
      %6686 = vst [vmem:[%s143 + $0xc] sm:$0xf] %v6622
      %6687 = vst [vmem:[%s143 + $0x10] sm:$0xf] %v6623
      %6688 = vst [vmem:[%s143 + $0x14] sm:$0xf] %v6624
      %6689 = vst [vmem:[%s143 + $0x18] sm:$0xf] %v6625
      %6690 = vst [vmem:[%s143 + $0x1c] sm:$0xf] %v6626
      %6691 = vst [vmem:[%s143 + $0x20] sm:$0xf] %v6627
      %6692 = vst [vmem:[%s143 + $0x24] sm:$0xf] %v6628
      %6693 = vst [vmem:[%s143 + $0x28] sm:$0xf] %v6629
      %6694 = vst [vmem:[%s143 + $0x2c] sm:$0xf] %v6630
      %6695 = vst [vmem:[%s143 + $0x30] sm:$0xf] %v6631
      %6696 = vst [vmem:[%s143 + $0x34] sm:$0xf] %v6632
      %6697 = vst [vmem:[%s143 + $0x38] sm:$0xf] %v6633
      %6698 = vst [vmem:[%s143 + $0x3c] sm:$0xf] %v6634
      %6699 = vst [vmem:[%s143 + $0x40] sm:$0xf] %v6635
      %6700 = vst [vmem:[%s143 + $0x44] sm:$0xf] %v6636
      %6701 = vst [vmem:[%s143 + $0x48] sm:$0xf] %v6637
      %6702 = vst [vmem:[%s143 + $0x4c] sm:$0xf] %v6638
      %6703 = vst [vmem:[%s143 + $0x50] sm:$0xf] %v6639
      %6704 = vst [vmem:[%s143 + $0x54] sm:$0xf] %v6640
      %6705 = vst [vmem:[%s143 + $0x58] sm:$0xf] %v6641
      %6706 = vst [vmem:[%s143 + $0x5c] sm:$0xf] %v6642
      %6707 = vst [vmem:[%s143 + $0x60] sm:$0xf] %v6643
      %6708 = vst [vmem:[%s143 + $0x64] sm:$0xf] %v6644
      %6709 = vst [vmem:[%s143 + $0x68] sm:$0xf] %v6645
      %6710 = vst [vmem:[%s143 + $0x6c] sm:$0xf] %v6646
      %6711 = vst [vmem:[%s143 + $0x70] sm:$0xf] %v6647
      %6712 = vst [vmem:[%s143 + $0x74] sm:$0xf] %v6648
      %6713 = vst [vmem:[%s143 + $0x78] sm:$0xf] %v6649
      %6714 = vst [vmem:[%s143 + $0x7c] sm:$0xf] %v6650
      %p6715 = scmp.lt.s32.totalorder %s13, 1
      %s6716 = scalar_select %p6715, %s13, 1
      %s6717 = smul.addr %s6716, 32
      %s6718 = smul.addr %s6717, 4
      %s6719 = scalar_lea.vmem %s2, %s6718
      // Predicated region
      $region29: #{unet_conv2_forward.2} parent=27 // pred_check
        %p6720 = pneg %p78
      $region30: #{unet_conv2_forward.2} parent=27 // pred_check_branch
        %6722 = sbr.rel (%p6720) target = $region32
      $region31: #{unet_conv2_forward.2} parent=27 // pred_region
        _
      $region32: #{unet_conv2_forward.2} parent=27 // pred_fallthru
        _
    $region28: #{unet_conv2_forward.2} parent=5 // pred_fallthru
      _
    %p6723 = scmp.le.s32.totalorder 2, %s8
    // Predicated region
    $region33: #{unet_conv2_forward.2} parent=5 // pred_check
      %p6724 = pneg %p6723
    $region34: #{unet_conv2_forward.2} parent=5 // pred_check_branch
      %6726 = sbr.rel (%p6724) target = $region36
    $region35: #{unet_conv2_forward.2} parent=5 // pred_region
      %s6727 = ssub.s32 %s8, 2
      // Predicated region
      $region37: #{unet_conv2_forward.2} parent=35 // pred_check
        %p6728 = pneg %p84
      $region38: #{unet_conv2_forward.2} parent=35 // pred_check_branch
        %6730 = sbr.rel (%p6728) target = $region40
      $region39: #{unet_conv2_forward.2} parent=35 // pred_region
        %p6731 = scmp.lt.s32.totalorder %s14, 1
        %s6732 = scalar_select %p6731, %s14, 1
        %s6733 = smul.addr %s6732, 32
        %s6734 = smul.addr %s6733, 4
        %s6735 = scalar_lea.vmem %s2, %s6734
      $region40: #{unet_conv2_forward.2} parent=35 // pred_fallthru
        _
    $region36: #{unet_conv2_forward.2} parent=5 // pred_fallthru
      _
  $region6: #{unet_conv2_forward.2} parent=0 // loop_footer
    %s12 = sadd.s32 1, %s8
  $region7: #{unet_conv2_forward.2} parent=0 // loop_footer_branch
    %7 = sbr.rel target = $region3
  $region8: #{unet_conv2_forward.2} parent=0 // loop_exit
    _

</llo_original>
